<compile_context>
chip_gen: v6e
topology: v6e:2x2x1
jax: 0.10.0
libtpu: 0.0.40
codegen_flags: <defaults>
</compile_context>

<pallas_src>
import functools

import jax
import jax.numpy as jnp
from jax import lax
from jax.experimental import pallas as pl
from jax.experimental.pallas import tpu as pltpu


# ------------------------------ fused kernel ---------------------------------

def fused_mhca_kernel(q_ref, k_ref, v_ref,
                      wq_ref, bq_ref, wk_ref, bk_ref,
                      wv_ref, bv_ref, wo_ref, bo_ref,
                      o_ref, *, num_heads, batches_per_step, nq, nk):
    # q_ref: (Bb*Nq, C)   k_ref/v_ref: (Bb*Nk, C)
    # w*_ref: (C, C) pre-transposed (and wq pre-scaled)   b*_ref: (1, C)
    # o_ref: (Bb*Nq, C)
    C = q_ref.shape[-1]
    D = C // num_heads

    # Batch-folded projections: one wide MXU matmul each (scale already folded
    # into wq/bq at prep time).
    q = jnp.dot(q_ref[...], wq_ref[...],
                preferred_element_type=jnp.float32) + bq_ref[...]   # (Bb*Nq, C)
    k = jnp.dot(k_ref[...], wk_ref[...],
                preferred_element_type=jnp.float32) + bk_ref[...]   # (Bb*Nk, C)
    v = jnp.dot(v_ref[...], wv_ref[...],
                preferred_element_type=jnp.float32) + bv_ref[...]   # (Bb*Nk, C)

    # Per-(batch, head) attention.  All slices are static and 8-aligned, the
    # per-head contexts stay in vregs (no VMEM scratch round trip), and the
    # packed (Bb*Nq, C) context slab feeds a single output-projection matmul.
    ctx_rows = []
    for b in range(batches_per_step):
        q_b = q[b * nq:(b + 1) * nq]                                # (Nq, C)
        k_b = k[b * nk:(b + 1) * nk]                                # (Nk, C)
        v_b = v[b * nk:(b + 1) * nk]                                # (Nk, C)
        heads = []
        for h in range(num_heads):
            lo = h * D
            qh = q_b[:, lo:lo + D]                                  # (Nq, D)
            kh = k_b[:, lo:lo + D]                                  # (Nk, D)
            vh = v_b[:, lo:lo + D]                                  # (Nk, D)
            # scores = qh @ kh^T via contraction on D (no explicit transpose).
            s = lax.dot_general(qh, kh, (((1,), (1,)), ((), ())),
                                preferred_element_type=jnp.float32)  # (Nq, Nk)
            m = jnp.max(s, axis=-1, keepdims=True)
            p = jnp.exp(s - m)
            inv = 1.0 / jnp.sum(p, axis=-1, keepdims=True)           # (Nq, 1)
            # (attention-weight dropout is identity in eval mode)
            heads.append(jnp.dot(p, vh,
                                 preferred_element_type=jnp.float32) * inv)
        ctx_rows.append(jnp.concatenate(heads, axis=-1))             # (Nq, C)
    ctx = ctx_rows[0] if batches_per_step == 1 else jnp.concatenate(ctx_rows,
                                                                    axis=0)
    # Single wide output projection over all Bb*Nq rows.
    out = jnp.dot(ctx, wo_ref[...],
                  preferred_element_type=jnp.float32) + bo_ref[...]
    o_ref[...] = out.astype(o_ref.dtype)


# ------------------------------- wrapper --------------------------------------

def prepare_params(params, num_heads):
    """One-time prep: transpose torch (Cout, Cin) weights, fold scale into wq/bq."""
    dim = params["wq"].shape[0]
    head_dim = dim // num_heads
    scale = head_dim ** (-0.5)
    return dict(
        wq_t=params["wq"].T * scale, bq=params["bq"].reshape(1, -1) * scale,
        wk_t=params["wk"].T, bk=params["bk"].reshape(1, -1),
        wv_t=params["wv"].T, bv=params["bv"].reshape(1, -1),
        wo_t=params["wo"].T, bo=params["bo"].reshape(1, -1),
    )


def multi_head_cross_attention(prepared, query, key, value, num_heads,
                               grid_steps=1):
    """query: (B, Nq, C); key/value: (B, Nk, C) -> (B, Nq, C).

    grid_steps=1 folds the whole batch into one kernel step (best on the
    single-TensorCore v5e/v6e); set grid_steps=2 on v7x so each TensorCore
    takes half of the batch.
    """
    B, Nq, C = query.shape
    Nk = key.shape[1]
    assert C % num_heads == 0, "dim must be divisible by num_heads"
    assert B % grid_steps == 0, "batch must be divisible by grid_steps"
    Bb = B // grid_steps

    # Free XLA reshapes: fold batch into rows so the projections are wide.
    q2d = query.reshape(B * Nq, C)
    k2d = key.reshape(B * Nk, C)
    v2d = value.reshape(B * Nk, C)

    kern = functools.partial(fused_mhca_kernel, num_heads=num_heads,
                             batches_per_step=Bb, nq=Nq, nk=Nk)
    w_spec = pl.BlockSpec((C, C), lambda i: (0, 0))
    b_spec = pl.BlockSpec((1, C), lambda i: (0, 0))

    out2d = pl.pallas_call(
        kern,
        out_shape=jax.ShapeDtypeStruct((B * Nq, C), query.dtype),
        grid_spec=pltpu.PrefetchScalarGridSpec(
            num_scalar_prefetch=0,
            grid=(grid_steps,),
            in_specs=[
                pl.BlockSpec((Bb * Nq, C), lambda i: (i, 0)),   # query rows
                pl.BlockSpec((Bb * Nk, C), lambda i: (i, 0)),   # key rows
                pl.BlockSpec((Bb * Nk, C), lambda i: (i, 0)),   # value rows
                w_spec, b_spec,                                 # q_proj (pre-scaled)
                w_spec, b_spec,                                 # k_proj
                w_spec, b_spec,                                 # v_proj
                w_spec, b_spec,                                 # out_proj
            ],
            out_specs=pl.BlockSpec((Bb * Nq, C), lambda i: (i, 0)),
        ),
        compiler_params=pltpu.CompilerParams(
            dimension_semantics=("parallel",)),
    )(q2d, k2d, v2d,
      prepared["wq_t"], prepared["bq"],
      prepared["wk_t"], prepared["bk"],
      prepared["wv_t"], prepared["bv"],
      prepared["wo_t"], prepared["bo"])

    return out2d.reshape(B, Nq, C)


# ------------------------------ pure-JAX reference ----------------------------

def reference_forward(params, query, key, value, num_heads):
    B, Nq, C = query.shape
    Nk = key.shape[1]
    head_dim = C // num_heads
    scale = head_dim ** (-0.5)

    def lin(x, w, b):
        return jnp.einsum("bnc,oc->bno", x, w) + b

    q = lin(query, params["wq"], params["bq"]).reshape(B, Nq, num_heads, head_dim).transpose(0, 2, 1, 3)
    k = lin(key,   params["wk"], params["bk"]).reshape(B, Nk, num_heads, head_dim).transpose(0, 2, 1, 3)
    v = lin(value, params["wv"], params["bv"]).reshape(B, Nk, num_heads, head_dim).transpose(0, 2, 1, 3)
    attn = jnp.einsum("bhqd,bhkd->bhqk", q, k) * scale
    attn = jax.nn.softmax(attn, axis=-1)
    out = jnp.einsum("bhqk,bhkd->bhqd", attn, v).transpose(0, 2, 1, 3).reshape(B, Nq, C)
    return lin(out, params["wo"], params["bo"])


# ----------------------------------- main -------------------------------------

if __name__ == "__main__":
    dim, num_heads = 64, 8
    B, Nq, Nk = 2, 8, 8

    root = jax.random.PRNGKey(0)
    ks = jax.random.split(root, 11)

    def init_linear(kw, kb, fan_in, fan_out):
        bound = 1.0 / (fan_in ** 0.5)
        w = jax.random.uniform(kw, (fan_out, fan_in), jnp.float32, -bound, bound)
        b = jax.random.uniform(kb, (fan_out,), jnp.float32, -bound, bound)
        return w, b

    wq, bq = init_linear(ks[0], ks[1], dim, dim)
    wk, bk = init_linear(ks[2], ks[3], dim, dim)
    wv, bv = init_linear(ks[4], ks[5], dim, dim)
    wo, bo = init_linear(ks[6], ks[7], dim, dim)
    params = dict(wq=wq, bq=bq, wk=wk, bk=bk, wv=wv, bv=bv, wo=wo, bo=bo)
    prepared = prepare_params(params, num_heads)   # transpose + scale fold, once

    query = jax.random.normal(ks[8], (B, Nq, dim), jnp.float32)
    key   = jax.random.normal(ks[9], (B, Nk, dim), jnp.float32)
    value = jax.random.normal(ks[10], (B, Nk, dim), jnp.float32)

    out = multi_head_cross_attention(prepared, query, key, value, num_heads)
    out = jax.block_until_ready(out)

    ref = reference_forward(params, query, key, value, num_heads)
    assert out.shape == (B, Nq, dim)
    assert jnp.allclose(out, ref, atol=1e-4, rtol=1e-4), "mismatch vs pure-JAX reference"

    print("KERNEL_OK")
</pallas_src>

<mosaic_0001>
module attributes {stable_mosaic.version = 11 : i64} {
  func.func @fused_mhca_kernel(%arg0: i32, %arg1: memref<16x64xf32, #tpu.memory_space<vmem>>, %arg2: memref<16x64xf32, #tpu.memory_space<vmem>>, %arg3: memref<16x64xf32, #tpu.memory_space<vmem>>, %arg4: memref<64x64xf32, #tpu.memory_space<vmem>>, %arg5: memref<1x64xf32, #tpu.memory_space<vmem>>, %arg6: memref<64x64xf32, #tpu.memory_space<vmem>>, %arg7: memref<1x64xf32, #tpu.memory_space<vmem>>, %arg8: memref<64x64xf32, #tpu.memory_space<vmem>>, %arg9: memref<1x64xf32, #tpu.memory_space<vmem>>, %arg10: memref<64x64xf32, #tpu.memory_space<vmem>>, %arg11: memref<1x64xf32, #tpu.memory_space<vmem>>, %arg12: memref<16x64xf32, #tpu.memory_space<vmem>>) attributes {dimension_semantics = [#tpu.dimension_semantics<parallel>], iteration_bounds = array<i64: 1>, scalar_prefetch = 0 : i64, scratch_operands = 0 : i64, tpu.core_type = #tpu.core_type<tc>, window_params = [{transform_indices = @transform_0, window_bounds = array<i64: 16, 64>}, {transform_indices = @transform_1, window_bounds = array<i64: 16, 64>}, {transform_indices = @transform_2, window_bounds = array<i64: 16, 64>}, {pipeline_mode = #tpu.pipeline_mode<synchronous>, transform_indices = @transform_3, window_bounds = array<i64: 64, 64>}, {pipeline_mode = #tpu.pipeline_mode<synchronous>, transform_indices = @transform_4, window_bounds = array<i64: 1, 64>}, {pipeline_mode = #tpu.pipeline_mode<synchronous>, transform_indices = @transform_5, window_bounds = array<i64: 64, 64>}, {pipeline_mode = #tpu.pipeline_mode<synchronous>, transform_indices = @transform_6, window_bounds = array<i64: 1, 64>}, {pipeline_mode = #tpu.pipeline_mode<synchronous>, transform_indices = @transform_7, window_bounds = array<i64: 64, 64>}, {pipeline_mode = #tpu.pipeline_mode<synchronous>, transform_indices = @transform_8, window_bounds = array<i64: 1, 64>}, {pipeline_mode = #tpu.pipeline_mode<synchronous>, transform_indices = @transform_9, window_bounds = array<i64: 64, 64>}, {pipeline_mode = #tpu.pipeline_mode<synchronous>, transform_indices = @transform_10, window_bounds = array<i64: 1, 64>}, {transform_indices = @transform_11, window_bounds = array<i64: 16, 64>}]} {
    %c0 = arith.constant 0 : index
    %c0_0 = arith.constant 0 : index
    %0 = vector.load %arg1[%c0, %c0_0] : memref<16x64xf32, #tpu.memory_space<vmem>>, vector<16x64xf32>
    %c0_1 = arith.constant 0 : index
    %c0_2 = arith.constant 0 : index
    %1 = vector.load %arg4[%c0_1, %c0_2] : memref<64x64xf32, #tpu.memory_space<vmem>>, vector<64x64xf32>
    %cst = arith.constant dense<0.000000e+00> : vector<16x64xf32>
    %2 = tpu.matmul %0, %1, %cst {dimension_numbers = #tpu.dot_dimension_numbers<[1], [0], [0], [1], [0, 0, 1, 1], [], []>} : vector<16x64xf32>, vector<64x64xf32>, vector<16x64xf32> -> vector<16x64xf32>
    %c0_3 = arith.constant 0 : index
    %c0_4 = arith.constant 0 : index
    %3 = vector.load %arg5[%c0_3, %c0_4] : memref<1x64xf32, #tpu.memory_space<vmem>>, vector<1x64xf32>
    %4 = vector.broadcast %3 : vector<1x64xf32> to vector<16x64xf32>
    %5 = arith.addf %2, %4 : vector<16x64xf32>
    %c0_5 = arith.constant 0 : index
    %c0_6 = arith.constant 0 : index
    %6 = vector.load %arg2[%c0_5, %c0_6] : memref<16x64xf32, #tpu.memory_space<vmem>>, vector<16x64xf32>
    %c0_7 = arith.constant 0 : index
    %c0_8 = arith.constant 0 : index
    %7 = vector.load %arg6[%c0_7, %c0_8] : memref<64x64xf32, #tpu.memory_space<vmem>>, vector<64x64xf32>
    %cst_9 = arith.constant dense<0.000000e+00> : vector<16x64xf32>
    %8 = tpu.matmul %6, %7, %cst_9 {dimension_numbers = #tpu.dot_dimension_numbers<[1], [0], [0], [1], [0, 0, 1, 1], [], []>} : vector<16x64xf32>, vector<64x64xf32>, vector<16x64xf32> -> vector<16x64xf32>
    %c0_10 = arith.constant 0 : index
    %c0_11 = arith.constant 0 : index
    %9 = vector.load %arg7[%c0_10, %c0_11] : memref<1x64xf32, #tpu.memory_space<vmem>>, vector<1x64xf32>
    %10 = vector.broadcast %9 : vector<1x64xf32> to vector<16x64xf32>
    %11 = arith.addf %8, %10 : vector<16x64xf32>
    %c0_12 = arith.constant 0 : index
    %c0_13 = arith.constant 0 : index
    %12 = vector.load %arg3[%c0_12, %c0_13] : memref<16x64xf32, #tpu.memory_space<vmem>>, vector<16x64xf32>
    %c0_14 = arith.constant 0 : index
    %c0_15 = arith.constant 0 : index
    %13 = vector.load %arg8[%c0_14, %c0_15] : memref<64x64xf32, #tpu.memory_space<vmem>>, vector<64x64xf32>
    %cst_16 = arith.constant dense<0.000000e+00> : vector<16x64xf32>
    %14 = tpu.matmul %12, %13, %cst_16 {dimension_numbers = #tpu.dot_dimension_numbers<[1], [0], [0], [1], [0, 0, 1, 1], [], []>} : vector<16x64xf32>, vector<64x64xf32>, vector<16x64xf32> -> vector<16x64xf32>
    %c0_17 = arith.constant 0 : index
    %c0_18 = arith.constant 0 : index
    %15 = vector.load %arg9[%c0_17, %c0_18] : memref<1x64xf32, #tpu.memory_space<vmem>>, vector<1x64xf32>
    %16 = vector.broadcast %15 : vector<1x64xf32> to vector<16x64xf32>
    %17 = arith.addf %14, %16 : vector<16x64xf32>
    %18 = vector.extract_strided_slice %5 {offsets = [0, 0], sizes = [8, 64], strides = [1, 1]} : vector<16x64xf32> to vector<8x64xf32>
    %19 = vector.extract_strided_slice %11 {offsets = [0, 0], sizes = [8, 64], strides = [1, 1]} : vector<16x64xf32> to vector<8x64xf32>
    %20 = vector.extract_strided_slice %17 {offsets = [0, 0], sizes = [8, 64], strides = [1, 1]} : vector<16x64xf32> to vector<8x64xf32>
    %21 = vector.extract_strided_slice %18 {offsets = [0, 0], sizes = [8, 8], strides = [1, 1]} : vector<8x64xf32> to vector<8x8xf32>
    %22 = vector.extract_strided_slice %19 {offsets = [0, 0], sizes = [8, 8], strides = [1, 1]} : vector<8x64xf32> to vector<8x8xf32>
    %23 = vector.extract_strided_slice %20 {offsets = [0, 0], sizes = [8, 8], strides = [1, 1]} : vector<8x64xf32> to vector<8x8xf32>
    %cst_19 = arith.constant dense<0.000000e+00> : vector<8x8xf32>
    %24 = tpu.matmul %21, %22, %cst_19 {dimension_numbers = #tpu.dot_dimension_numbers<[1], [1], [0], [0], [0, 0, 1, 0], [], []>} : vector<8x8xf32>, vector<8x8xf32>, vector<8x8xf32> -> vector<8x8xf32>
    %cst_20 = arith.constant dense<0xFF800000> : vector<8xf32>
    %25 = vector.multi_reduction <maximumf>, %24, %cst_20 [1] : vector<8x8xf32> to vector<8xf32>
    %26 = vector.shape_cast %25 : vector<8xf32> to vector<8x1xf32>
    %27 = vector.broadcast %26 : vector<8x1xf32> to vector<8x8xf32>
    %28 = arith.subf %24, %27 : vector<8x8xf32>
    %29 = math.exp %28 : vector<8x8xf32>
    %cst_21 = arith.constant dense<0.000000e+00> : vector<8xf32>
    %30 = vector.multi_reduction <add>, %29, %cst_21 [1] : vector<8x8xf32> to vector<8xf32>
    %31 = vector.shape_cast %30 : vector<8xf32> to vector<8x1xf32>
    %cst_22 = arith.constant 1.000000e+00 : f32
    %32 = vector.broadcast %cst_22 : f32 to vector<8x1xf32>
    %33 = arith.divf %32, %31 : vector<8x1xf32>
    %cst_23 = arith.constant dense<0.000000e+00> : vector<8x8xf32>
    %34 = tpu.matmul %29, %23, %cst_23 {dimension_numbers = #tpu.dot_dimension_numbers<[1], [0], [0], [1], [0, 0, 1, 1], [], []>} : vector<8x8xf32>, vector<8x8xf32>, vector<8x8xf32> -> vector<8x8xf32>
    %35 = vector.broadcast %33 : vector<8x1xf32> to vector<8x8xf32>
    %36 = arith.mulf %34, %35 : vector<8x8xf32>
    %37 = vector.extract_strided_slice %18 {offsets = [0, 8], sizes = [8, 8], strides = [1, 1]} : vector<8x64xf32> to vector<8x8xf32>
    %38 = vector.extract_strided_slice %19 {offsets = [0, 8], sizes = [8, 8], strides = [1, 1]} : vector<8x64xf32> to vector<8x8xf32>
    %39 = vector.extract_strided_slice %20 {offsets = [0, 8], sizes = [8, 8], strides = [1, 1]} : vector<8x64xf32> to vector<8x8xf32>
    %cst_24 = arith.constant dense<0.000000e+00> : vector<8x8xf32>
    %40 = tpu.matmul %37, %38, %cst_24 {dimension_numbers = #tpu.dot_dimension_numbers<[1], [1], [0], [0], [0, 0, 1, 0], [], []>} : vector<8x8xf32>, vector<8x8xf32>, vector<8x8xf32> -> vector<8x8xf32>
    %cst_25 = arith.constant dense<0xFF800000> : vector<8xf32>
    %41 = vector.multi_reduction <maximumf>, %40, %cst_25 [1] : vector<8x8xf32> to vector<8xf32>
    %42 = vector.shape_cast %41 : vector<8xf32> to vector<8x1xf32>
    %43 = vector.broadcast %42 : vector<8x1xf32> to vector<8x8xf32>
    %44 = arith.subf %40, %43 : vector<8x8xf32>
    %45 = math.exp %44 : vector<8x8xf32>
    %cst_26 = arith.constant dense<0.000000e+00> : vector<8xf32>
    %46 = vector.multi_reduction <add>, %45, %cst_26 [1] : vector<8x8xf32> to vector<8xf32>
    %47 = vector.shape_cast %46 : vector<8xf32> to vector<8x1xf32>
    %cst_27 = arith.constant 1.000000e+00 : f32
    %48 = vector.broadcast %cst_27 : f32 to vector<8x1xf32>
    %49 = arith.divf %48, %47 : vector<8x1xf32>
    %cst_28 = arith.constant dense<0.000000e+00> : vector<8x8xf32>
    %50 = tpu.matmul %45, %39, %cst_28 {dimension_numbers = #tpu.dot_dimension_numbers<[1], [0], [0], [1], [0, 0, 1, 1], [], []>} : vector<8x8xf32>, vector<8x8xf32>, vector<8x8xf32> -> vector<8x8xf32>
    %51 = vector.broadcast %49 : vector<8x1xf32> to vector<8x8xf32>
    %52 = arith.mulf %50, %51 : vector<8x8xf32>
    %53 = vector.extract_strided_slice %18 {offsets = [0, 16], sizes = [8, 8], strides = [1, 1]} : vector<8x64xf32> to vector<8x8xf32>
    %54 = vector.extract_strided_slice %19 {offsets = [0, 16], sizes = [8, 8], strides = [1, 1]} : vector<8x64xf32> to vector<8x8xf32>
    %55 = vector.extract_strided_slice %20 {offsets = [0, 16], sizes = [8, 8], strides = [1, 1]} : vector<8x64xf32> to vector<8x8xf32>
    %cst_29 = arith.constant dense<0.000000e+00> : vector<8x8xf32>
    %56 = tpu.matmul %53, %54, %cst_29 {dimension_numbers = #tpu.dot_dimension_numbers<[1], [1], [0], [0], [0, 0, 1, 0], [], []>} : vector<8x8xf32>, vector<8x8xf32>, vector<8x8xf32> -> vector<8x8xf32>
    %cst_30 = arith.constant dense<0xFF800000> : vector<8xf32>
    %57 = vector.multi_reduction <maximumf>, %56, %cst_30 [1] : vector<8x8xf32> to vector<8xf32>
    %58 = vector.shape_cast %57 : vector<8xf32> to vector<8x1xf32>
    %59 = vector.broadcast %58 : vector<8x1xf32> to vector<8x8xf32>
    %60 = arith.subf %56, %59 : vector<8x8xf32>
    %61 = math.exp %60 : vector<8x8xf32>
    %cst_31 = arith.constant dense<0.000000e+00> : vector<8xf32>
    %62 = vector.multi_reduction <add>, %61, %cst_31 [1] : vector<8x8xf32> to vector<8xf32>
    %63 = vector.shape_cast %62 : vector<8xf32> to vector<8x1xf32>
    %cst_32 = arith.constant 1.000000e+00 : f32
    %64 = vector.broadcast %cst_32 : f32 to vector<8x1xf32>
    %65 = arith.divf %64, %63 : vector<8x1xf32>
    %cst_33 = arith.constant dense<0.000000e+00> : vector<8x8xf32>
    %66 = tpu.matmul %61, %55, %cst_33 {dimension_numbers = #tpu.dot_dimension_numbers<[1], [0], [0], [1], [0, 0, 1, 1], [], []>} : vector<8x8xf32>, vector<8x8xf32>, vector<8x8xf32> -> vector<8x8xf32>
    %67 = vector.broadcast %65 : vector<8x1xf32> to vector<8x8xf32>
    %68 = arith.mulf %66, %67 : vector<8x8xf32>
    %69 = vector.extract_strided_slice %18 {offsets = [0, 24], sizes = [8, 8], strides = [1, 1]} : vector<8x64xf32> to vector<8x8xf32>
    %70 = vector.extract_strided_slice %19 {offsets = [0, 24], sizes = [8, 8], strides = [1, 1]} : vector<8x64xf32> to vector<8x8xf32>
    %71 = vector.extract_strided_slice %20 {offsets = [0, 24], sizes = [8, 8], strides = [1, 1]} : vector<8x64xf32> to vector<8x8xf32>
    %cst_34 = arith.constant dense<0.000000e+00> : vector<8x8xf32>
    %72 = tpu.matmul %69, %70, %cst_34 {dimension_numbers = #tpu.dot_dimension_numbers<[1], [1], [0], [0], [0, 0, 1, 0], [], []>} : vector<8x8xf32>, vector<8x8xf32>, vector<8x8xf32> -> vector<8x8xf32>
    %cst_35 = arith.constant dense<0xFF800000> : vector<8xf32>
    %73 = vector.multi_reduction <maximumf>, %72, %cst_35 [1] : vector<8x8xf32> to vector<8xf32>
    %74 = vector.shape_cast %73 : vector<8xf32> to vector<8x1xf32>
    %75 = vector.broadcast %74 : vector<8x1xf32> to vector<8x8xf32>
    %76 = arith.subf %72, %75 : vector<8x8xf32>
    %77 = math.exp %76 : vector<8x8xf32>
    %cst_36 = arith.constant dense<0.000000e+00> : vector<8xf32>
    %78 = vector.multi_reduction <add>, %77, %cst_36 [1] : vector<8x8xf32> to vector<8xf32>
    %79 = vector.shape_cast %78 : vector<8xf32> to vector<8x1xf32>
    %cst_37 = arith.constant 1.000000e+00 : f32
    %80 = vector.broadcast %cst_37 : f32 to vector<8x1xf32>
    %81 = arith.divf %80, %79 : vector<8x1xf32>
    %cst_38 = arith.constant dense<0.000000e+00> : vector<8x8xf32>
    %82 = tpu.matmul %77, %71, %cst_38 {dimension_numbers = #tpu.dot_dimension_numbers<[1], [0], [0], [1], [0, 0, 1, 1], [], []>} : vector<8x8xf32>, vector<8x8xf32>, vector<8x8xf32> -> vector<8x8xf32>
    %83 = vector.broadcast %81 : vector<8x1xf32> to vector<8x8xf32>
    %84 = arith.mulf %82, %83 : vector<8x8xf32>
    %85 = vector.extract_strided_slice %18 {offsets = [0, 32], sizes = [8, 8], strides = [1, 1]} : vector<8x64xf32> to vector<8x8xf32>
    %86 = vector.extract_strided_slice %19 {offsets = [0, 32], sizes = [8, 8], strides = [1, 1]} : vector<8x64xf32> to vector<8x8xf32>
    %87 = vector.extract_strided_slice %20 {offsets = [0, 32], sizes = [8, 8], strides = [1, 1]} : vector<8x64xf32> to vector<8x8xf32>
    %cst_39 = arith.constant dense<0.000000e+00> : vector<8x8xf32>
    %88 = tpu.matmul %85, %86, %cst_39 {dimension_numbers = #tpu.dot_dimension_numbers<[1], [1], [0], [0], [0, 0, 1, 0], [], []>} : vector<8x8xf32>, vector<8x8xf32>, vector<8x8xf32> -> vector<8x8xf32>
    %cst_40 = arith.constant dense<0xFF800000> : vector<8xf32>
    %89 = vector.multi_reduction <maximumf>, %88, %cst_40 [1] : vector<8x8xf32> to vector<8xf32>
    %90 = vector.shape_cast %89 : vector<8xf32> to vector<8x1xf32>
    %91 = vector.broadcast %90 : vector<8x1xf32> to vector<8x8xf32>
    %92 = arith.subf %88, %91 : vector<8x8xf32>
    %93 = math.exp %92 : vector<8x8xf32>
    %cst_41 = arith.constant dense<0.000000e+00> : vector<8xf32>
    %94 = vector.multi_reduction <add>, %93, %cst_41 [1] : vector<8x8xf32> to vector<8xf32>
    %95 = vector.shape_cast %94 : vector<8xf32> to vector<8x1xf32>
    %cst_42 = arith.constant 1.000000e+00 : f32
    %96 = vector.broadcast %cst_42 : f32 to vector<8x1xf32>
    %97 = arith.divf %96, %95 : vector<8x1xf32>
    %cst_43 = arith.constant dense<0.000000e+00> : vector<8x8xf32>
    %98 = tpu.matmul %93, %87, %cst_43 {dimension_numbers = #tpu.dot_dimension_numbers<[1], [0], [0], [1], [0, 0, 1, 1], [], []>} : vector<8x8xf32>, vector<8x8xf32>, vector<8x8xf32> -> vector<8x8xf32>
    %99 = vector.broadcast %97 : vector<8x1xf32> to vector<8x8xf32>
    %100 = arith.mulf %98, %99 : vector<8x8xf32>
    %101 = vector.extract_strided_slice %18 {offsets = [0, 40], sizes = [8, 8], strides = [1, 1]} : vector<8x64xf32> to vector<8x8xf32>
    %102 = vector.extract_strided_slice %19 {offsets = [0, 40], sizes = [8, 8], strides = [1, 1]} : vector<8x64xf32> to vector<8x8xf32>
    %103 = vector.extract_strided_slice %20 {offsets = [0, 40], sizes = [8, 8], strides = [1, 1]} : vector<8x64xf32> to vector<8x8xf32>
    %cst_44 = arith.constant dense<0.000000e+00> : vector<8x8xf32>
    %104 = tpu.matmul %101, %102, %cst_44 {dimension_numbers = #tpu.dot_dimension_numbers<[1], [1], [0], [0], [0, 0, 1, 0], [], []>} : vector<8x8xf32>, vector<8x8xf32>, vector<8x8xf32> -> vector<8x8xf32>
    %cst_45 = arith.constant dense<0xFF800000> : vector<8xf32>
    %105 = vector.multi_reduction <maximumf>, %104, %cst_45 [1] : vector<8x8xf32> to vector<8xf32>
    %106 = vector.shape_cast %105 : vector<8xf32> to vector<8x1xf32>
    %107 = vector.broadcast %106 : vector<8x1xf32> to vector<8x8xf32>
    %108 = arith.subf %104, %107 : vector<8x8xf32>
    %109 = math.exp %108 : vector<8x8xf32>
    %cst_46 = arith.constant dense<0.000000e+00> : vector<8xf32>
    %110 = vector.multi_reduction <add>, %109, %cst_46 [1] : vector<8x8xf32> to vector<8xf32>
    %111 = vector.shape_cast %110 : vector<8xf32> to vector<8x1xf32>
    %cst_47 = arith.constant 1.000000e+00 : f32
    %112 = vector.broadcast %cst_47 : f32 to vector<8x1xf32>
    %113 = arith.divf %112, %111 : vector<8x1xf32>
    %cst_48 = arith.constant dense<0.000000e+00> : vector<8x8xf32>
    %114 = tpu.matmul %109, %103, %cst_48 {dimension_numbers = #tpu.dot_dimension_numbers<[1], [0], [0], [1], [0, 0, 1, 1], [], []>} : vector<8x8xf32>, vector<8x8xf32>, vector<8x8xf32> -> vector<8x8xf32>
    %115 = vector.broadcast %113 : vector<8x1xf32> to vector<8x8xf32>
    %116 = arith.mulf %114, %115 : vector<8x8xf32>
    %117 = vector.extract_strided_slice %18 {offsets = [0, 48], sizes = [8, 8], strides = [1, 1]} : vector<8x64xf32> to vector<8x8xf32>
    %118 = vector.extract_strided_slice %19 {offsets = [0, 48], sizes = [8, 8], strides = [1, 1]} : vector<8x64xf32> to vector<8x8xf32>
    %119 = vector.extract_strided_slice %20 {offsets = [0, 48], sizes = [8, 8], strides = [1, 1]} : vector<8x64xf32> to vector<8x8xf32>
    %cst_49 = arith.constant dense<0.000000e+00> : vector<8x8xf32>
    %120 = tpu.matmul %117, %118, %cst_49 {dimension_numbers = #tpu.dot_dimension_numbers<[1], [1], [0], [0], [0, 0, 1, 0], [], []>} : vector<8x8xf32>, vector<8x8xf32>, vector<8x8xf32> -> vector<8x8xf32>
    %cst_50 = arith.constant dense<0xFF800000> : vector<8xf32>
    %121 = vector.multi_reduction <maximumf>, %120, %cst_50 [1] : vector<8x8xf32> to vector<8xf32>
    %122 = vector.shape_cast %121 : vector<8xf32> to vector<8x1xf32>
    %123 = vector.broadcast %122 : vector<8x1xf32> to vector<8x8xf32>
    %124 = arith.subf %120, %123 : vector<8x8xf32>
    %125 = math.exp %124 : vector<8x8xf32>
    %cst_51 = arith.constant dense<0.000000e+00> : vector<8xf32>
    %126 = vector.multi_reduction <add>, %125, %cst_51 [1] : vector<8x8xf32> to vector<8xf32>
    %127 = vector.shape_cast %126 : vector<8xf32> to vector<8x1xf32>
    %cst_52 = arith.constant 1.000000e+00 : f32
    %128 = vector.broadcast %cst_52 : f32 to vector<8x1xf32>
    %129 = arith.divf %128, %127 : vector<8x1xf32>
    %cst_53 = arith.constant dense<0.000000e+00> : vector<8x8xf32>
    %130 = tpu.matmul %125, %119, %cst_53 {dimension_numbers = #tpu.dot_dimension_numbers<[1], [0], [0], [1], [0, 0, 1, 1], [], []>} : vector<8x8xf32>, vector<8x8xf32>, vector<8x8xf32> -> vector<8x8xf32>
    %131 = vector.broadcast %129 : vector<8x1xf32> to vector<8x8xf32>
    %132 = arith.mulf %130, %131 : vector<8x8xf32>
    %133 = vector.extract_strided_slice %18 {offsets = [0, 56], sizes = [8, 8], strides = [1, 1]} : vector<8x64xf32> to vector<8x8xf32>
    %134 = vector.extract_strided_slice %19 {offsets = [0, 56], sizes = [8, 8], strides = [1, 1]} : vector<8x64xf32> to vector<8x8xf32>
    %135 = vector.extract_strided_slice %20 {offsets = [0, 56], sizes = [8, 8], strides = [1, 1]} : vector<8x64xf32> to vector<8x8xf32>
    %cst_54 = arith.constant dense<0.000000e+00> : vector<8x8xf32>
    %136 = tpu.matmul %133, %134, %cst_54 {dimension_numbers = #tpu.dot_dimension_numbers<[1], [1], [0], [0], [0, 0, 1, 0], [], []>} : vector<8x8xf32>, vector<8x8xf32>, vector<8x8xf32> -> vector<8x8xf32>
    %cst_55 = arith.constant dense<0xFF800000> : vector<8xf32>
    %137 = vector.multi_reduction <maximumf>, %136, %cst_55 [1] : vector<8x8xf32> to vector<8xf32>
    %138 = vector.shape_cast %137 : vector<8xf32> to vector<8x1xf32>
    %139 = vector.broadcast %138 : vector<8x1xf32> to vector<8x8xf32>
    %140 = arith.subf %136, %139 : vector<8x8xf32>
    %141 = math.exp %140 : vector<8x8xf32>
    %cst_56 = arith.constant dense<0.000000e+00> : vector<8xf32>
    %142 = vector.multi_reduction <add>, %141, %cst_56 [1] : vector<8x8xf32> to vector<8xf32>
    %143 = vector.shape_cast %142 : vector<8xf32> to vector<8x1xf32>
    %cst_57 = arith.constant 1.000000e+00 : f32
    %144 = vector.broadcast %cst_57 : f32 to vector<8x1xf32>
    %145 = arith.divf %144, %143 : vector<8x1xf32>
    %cst_58 = arith.constant dense<0.000000e+00> : vector<8x8xf32>
    %146 = tpu.matmul %141, %135, %cst_58 {dimension_numbers = #tpu.dot_dimension_numbers<[1], [0], [0], [1], [0, 0, 1, 1], [], []>} : vector<8x8xf32>, vector<8x8xf32>, vector<8x8xf32> -> vector<8x8xf32>
    %147 = vector.broadcast %145 : vector<8x1xf32> to vector<8x8xf32>
    %148 = arith.mulf %146, %147 : vector<8x8xf32>
    %149 = tpu.concatenate %36, %52, %68, %84, %100, %116, %132, %148 in 1 : vector<8x8xf32>, vector<8x8xf32>, vector<8x8xf32>, vector<8x8xf32>, vector<8x8xf32>, vector<8x8xf32>, vector<8x8xf32>, vector<8x8xf32> -> vector<8x64xf32>
    %150 = vector.extract_strided_slice %5 {offsets = [8, 0], sizes = [8, 64], strides = [1, 1]} : vector<16x64xf32> to vector<8x64xf32>
    %151 = vector.extract_strided_slice %11 {offsets = [8, 0], sizes = [8, 64], strides = [1, 1]} : vector<16x64xf32> to vector<8x64xf32>
    %152 = vector.extract_strided_slice %17 {offsets = [8, 0], sizes = [8, 64], strides = [1, 1]} : vector<16x64xf32> to vector<8x64xf32>
    %153 = vector.extract_strided_slice %150 {offsets = [0, 0], sizes = [8, 8], strides = [1, 1]} : vector<8x64xf32> to vector<8x8xf32>
    %154 = vector.extract_strided_slice %151 {offsets = [0, 0], sizes = [8, 8], strides = [1, 1]} : vector<8x64xf32> to vector<8x8xf32>
    %155 = vector.extract_strided_slice %152 {offsets = [0, 0], sizes = [8, 8], strides = [1, 1]} : vector<8x64xf32> to vector<8x8xf32>
    %cst_59 = arith.constant dense<0.000000e+00> : vector<8x8xf32>
    %156 = tpu.matmul %153, %154, %cst_59 {dimension_numbers = #tpu.dot_dimension_numbers<[1], [1], [0], [0], [0, 0, 1, 0], [], []>} : vector<8x8xf32>, vector<8x8xf32>, vector<8x8xf32> -> vector<8x8xf32>
    %cst_60 = arith.constant dense<0xFF800000> : vector<8xf32>
    %157 = vector.multi_reduction <maximumf>, %156, %cst_60 [1] : vector<8x8xf32> to vector<8xf32>
    %158 = vector.shape_cast %157 : vector<8xf32> to vector<8x1xf32>
    %159 = vector.broadcast %158 : vector<8x1xf32> to vector<8x8xf32>
    %160 = arith.subf %156, %159 : vector<8x8xf32>
    %161 = math.exp %160 : vector<8x8xf32>
    %cst_61 = arith.constant dense<0.000000e+00> : vector<8xf32>
    %162 = vector.multi_reduction <add>, %161, %cst_61 [1] : vector<8x8xf32> to vector<8xf32>
    %163 = vector.shape_cast %162 : vector<8xf32> to vector<8x1xf32>
    %cst_62 = arith.constant 1.000000e+00 : f32
    %164 = vector.broadcast %cst_62 : f32 to vector<8x1xf32>
    %165 = arith.divf %164, %163 : vector<8x1xf32>
    %cst_63 = arith.constant dense<0.000000e+00> : vector<8x8xf32>
    %166 = tpu.matmul %161, %155, %cst_63 {dimension_numbers = #tpu.dot_dimension_numbers<[1], [0], [0], [1], [0, 0, 1, 1], [], []>} : vector<8x8xf32>, vector<8x8xf32>, vector<8x8xf32> -> vector<8x8xf32>
    %167 = vector.broadcast %165 : vector<8x1xf32> to vector<8x8xf32>
    %168 = arith.mulf %166, %167 : vector<8x8xf32>
    %169 = vector.extract_strided_slice %150 {offsets = [0, 8], sizes = [8, 8], strides = [1, 1]} : vector<8x64xf32> to vector<8x8xf32>
    %170 = vector.extract_strided_slice %151 {offsets = [0, 8], sizes = [8, 8], strides = [1, 1]} : vector<8x64xf32> to vector<8x8xf32>
    %171 = vector.extract_strided_slice %152 {offsets = [0, 8], sizes = [8, 8], strides = [1, 1]} : vector<8x64xf32> to vector<8x8xf32>
    %cst_64 = arith.constant dense<0.000000e+00> : vector<8x8xf32>
    %172 = tpu.matmul %169, %170, %cst_64 {dimension_numbers = #tpu.dot_dimension_numbers<[1], [1], [0], [0], [0, 0, 1, 0], [], []>} : vector<8x8xf32>, vector<8x8xf32>, vector<8x8xf32> -> vector<8x8xf32>
    %cst_65 = arith.constant dense<0xFF800000> : vector<8xf32>
    %173 = vector.multi_reduction <maximumf>, %172, %cst_65 [1] : vector<8x8xf32> to vector<8xf32>
    %174 = vector.shape_cast %173 : vector<8xf32> to vector<8x1xf32>
    %175 = vector.broadcast %174 : vector<8x1xf32> to vector<8x8xf32>
    %176 = arith.subf %172, %175 : vector<8x8xf32>
    %177 = math.exp %176 : vector<8x8xf32>
    %cst_66 = arith.constant dense<0.000000e+00> : vector<8xf32>
    %178 = vector.multi_reduction <add>, %177, %cst_66 [1] : vector<8x8xf32> to vector<8xf32>
    %179 = vector.shape_cast %178 : vector<8xf32> to vector<8x1xf32>
    %cst_67 = arith.constant 1.000000e+00 : f32
    %180 = vector.broadcast %cst_67 : f32 to vector<8x1xf32>
    %181 = arith.divf %180, %179 : vector<8x1xf32>
    %cst_68 = arith.constant dense<0.000000e+00> : vector<8x8xf32>
    %182 = tpu.matmul %177, %171, %cst_68 {dimension_numbers = #tpu.dot_dimension_numbers<[1], [0], [0], [1], [0, 0, 1, 1], [], []>} : vector<8x8xf32>, vector<8x8xf32>, vector<8x8xf32> -> vector<8x8xf32>
    %183 = vector.broadcast %181 : vector<8x1xf32> to vector<8x8xf32>
    %184 = arith.mulf %182, %183 : vector<8x8xf32>
    %185 = vector.extract_strided_slice %150 {offsets = [0, 16], sizes = [8, 8], strides = [1, 1]} : vector<8x64xf32> to vector<8x8xf32>
    %186 = vector.extract_strided_slice %151 {offsets = [0, 16], sizes = [8, 8], strides = [1, 1]} : vector<8x64xf32> to vector<8x8xf32>
    %187 = vector.extract_strided_slice %152 {offsets = [0, 16], sizes = [8, 8], strides = [1, 1]} : vector<8x64xf32> to vector<8x8xf32>
    %cst_69 = arith.constant dense<0.000000e+00> : vector<8x8xf32>
    %188 = tpu.matmul %185, %186, %cst_69 {dimension_numbers = #tpu.dot_dimension_numbers<[1], [1], [0], [0], [0, 0, 1, 0], [], []>} : vector<8x8xf32>, vector<8x8xf32>, vector<8x8xf32> -> vector<8x8xf32>
    %cst_70 = arith.constant dense<0xFF800000> : vector<8xf32>
    %189 = vector.multi_reduction <maximumf>, %188, %cst_70 [1] : vector<8x8xf32> to vector<8xf32>
    %190 = vector.shape_cast %189 : vector<8xf32> to vector<8x1xf32>
    %191 = vector.broadcast %190 : vector<8x1xf32> to vector<8x8xf32>
    %192 = arith.subf %188, %191 : vector<8x8xf32>
    %193 = math.exp %192 : vector<8x8xf32>
    %cst_71 = arith.constant dense<0.000000e+00> : vector<8xf32>
    %194 = vector.multi_reduction <add>, %193, %cst_71 [1] : vector<8x8xf32> to vector<8xf32>
    %195 = vector.shape_cast %194 : vector<8xf32> to vector<8x1xf32>
    %cst_72 = arith.constant 1.000000e+00 : f32
    %196 = vector.broadcast %cst_72 : f32 to vector<8x1xf32>
    %197 = arith.divf %196, %195 : vector<8x1xf32>
    %cst_73 = arith.constant dense<0.000000e+00> : vector<8x8xf32>
    %198 = tpu.matmul %193, %187, %cst_73 {dimension_numbers = #tpu.dot_dimension_numbers<[1], [0], [0], [1], [0, 0, 1, 1], [], []>} : vector<8x8xf32>, vector<8x8xf32>, vector<8x8xf32> -> vector<8x8xf32>
    %199 = vector.broadcast %197 : vector<8x1xf32> to vector<8x8xf32>
    %200 = arith.mulf %198, %199 : vector<8x8xf32>
    %201 = vector.extract_strided_slice %150 {offsets = [0, 24], sizes = [8, 8], strides = [1, 1]} : vector<8x64xf32> to vector<8x8xf32>
    %202 = vector.extract_strided_slice %151 {offsets = [0, 24], sizes = [8, 8], strides = [1, 1]} : vector<8x64xf32> to vector<8x8xf32>
    %203 = vector.extract_strided_slice %152 {offsets = [0, 24], sizes = [8, 8], strides = [1, 1]} : vector<8x64xf32> to vector<8x8xf32>
    %cst_74 = arith.constant dense<0.000000e+00> : vector<8x8xf32>
    %204 = tpu.matmul %201, %202, %cst_74 {dimension_numbers = #tpu.dot_dimension_numbers<[1], [1], [0], [0], [0, 0, 1, 0], [], []>} : vector<8x8xf32>, vector<8x8xf32>, vector<8x8xf32> -> vector<8x8xf32>
    %cst_75 = arith.constant dense<0xFF800000> : vector<8xf32>
    %205 = vector.multi_reduction <maximumf>, %204, %cst_75 [1] : vector<8x8xf32> to vector<8xf32>
    %206 = vector.shape_cast %205 : vector<8xf32> to vector<8x1xf32>
    %207 = vector.broadcast %206 : vector<8x1xf32> to vector<8x8xf32>
    %208 = arith.subf %204, %207 : vector<8x8xf32>
    %209 = math.exp %208 : vector<8x8xf32>
    %cst_76 = arith.constant dense<0.000000e+00> : vector<8xf32>
    %210 = vector.multi_reduction <add>, %209, %cst_76 [1] : vector<8x8xf32> to vector<8xf32>
    %211 = vector.shape_cast %210 : vector<8xf32> to vector<8x1xf32>
    %cst_77 = arith.constant 1.000000e+00 : f32
    %212 = vector.broadcast %cst_77 : f32 to vector<8x1xf32>
    %213 = arith.divf %212, %211 : vector<8x1xf32>
    %cst_78 = arith.constant dense<0.000000e+00> : vector<8x8xf32>
    %214 = tpu.matmul %209, %203, %cst_78 {dimension_numbers = #tpu.dot_dimension_numbers<[1], [0], [0], [1], [0, 0, 1, 1], [], []>} : vector<8x8xf32>, vector<8x8xf32>, vector<8x8xf32> -> vector<8x8xf32>
    %215 = vector.broadcast %213 : vector<8x1xf32> to vector<8x8xf32>
    %216 = arith.mulf %214, %215 : vector<8x8xf32>
    %217 = vector.extract_strided_slice %150 {offsets = [0, 32], sizes = [8, 8], strides = [1, 1]} : vector<8x64xf32> to vector<8x8xf32>
    %218 = vector.extract_strided_slice %151 {offsets = [0, 32], sizes = [8, 8], strides = [1, 1]} : vector<8x64xf32> to vector<8x8xf32>
    %219 = vector.extract_strided_slice %152 {offsets = [0, 32], sizes = [8, 8], strides = [1, 1]} : vector<8x64xf32> to vector<8x8xf32>
    %cst_79 = arith.constant dense<0.000000e+00> : vector<8x8xf32>
    %220 = tpu.matmul %217, %218, %cst_79 {dimension_numbers = #tpu.dot_dimension_numbers<[1], [1], [0], [0], [0, 0, 1, 0], [], []>} : vector<8x8xf32>, vector<8x8xf32>, vector<8x8xf32> -> vector<8x8xf32>
    %cst_80 = arith.constant dense<0xFF800000> : vector<8xf32>
    %221 = vector.multi_reduction <maximumf>, %220, %cst_80 [1] : vector<8x8xf32> to vector<8xf32>
    %222 = vector.shape_cast %221 : vector<8xf32> to vector<8x1xf32>
    %223 = vector.broadcast %222 : vector<8x1xf32> to vector<8x8xf32>
    %224 = arith.subf %220, %223 : vector<8x8xf32>
    %225 = math.exp %224 : vector<8x8xf32>
    %cst_81 = arith.constant dense<0.000000e+00> : vector<8xf32>
    %226 = vector.multi_reduction <add>, %225, %cst_81 [1] : vector<8x8xf32> to vector<8xf32>
    %227 = vector.shape_cast %226 : vector<8xf32> to vector<8x1xf32>
    %cst_82 = arith.constant 1.000000e+00 : f32
    %228 = vector.broadcast %cst_82 : f32 to vector<8x1xf32>
    %229 = arith.divf %228, %227 : vector<8x1xf32>
    %cst_83 = arith.constant dense<0.000000e+00> : vector<8x8xf32>
    %230 = tpu.matmul %225, %219, %cst_83 {dimension_numbers = #tpu.dot_dimension_numbers<[1], [0], [0], [1], [0, 0, 1, 1], [], []>} : vector<8x8xf32>, vector<8x8xf32>, vector<8x8xf32> -> vector<8x8xf32>
    %231 = vector.broadcast %229 : vector<8x1xf32> to vector<8x8xf32>
    %232 = arith.mulf %230, %231 : vector<8x8xf32>
    %233 = vector.extract_strided_slice %150 {offsets = [0, 40], sizes = [8, 8], strides = [1, 1]} : vector<8x64xf32> to vector<8x8xf32>
    %234 = vector.extract_strided_slice %151 {offsets = [0, 40], sizes = [8, 8], strides = [1, 1]} : vector<8x64xf32> to vector<8x8xf32>
    %235 = vector.extract_strided_slice %152 {offsets = [0, 40], sizes = [8, 8], strides = [1, 1]} : vector<8x64xf32> to vector<8x8xf32>
    %cst_84 = arith.constant dense<0.000000e+00> : vector<8x8xf32>
    %236 = tpu.matmul %233, %234, %cst_84 {dimension_numbers = #tpu.dot_dimension_numbers<[1], [1], [0], [0], [0, 0, 1, 0], [], []>} : vector<8x8xf32>, vector<8x8xf32>, vector<8x8xf32> -> vector<8x8xf32>
    %cst_85 = arith.constant dense<0xFF800000> : vector<8xf32>
    %237 = vector.multi_reduction <maximumf>, %236, %cst_85 [1] : vector<8x8xf32> to vector<8xf32>
    %238 = vector.shape_cast %237 : vector<8xf32> to vector<8x1xf32>
    %239 = vector.broadcast %238 : vector<8x1xf32> to vector<8x8xf32>
    %240 = arith.subf %236, %239 : vector<8x8xf32>
    %241 = math.exp %240 : vector<8x8xf32>
    %cst_86 = arith.constant dense<0.000000e+00> : vector<8xf32>
    %242 = vector.multi_reduction <add>, %241, %cst_86 [1] : vector<8x8xf32> to vector<8xf32>
    %243 = vector.shape_cast %242 : vector<8xf32> to vector<8x1xf32>
    %cst_87 = arith.constant 1.000000e+00 : f32
    %244 = vector.broadcast %cst_87 : f32 to vector<8x1xf32>
    %245 = arith.divf %244, %243 : vector<8x1xf32>
    %cst_88 = arith.constant dense<0.000000e+00> : vector<8x8xf32>
    %246 = tpu.matmul %241, %235, %cst_88 {dimension_numbers = #tpu.dot_dimension_numbers<[1], [0], [0], [1], [0, 0, 1, 1], [], []>} : vector<8x8xf32>, vector<8x8xf32>, vector<8x8xf32> -> vector<8x8xf32>
    %247 = vector.broadcast %245 : vector<8x1xf32> to vector<8x8xf32>
    %248 = arith.mulf %246, %247 : vector<8x8xf32>
    %249 = vector.extract_strided_slice %150 {offsets = [0, 48], sizes = [8, 8], strides = [1, 1]} : vector<8x64xf32> to vector<8x8xf32>
    %250 = vector.extract_strided_slice %151 {offsets = [0, 48], sizes = [8, 8], strides = [1, 1]} : vector<8x64xf32> to vector<8x8xf32>
    %251 = vector.extract_strided_slice %152 {offsets = [0, 48], sizes = [8, 8], strides = [1, 1]} : vector<8x64xf32> to vector<8x8xf32>
    %cst_89 = arith.constant dense<0.000000e+00> : vector<8x8xf32>
    %252 = tpu.matmul %249, %250, %cst_89 {dimension_numbers = #tpu.dot_dimension_numbers<[1], [1], [0], [0], [0, 0, 1, 0], [], []>} : vector<8x8xf32>, vector<8x8xf32>, vector<8x8xf32> -> vector<8x8xf32>
    %cst_90 = arith.constant dense<0xFF800000> : vector<8xf32>
    %253 = vector.multi_reduction <maximumf>, %252, %cst_90 [1] : vector<8x8xf32> to vector<8xf32>
    %254 = vector.shape_cast %253 : vector<8xf32> to vector<8x1xf32>
    %255 = vector.broadcast %254 : vector<8x1xf32> to vector<8x8xf32>
    %256 = arith.subf %252, %255 : vector<8x8xf32>
    %257 = math.exp %256 : vector<8x8xf32>
    %cst_91 = arith.constant dense<0.000000e+00> : vector<8xf32>
    %258 = vector.multi_reduction <add>, %257, %cst_91 [1] : vector<8x8xf32> to vector<8xf32>
    %259 = vector.shape_cast %258 : vector<8xf32> to vector<8x1xf32>
    %cst_92 = arith.constant 1.000000e+00 : f32
    %260 = vector.broadcast %cst_92 : f32 to vector<8x1xf32>
    %261 = arith.divf %260, %259 : vector<8x1xf32>
    %cst_93 = arith.constant dense<0.000000e+00> : vector<8x8xf32>
    %262 = tpu.matmul %257, %251, %cst_93 {dimension_numbers = #tpu.dot_dimension_numbers<[1], [0], [0], [1], [0, 0, 1, 1], [], []>} : vector<8x8xf32>, vector<8x8xf32>, vector<8x8xf32> -> vector<8x8xf32>
    %263 = vector.broadcast %261 : vector<8x1xf32> to vector<8x8xf32>
    %264 = arith.mulf %262, %263 : vector<8x8xf32>
    %265 = vector.extract_strided_slice %150 {offsets = [0, 56], sizes = [8, 8], strides = [1, 1]} : vector<8x64xf32> to vector<8x8xf32>
    %266 = vector.extract_strided_slice %151 {offsets = [0, 56], sizes = [8, 8], strides = [1, 1]} : vector<8x64xf32> to vector<8x8xf32>
    %267 = vector.extract_strided_slice %152 {offsets = [0, 56], sizes = [8, 8], strides = [1, 1]} : vector<8x64xf32> to vector<8x8xf32>
    %cst_94 = arith.constant dense<0.000000e+00> : vector<8x8xf32>
    %268 = tpu.matmul %265, %266, %cst_94 {dimension_numbers = #tpu.dot_dimension_numbers<[1], [1], [0], [0], [0, 0, 1, 0], [], []>} : vector<8x8xf32>, vector<8x8xf32>, vector<8x8xf32> -> vector<8x8xf32>
    %cst_95 = arith.constant dense<0xFF800000> : vector<8xf32>
    %269 = vector.multi_reduction <maximumf>, %268, %cst_95 [1] : vector<8x8xf32> to vector<8xf32>
    %270 = vector.shape_cast %269 : vector<8xf32> to vector<8x1xf32>
    %271 = vector.broadcast %270 : vector<8x1xf32> to vector<8x8xf32>
    %272 = arith.subf %268, %271 : vector<8x8xf32>
    %273 = math.exp %272 : vector<8x8xf32>
    %cst_96 = arith.constant dense<0.000000e+00> : vector<8xf32>
    %274 = vector.multi_reduction <add>, %273, %cst_96 [1] : vector<8x8xf32> to vector<8xf32>
    %275 = vector.shape_cast %274 : vector<8xf32> to vector<8x1xf32>
    %cst_97 = arith.constant 1.000000e+00 : f32
    %276 = vector.broadcast %cst_97 : f32 to vector<8x1xf32>
    %277 = arith.divf %276, %275 : vector<8x1xf32>
    %cst_98 = arith.constant dense<0.000000e+00> : vector<8x8xf32>
    %278 = tpu.matmul %273, %267, %cst_98 {dimension_numbers = #tpu.dot_dimension_numbers<[1], [0], [0], [1], [0, 0, 1, 1], [], []>} : vector<8x8xf32>, vector<8x8xf32>, vector<8x8xf32> -> vector<8x8xf32>
    %279 = vector.broadcast %277 : vector<8x1xf32> to vector<8x8xf32>
    %280 = arith.mulf %278, %279 : vector<8x8xf32>
    %281 = tpu.concatenate %168, %184, %200, %216, %232, %248, %264, %280 in 1 : vector<8x8xf32>, vector<8x8xf32>, vector<8x8xf32>, vector<8x8xf32>, vector<8x8xf32>, vector<8x8xf32>, vector<8x8xf32>, vector<8x8xf32> -> vector<8x64xf32>
    %282 = tpu.concatenate %149, %281 in 0 : vector<8x64xf32>, vector<8x64xf32> -> vector<16x64xf32>
    %c0_99 = arith.constant 0 : index
    %c0_100 = arith.constant 0 : index
    %283 = vector.load %arg10[%c0_99, %c0_100] : memref<64x64xf32, #tpu.memory_space<vmem>>, vector<64x64xf32>
    %cst_101 = arith.constant dense<0.000000e+00> : vector<16x64xf32>
    %284 = tpu.matmul %282, %283, %cst_101 {dimension_numbers = #tpu.dot_dimension_numbers<[1], [0], [0], [1], [0, 0, 1, 1], [], []>} : vector<16x64xf32>, vector<64x64xf32>, vector<16x64xf32> -> vector<16x64xf32>
    %c0_102 = arith.constant 0 : index
    %c0_103 = arith.constant 0 : index
    %285 = vector.load %arg11[%c0_102, %c0_103] : memref<1x64xf32, #tpu.memory_space<vmem>>, vector<1x64xf32>
    %286 = vector.broadcast %285 : vector<1x64xf32> to vector<16x64xf32>
    %287 = arith.addf %284, %286 : vector<16x64xf32>
    %c0_104 = arith.constant 0 : index
    %c0_105 = arith.constant 0 : index
    %288 = vector.load %arg12[%c0_104, %c0_105] : memref<16x64xf32, #tpu.memory_space<vmem>>, vector<16x64xf32>
    tpu.vector_store %arg12[%c0_104, %c0_105], %287 {strides = array<i32>} : memref<16x64xf32, #tpu.memory_space<vmem>>, vector<16x64xf32>,
    return
  }
  func.func @transform_0(%arg0: i32) -> (i32, i32) {
    %c0_i32 = arith.constant 0 : i32
    %c0_i32_0 = arith.constant 0 : i32
    return %arg0, %c0_i32 : i32, i32
  }
  func.func @transform_1(%arg0: i32) -> (i32, i32) {
    %c0_i32 = arith.constant 0 : i32
    %c0_i32_0 = arith.constant 0 : i32
    return %arg0, %c0_i32 : i32, i32
  }
  func.func @transform_2(%arg0: i32) -> (i32, i32) {
    %c0_i32 = arith.constant 0 : i32
    %c0_i32_0 = arith.constant 0 : i32
    return %arg0, %c0_i32 : i32, i32
  }
  func.func @transform_3(%arg0: i32) -> (i32, i32) {
    %c0_i32 = arith.constant 0 : i32
    %c0_i32_0 = arith.constant 0 : i32
    %c0_i32_1 = arith.constant 0 : i32
    return %c0_i32, %c0_i32_0 : i32, i32
  }
  func.func @transform_4(%arg0: i32) -> (i32, i32) {
    %c0_i32 = arith.constant 0 : i32
    %c0_i32_0 = arith.constant 0 : i32
    %c0_i32_1 = arith.constant 0 : i32
    return %c0_i32, %c0_i32_0 : i32, i32
  }
  func.func @transform_5(%arg0: i32) -> (i32, i32) {
    %c0_i32 = arith.constant 0 : i32
    %c0_i32_0 = arith.constant 0 : i32
    %c0_i32_1 = arith.constant 0 : i32
    return %c0_i32, %c0_i32_0 : i32, i32
  }
  func.func @transform_6(%arg0: i32) -> (i32, i32) {
    %c0_i32 = arith.constant 0 : i32
    %c0_i32_0 = arith.constant 0 : i32
    %c0_i32_1 = arith.constant 0 : i32
    return %c0_i32, %c0_i32_0 : i32, i32
  }
  func.func @transform_7(%arg0: i32) -> (i32, i32) {
    %c0_i32 = arith.constant 0 : i32
    %c0_i32_0 = arith.constant 0 : i32
    %c0_i32_1 = arith.constant 0 : i32
    return %c0_i32, %c0_i32_0 : i32, i32
  }
  func.func @transform_8(%arg0: i32) -> (i32, i32) {
    %c0_i32 = arith.constant 0 : i32
    %c0_i32_0 = arith.constant 0 : i32
    %c0_i32_1 = arith.constant 0 : i32
    return %c0_i32, %c0_i32_0 : i32, i32
  }
  func.func @transform_9(%arg0: i32) -> (i32, i32) {
    %c0_i32 = arith.constant 0 : i32
    %c0_i32_0 = arith.constant 0 : i32
    %c0_i32_1 = arith.constant 0 : i32
    return %c0_i32, %c0_i32_0 : i32, i32
  }
  func.func @transform_10(%arg0: i32) -> (i32, i32) {
    %c0_i32 = arith.constant 0 : i32
    %c0_i32_0 = arith.constant 0 : i32
    %c0_i32_1 = arith.constant 0 : i32
    return %c0_i32, %c0_i32_0 : i32, i32
  }
  func.func @transform_11(%arg0: i32) -> (i32, i32) {
    %c0_i32 = arith.constant 0 : i32
    %c0_i32_0 = arith.constant 0 : i32
    return %arg0, %c0_i32 : i32, i32
  }
}

</mosaic_0001>

<llo_original>
// kernel: tpu_custom_call.1
$region0: #{tpu_custom_call.1}
  #allocation0 [shape = 'u32[]', space=smem, size = 0x4, offset = 0x4, fixed_abs, tag = 'smem constant byte address 0x4 - core index']
  #allocation1 [shape = 'u32[144,128]{1,0:T(1,128)}', space=vmem, size = 0x12000, scoped, tag = 'internal scratch']
  %s0 = inlined_call_operand.hbm [shape: f32[16,64], index: 0, kind: input, shape index: {}]
  %s1 = inlined_call_operand.hbm [shape: f32[16,64], index: 1, kind: input, shape index: {}]
  %s2 = inlined_call_operand.hbm [shape: f32[16,64], index: 2, kind: input, shape index: {}]
  %s3 = inlined_call_operand.hbm [shape: f32[64,64], index: 3, kind: input, shape index: {}]
  %s4 = inlined_call_operand.vmem [shape: f32[1,64], index: 4, kind: input, shape index: {}]
  %s5 = inlined_call_operand.hbm [shape: f32[64,64], index: 5, kind: input, shape index: {}]
  %s6 = inlined_call_operand.vmem [shape: f32[1,64], index: 6, kind: input, shape index: {}]
  %s7 = inlined_call_operand.hbm [shape: f32[64,64], index: 7, kind: input, shape index: {}]
  %s8 = inlined_call_operand.vmem [shape: f32[1,64], index: 8, kind: input, shape index: {}]
  %s9 = inlined_call_operand.hbm [shape: f32[64,64], index: 9, kind: input, shape index: {}]
  %s10 = inlined_call_operand.vmem [shape: f32[1,64], index: 10, kind: input, shape index: {}]
  %s11 = inlined_call_operand.hbm [shape: f32[16,64], index: 11, kind: output, shape index: {}]
  %s12 = sld [smem:[#allocation0]]
  $region82: #{tpu_custom_call.1} parent=0
    _
  %s14 = ssub.s32 1, %s12
  %s15 = scalar_select 0, %s14, %s12
  $region1: #{tpu_custom_call.1} parent=0
    #allocation2 [shape = 'u8[8192]{0}', space=vmem, size = 0x2000, scoped, tag = 'input window, operand 0, single buffered']
    #allocation3 [shape = 's32[1]{0}', space=sflag, size = 0x4, scoped, tag = 'scoped memory for tpu_custom_call.1']
    #allocation4 [shape = 's32[1]{0}', space=sflag, size = 0x4, scoped, tag = 'scoped memory for tpu_custom_call.1']
    #allocation5 [shape = 'u8[8192]{0}', space=vmem, size = 0x2000, scoped, tag = 'input window, operand 1, single buffered']
    #allocation6 [shape = 's32[1]{0}', space=sflag, size = 0x4, scoped, tag = 'scoped memory for tpu_custom_call.1']
    #allocation7 [shape = 'u8[8192]{0}', space=vmem, size = 0x2000, scoped, tag = 'input window, operand 2, single buffered']
    #allocation8 [shape = 'u8[32768]{0}', space=vmem, size = 0x8000, scoped, tag = 'input window, operand 3, single buffered']
    #allocation9 [shape = 's32[1]{0}', space=sflag, size = 0x4, scoped, tag = 'scoped memory for tpu_custom_call.1']
    #allocation10 [shape = 'u8[32768]{0}', space=vmem, size = 0x8000, scoped, tag = 'input window, operand 5, single buffered']
    #allocation11 [shape = 'u8[32768]{0}', space=vmem, size = 0x8000, scoped, tag = 'input window, operand 7, single buffered']
    #allocation12 [shape = 's32[1]{0}', space=sflag, size = 0x4, scoped, tag = 'scoped memory for tpu_custom_call.1']
    #allocation13 [shape = 'u8[32768]{0}', space=vmem, size = 0x8000, scoped, tag = 'input window, operand 9, single buffered']
    #allocation14 [shape = 'u8[8192]{0}', space=vmem, size = 0x2000, scoped, tag = 'output window, operand 0, single buffered']
    %16 = vsyncpa [#allocation3], 0
    %17 = vsyncpa [#allocation6], 0
    %18 = vsyncpa [#allocation9], 0
    %19 = vsyncpa [#allocation12], 0
    %20 = vsyncpa [#allocation4], 0
    // Predicated region
    $region2: #{tpu_custom_call.1} parent=1 // pred_check
      _
    $region3: #{tpu_custom_call.1} parent=1 // pred_check_branch
      %22 = sbr.rel (0) target = $region5
    $region4: #{tpu_custom_call.1} parent=1 // pred_region
      %s24 = ssub.s32 256, 256
      %25 = vsyncadd [#allocation3], %s24
      %s26 = sshll.u32 [#allocation2], 4
      %s27 = int_to_ptr.vmem [resolvable:$true] %s26
      %32 = dma.hbm_to_vmem [thread:$0]  %s0, 256, %s27, [#allocation3], 128, 128, 8
    $region5: #{tpu_custom_call.1} parent=1 // pred_fallthru
      _
    // Predicated region
    $region6: #{tpu_custom_call.1} parent=1 // pred_check
      _
    $region7: #{tpu_custom_call.1} parent=1 // pred_check_branch
      %34 = sbr.rel (0) target = $region9
    $region8: #{tpu_custom_call.1} parent=1 // pred_region
      %s36 = ssub.s32 256, 256
      %37 = vsyncadd [#allocation6], %s36
      %s38 = sshll.u32 [#allocation5], 4
      %s39 = int_to_ptr.vmem [resolvable:$true] %s38
      %44 = dma.hbm_to_vmem [thread:$0]  %s1, 256, %s39, [#allocation6], 128, 128, 8
    $region9: #{tpu_custom_call.1} parent=1 // pred_fallthru
      _
    // Predicated region
    $region10: #{tpu_custom_call.1} parent=1 // pred_check
      _
    $region11: #{tpu_custom_call.1} parent=1 // pred_check_branch
      %46 = sbr.rel (0) target = $region13
    $region12: #{tpu_custom_call.1} parent=1 // pred_region
      %s48 = ssub.s32 256, 256
      %49 = vsyncadd [#allocation6], %s48
      %s50 = sshll.u32 [#allocation7], 4
      %s51 = int_to_ptr.vmem [resolvable:$true] %s50
      %56 = dma.hbm_to_vmem [thread:$0]  %s2, 256, %s51, [#allocation6], 128, 128, 8
    $region13: #{tpu_custom_call.1} parent=1 // pred_fallthru
      _
    // Predicated region
    $region14: #{tpu_custom_call.1} parent=1 // pred_check
      _
    $region15: #{tpu_custom_call.1} parent=1 // pred_check_branch
      %58 = sbr.rel (0) target = $region17
    $region16: #{tpu_custom_call.1} parent=1 // pred_region
      %s60 = ssub.s32 1024, 1024
      %61 = vsyncadd [#allocation9], %s60
      %s62 = sshll.u32 [#allocation8], 4
      %s63 = int_to_ptr.vmem [resolvable:$true] %s62
      %68 = dma.hbm_to_vmem [thread:$0]  %s3, 1024, %s63, [#allocation9], 128, 128, 8
    $region17: #{tpu_custom_call.1} parent=1 // pred_fallthru
      _
    // Predicated region
    $region18: #{tpu_custom_call.1} parent=1 // pred_check
      _
    $region19: #{tpu_custom_call.1} parent=1 // pred_check_branch
      %70 = sbr.rel (0) target = $region21
    $region20: #{tpu_custom_call.1} parent=1 // pred_region
      _
    $region21: #{tpu_custom_call.1} parent=1 // pred_fallthru
      _
    // Predicated region
    $region22: #{tpu_custom_call.1} parent=1 // pred_check
      _
    $region23: #{tpu_custom_call.1} parent=1 // pred_check_branch
      %72 = sbr.rel (0) target = $region25
    $region24: #{tpu_custom_call.1} parent=1 // pred_region
      %s74 = ssub.s32 1024, 1024
      %75 = vsyncadd [#allocation9], %s74
      %s76 = sshll.u32 [#allocation10], 4
      %s77 = int_to_ptr.vmem [resolvable:$true] %s76
      %82 = dma.hbm_to_vmem [thread:$0]  %s5, 1024, %s77, [#allocation9], 128, 128, 8
    $region25: #{tpu_custom_call.1} parent=1 // pred_fallthru
      _
    // Predicated region
    $region26: #{tpu_custom_call.1} parent=1 // pred_check
      _
    $region27: #{tpu_custom_call.1} parent=1 // pred_check_branch
      %84 = sbr.rel (0) target = $region29
    $region28: #{tpu_custom_call.1} parent=1 // pred_region
      _
    $region29: #{tpu_custom_call.1} parent=1 // pred_fallthru
      _
    // Predicated region
    $region30: #{tpu_custom_call.1} parent=1 // pred_check
      _
    $region31: #{tpu_custom_call.1} parent=1 // pred_check_branch
      %86 = sbr.rel (0) target = $region33
    $region32: #{tpu_custom_call.1} parent=1 // pred_region
      %s88 = ssub.s32 1024, 1024
      %89 = vsyncadd [#allocation12], %s88
      %s90 = sshll.u32 [#allocation11], 4
      %s91 = int_to_ptr.vmem [resolvable:$true] %s90
      %96 = dma.hbm_to_vmem [thread:$0]  %s7, 1024, %s91, [#allocation12], 128, 128, 8
    $region33: #{tpu_custom_call.1} parent=1 // pred_fallthru
      _
    // Predicated region
    $region34: #{tpu_custom_call.1} parent=1 // pred_check
      _
    $region35: #{tpu_custom_call.1} parent=1 // pred_check_branch
      %98 = sbr.rel (0) target = $region37
    $region36: #{tpu_custom_call.1} parent=1 // pred_region
      _
    $region37: #{tpu_custom_call.1} parent=1 // pred_fallthru
      _
    // Predicated region
    $region38: #{tpu_custom_call.1} parent=1 // pred_check
      _
    $region39: #{tpu_custom_call.1} parent=1 // pred_check_branch
      %100 = sbr.rel (0) target = $region41
    $region40: #{tpu_custom_call.1} parent=1 // pred_region
      %s102 = ssub.s32 1024, 1024
      %103 = vsyncadd [#allocation12], %s102
      %s104 = sshll.u32 [#allocation13], 4
      %s105 = int_to_ptr.vmem [resolvable:$true] %s104
      %110 = dma.hbm_to_vmem [thread:$0]  %s9, 1024, %s105, [#allocation12], 128, 128, 8
    $region41: #{tpu_custom_call.1} parent=1 // pred_fallthru
      _
    // Predicated region
    $region42: #{tpu_custom_call.1} parent=1 // pred_check
      _
    $region43: #{tpu_custom_call.1} parent=1 // pred_check_branch
      %112 = sbr.rel (0) target = $region45
    $region44: #{tpu_custom_call.1} parent=1 // pred_region
      _
    $region45: #{tpu_custom_call.1} parent=1 // pred_fallthru
      _
    // Predicated region
    $region46: #{tpu_custom_call.1} parent=1 // pred_check
      _
    $region47: #{tpu_custom_call.1} parent=1 // pred_check_branch
      %114 = sbr.rel (0) target = $region49
    $region48: #{tpu_custom_call.1} parent=1 // pred_region
      %115 = dma.done [#allocation3], 256
    $region49: #{tpu_custom_call.1} parent=1 // pred_fallthru
      _
    // Predicated region
    $region50: #{tpu_custom_call.1} parent=1 // pred_check
      _
    $region51: #{tpu_custom_call.1} parent=1 // pred_check_branch
      %117 = sbr.rel (0) target = $region53
    $region52: #{tpu_custom_call.1} parent=1 // pred_region
      %118 = dma.done [#allocation6], 256
    $region53: #{tpu_custom_call.1} parent=1 // pred_fallthru
      _
    // Predicated region
    $region54: #{tpu_custom_call.1} parent=1 // pred_check
      _
    $region55: #{tpu_custom_call.1} parent=1 // pred_check_branch
      %120 = sbr.rel (0) target = $region57
    $region56: #{tpu_custom_call.1} parent=1 // pred_region
      %121 = dma.done [#allocation6], 256
    $region57: #{tpu_custom_call.1} parent=1 // pred_fallthru
      _
    // Predicated region
    $region58: #{tpu_custom_call.1} parent=1 // pred_check
      _
    $region59: #{tpu_custom_call.1} parent=1 // pred_check_branch
      %123 = sbr.rel (0) target = $region61
    $region60: #{tpu_custom_call.1} parent=1 // pred_region
      %124 = dma.done [#allocation9], 1024
    $region61: #{tpu_custom_call.1} parent=1 // pred_fallthru
      _
    // Predicated region
    $region62: #{tpu_custom_call.1} parent=1 // pred_check
      _
    $region63: #{tpu_custom_call.1} parent=1 // pred_check_branch
      %126 = sbr.rel (0) target = $region65
    $region64: #{tpu_custom_call.1} parent=1 // pred_region
      %127 = dma.done [#allocation9], 1024
    $region65: #{tpu_custom_call.1} parent=1 // pred_fallthru
      _
    // Predicated region
    $region66: #{tpu_custom_call.1} parent=1 // pred_check
      _
    $region67: #{tpu_custom_call.1} parent=1 // pred_check_branch
      %129 = sbr.rel (0) target = $region69
    $region68: #{tpu_custom_call.1} parent=1 // pred_region
      %130 = dma.done [#allocation12], 1024
    $region69: #{tpu_custom_call.1} parent=1 // pred_fallthru
      _
    // Predicated region
    $region70: #{tpu_custom_call.1} parent=1 // pred_check
      _
    $region71: #{tpu_custom_call.1} parent=1 // pred_check_branch
      %132 = sbr.rel (0) target = $region73
    $region72: #{tpu_custom_call.1} parent=1 // pred_region
      %133 = dma.done [#allocation12], 1024
    $region73: #{tpu_custom_call.1} parent=1 // pred_fallthru
      _
    %v134 = vld [vmem:[#allocation2] sm:$0xff]
    %v135 = vld [vmem:[#allocation2 + $0x8] sm:$0xff]
    %v136 = vld [vmem:[#allocation8] sm:$0xff]
    %v137 = vld [vmem:[#allocation8 + $0x8] sm:$0xff]
    %v138 = vld [vmem:[#allocation8 + $0x10] sm:$0xff]
    %v139 = vld [vmem:[#allocation8 + $0x18] sm:$0xff]
    %v140 = vld [vmem:[#allocation8 + $0x20] sm:$0xff]
    %v141 = vld [vmem:[#allocation8 + $0x28] sm:$0xff]
    %v142 = vld [vmem:[#allocation8 + $0x30] sm:$0xff]
    %v143 = vld [vmem:[#allocation8 + $0x38] sm:$0xff]
    %v144 = vld [vmem:[%s4] sm:$0x1]
    %v146 = vlaneseq
    %v147 = vshrl.u32 %v146, 7
    %v148 = vsub.s32 0, %v147
    %v149 = vrot.slane %v144, %v148
    %vm151 = vcmask 523264
    %v153 = vsel %vm151, %v134, 0
    %v156 = vsel %vm151, %v135, 0
    %158 = vmatprep.subr.mxu0 0.0
    %159 = vmatpush1.msra.mxu0 0.0
    %160 = vmatprep.subr.mxu0 0.0
    %161 = vmatpush1.msra.mxu0 0.0
    %162 = vmatprep.subr.mxu0 0.0
    %163 = vmatpush1.msra.mxu0 0.0
    %164 = vmatprep.subr.mxu0 0.0
    %165 = vmatpush1.msra.mxu0 0.0
    %166 = vmatprep.subr.mxu0 0.0
    %167 = vmatpush1.msra.mxu0 0.0
    %168 = vmatprep.subr.mxu0 0.0
    %169 = vmatpush1.msra.mxu0 0.0
    %170 = vmatprep.subr.mxu0 0.0
    %171 = vmatpush1.msra.mxu0 0.0
    %172 = vmatprep.subr.mxu0 0.0
    %173 = vmatpush1.msra.mxu0 0.0
    %174 = vmatprep.subr.mxu0 0.0
    %175 = vmatpush1.msra.mxu0 %v143
    %176 = vmatprep.subr.mxu0 0.0
    %177 = vmatpush1.msra.mxu0 %v142
    %178 = vmatprep.subr.mxu0 0.0
    %179 = vmatpush1.msra.mxu0 %v141
    %180 = vmatprep.subr.mxu0 0.0
    %181 = vmatpush1.msra.mxu0 %v140
    %182 = vmatprep.subr.mxu0 0.0
    %183 = vmatpush1.msra.mxu0 %v139
    %184 = vmatprep.subr.mxu0 0.0
    %185 = vmatpush1.msra.mxu0 %v138
    %186 = vmatprep.subr.mxu0 0.0
    %187 = vmatpush1.msra.mxu0 %v137
    %188 = vmatprep.subr.mxu0 0.0
    %189 = vmatpush1.msra.mxu0 %v136
    %190 = vmatprep.subr.mxu0 0.0
    %191 = vmatpush2.msra.mxu0 0.0
    %192 = vmatprep.subr.mxu0 0.0
    %193 = vmatpush2.msra.mxu0 0.0
    %194 = vmatprep.subr.mxu0 0.0
    %195 = vmatpush2.msra.mxu0 0.0
    %196 = vmatprep.subr.mxu0 0.0
    %197 = vmatpush2.msra.mxu0 0.0
    %198 = vmatprep.subr.mxu0 0.0
    %199 = vmatpush2.msra.mxu0 0.0
    %200 = vmatprep.subr.mxu0 0.0
    %201 = vmatpush2.msra.mxu0 0.0
    %202 = vmatprep.subr.mxu0 0.0
    %203 = vmatpush2.msra.mxu0 0.0
    %204 = vmatprep.subr.mxu0 0.0
    %205 = vmatpush2.msra.mxu0 0.0
    %206 = vmatprep.subr.mxu0 0.0
    %207 = vmatpush2.msra.mxu0 0.0
    %208 = vmatprep.subr.mxu0 0.0
    %209 = vmatpush2.msra.mxu0 0.0
    %210 = vmatprep.subr.mxu0 0.0
    %211 = vmatpush2.msra.mxu0 0.0
    %212 = vmatprep.subr.mxu0 0.0
    %213 = vmatpush2.msra.mxu0 0.0
    %214 = vmatprep.subr.mxu0 0.0
    %215 = vmatpush2.msra.mxu0 0.0
    %216 = vmatprep.subr.mxu0 0.0
    %217 = vmatpush2.msra.mxu0 0.0
    %218 = vmatprep.subr.mxu0 0.0
    %219 = vmatpush2.msra.mxu0 0.0
    %220 = vmatprep.subr.mxu0 0.0
    %221 = vmatpush2.msra.mxu0 0.0
    %222 = vmatprep.mubr.f32.mxu0 0.0
    %223 = vmatmul.mubr.f32.gmra.mxu0 %v153
    %v224 = vpop.f32.mrf.mxu0
    %v225 = vadd.f32 %v149, %v224
    %v226 = vpop.f32.mrf.mxu0
    %227 = vmatprep.mubr.f32.mxu0 0.0
    %228 = vmatmul.mubr.f32.gmra.mxu0 %v156
    %v229 = vpop.f32.mrf.mxu0
    %v230 = vadd.f32 %v149, %v229
    %v231 = vpop.f32.mrf.mxu0
    %232 = vdwg.mxu0
    %v233 = vld [vmem:[#allocation5] sm:$0xff]
    %v234 = vld [vmem:[#allocation5 + $0x8] sm:$0xff]
    %v235 = vld [vmem:[#allocation10] sm:$0xff]
    %v236 = vld [vmem:[#allocation10 + $0x8] sm:$0xff]
    %v237 = vld [vmem:[#allocation10 + $0x10] sm:$0xff]
    %v238 = vld [vmem:[#allocation10 + $0x18] sm:$0xff]
    %v239 = vld [vmem:[#allocation10 + $0x20] sm:$0xff]
    %v240 = vld [vmem:[#allocation10 + $0x28] sm:$0xff]
    %v241 = vld [vmem:[#allocation10 + $0x30] sm:$0xff]
    %v242 = vld [vmem:[#allocation10 + $0x38] sm:$0xff]
    %v243 = vld [vmem:[%s6] sm:$0x1]
    %v245 = vlaneseq
    %v246 = vshrl.u32 %v245, 7
    %v247 = vsub.s32 0, %v246
    %v248 = vrot.slane %v243, %v247
    %v251 = vsel %vm151, %v233, 0
    %v254 = vsel %vm151, %v234, 0
    %256 = vmatprep.subr.mxu0 0.0
    %257 = vmatpush1.msra.mxu0 0.0
    %258 = vmatprep.subr.mxu0 0.0
    %259 = vmatpush1.msra.mxu0 0.0
    %260 = vmatprep.subr.mxu0 0.0
    %261 = vmatpush1.msra.mxu0 0.0
    %262 = vmatprep.subr.mxu0 0.0
    %263 = vmatpush1.msra.mxu0 0.0
    %264 = vmatprep.subr.mxu0 0.0
    %265 = vmatpush1.msra.mxu0 0.0
    %266 = vmatprep.subr.mxu0 0.0
    %267 = vmatpush1.msra.mxu0 0.0
    %268 = vmatprep.subr.mxu0 0.0
    %269 = vmatpush1.msra.mxu0 0.0
    %270 = vmatprep.subr.mxu0 0.0
    %271 = vmatpush1.msra.mxu0 0.0
    %272 = vmatprep.subr.mxu0 0.0
    %273 = vmatpush1.msra.mxu0 %v242
    %274 = vmatprep.subr.mxu0 0.0
    %275 = vmatpush1.msra.mxu0 %v241
    %276 = vmatprep.subr.mxu0 0.0
    %277 = vmatpush1.msra.mxu0 %v240
    %278 = vmatprep.subr.mxu0 0.0
    %279 = vmatpush1.msra.mxu0 %v239
    %280 = vmatprep.subr.mxu0 0.0
    %281 = vmatpush1.msra.mxu0 %v238
    %282 = vmatprep.subr.mxu0 0.0
    %283 = vmatpush1.msra.mxu0 %v237
    %284 = vmatprep.subr.mxu0 0.0
    %285 = vmatpush1.msra.mxu0 %v236
    %286 = vmatprep.subr.mxu0 0.0
    %287 = vmatpush1.msra.mxu0 %v235
    %288 = vmatprep.subr.mxu0 0.0
    %289 = vmatpush2.msra.mxu0 0.0
    %290 = vmatprep.subr.mxu0 0.0
    %291 = vmatpush2.msra.mxu0 0.0
    %292 = vmatprep.subr.mxu0 0.0
    %293 = vmatpush2.msra.mxu0 0.0
    %294 = vmatprep.subr.mxu0 0.0
    %295 = vmatpush2.msra.mxu0 0.0
    %296 = vmatprep.subr.mxu0 0.0
    %297 = vmatpush2.msra.mxu0 0.0
    %298 = vmatprep.subr.mxu0 0.0
    %299 = vmatpush2.msra.mxu0 0.0
    %300 = vmatprep.subr.mxu0 0.0
    %301 = vmatpush2.msra.mxu0 0.0
    %302 = vmatprep.subr.mxu0 0.0
    %303 = vmatpush2.msra.mxu0 0.0
    %304 = vmatprep.subr.mxu0 0.0
    %305 = vmatpush2.msra.mxu0 0.0
    %306 = vmatprep.subr.mxu0 0.0
    %307 = vmatpush2.msra.mxu0 0.0
    %308 = vmatprep.subr.mxu0 0.0
    %309 = vmatpush2.msra.mxu0 0.0
    %310 = vmatprep.subr.mxu0 0.0
    %311 = vmatpush2.msra.mxu0 0.0
    %312 = vmatprep.subr.mxu0 0.0
    %313 = vmatpush2.msra.mxu0 0.0
    %314 = vmatprep.subr.mxu0 0.0
    %315 = vmatpush2.msra.mxu0 0.0
    %316 = vmatprep.subr.mxu0 0.0
    %317 = vmatpush2.msra.mxu0 0.0
    %318 = vmatprep.subr.mxu0 0.0
    %319 = vmatpush2.msra.mxu0 0.0
    %320 = vmatprep.mubr.f32.mxu0 0.0
    %321 = vmatmul.mubr.f32.gmra.mxu0 %v251
    %v322 = vpop.f32.mrf.mxu0
    %v323 = vadd.f32 %v248, %v322
    %v324 = vpop.f32.mrf.mxu0
    %325 = vmatprep.mubr.f32.mxu0 0.0
    %326 = vmatmul.mubr.f32.gmra.mxu0 %v254
    %v327 = vpop.f32.mrf.mxu0
    %v328 = vadd.f32 %v248, %v327
    %v329 = vpop.f32.mrf.mxu0
    %330 = vdwg.mxu0
    %v331 = vld [vmem:[#allocation7] sm:$0xff]
    %v332 = vld [vmem:[#allocation7 + $0x8] sm:$0xff]
    %v333 = vld [vmem:[#allocation11] sm:$0xff]
    %v334 = vld [vmem:[#allocation11 + $0x8] sm:$0xff]
    %v335 = vld [vmem:[#allocation11 + $0x10] sm:$0xff]
    %v336 = vld [vmem:[#allocation11 + $0x18] sm:$0xff]
    %v337 = vld [vmem:[#allocation11 + $0x20] sm:$0xff]
    %v338 = vld [vmem:[#allocation11 + $0x28] sm:$0xff]
    %v339 = vld [vmem:[#allocation11 + $0x30] sm:$0xff]
    %v340 = vld [vmem:[#allocation11 + $0x38] sm:$0xff]
    %v341 = vld [vmem:[%s8] sm:$0x1]
    %v343 = vlaneseq
    %v344 = vshrl.u32 %v343, 7
    %v345 = vsub.s32 0, %v344
    %v346 = vrot.slane %v341, %v345
    %v349 = vsel %vm151, %v331, 0
    %v352 = vsel %vm151, %v332, 0
    %354 = vmatprep.subr.mxu0 0.0
    %355 = vmatpush1.msra.mxu0 0.0
    %356 = vmatprep.subr.mxu0 0.0
    %357 = vmatpush1.msra.mxu0 0.0
    %358 = vmatprep.subr.mxu0 0.0
    %359 = vmatpush1.msra.mxu0 0.0
    %360 = vmatprep.subr.mxu0 0.0
    %361 = vmatpush1.msra.mxu0 0.0
    %362 = vmatprep.subr.mxu0 0.0
    %363 = vmatpush1.msra.mxu0 0.0
    %364 = vmatprep.subr.mxu0 0.0
    %365 = vmatpush1.msra.mxu0 0.0
    %366 = vmatprep.subr.mxu0 0.0
    %367 = vmatpush1.msra.mxu0 0.0
    %368 = vmatprep.subr.mxu0 0.0
    %369 = vmatpush1.msra.mxu0 0.0
    %370 = vmatprep.subr.mxu0 0.0
    %371 = vmatpush1.msra.mxu0 %v340
    %372 = vmatprep.subr.mxu0 0.0
    %373 = vmatpush1.msra.mxu0 %v339
    %374 = vmatprep.subr.mxu0 0.0
    %375 = vmatpush1.msra.mxu0 %v338
    %376 = vmatprep.subr.mxu0 0.0
    %377 = vmatpush1.msra.mxu0 %v337
    %378 = vmatprep.subr.mxu0 0.0
    %379 = vmatpush1.msra.mxu0 %v336
    %380 = vmatprep.subr.mxu0 0.0
    %381 = vmatpush1.msra.mxu0 %v335
    %382 = vmatprep.subr.mxu0 0.0
    %383 = vmatpush1.msra.mxu0 %v334
    %384 = vmatprep.subr.mxu0 0.0
    %385 = vmatpush1.msra.mxu0 %v333
    %386 = vmatprep.subr.mxu0 0.0
    %387 = vmatpush2.msra.mxu0 0.0
    %388 = vmatprep.subr.mxu0 0.0
    %389 = vmatpush2.msra.mxu0 0.0
    %390 = vmatprep.subr.mxu0 0.0
    %391 = vmatpush2.msra.mxu0 0.0
    %392 = vmatprep.subr.mxu0 0.0
    %393 = vmatpush2.msra.mxu0 0.0
    %394 = vmatprep.subr.mxu0 0.0
    %395 = vmatpush2.msra.mxu0 0.0
    %396 = vmatprep.subr.mxu0 0.0
    %397 = vmatpush2.msra.mxu0 0.0
    %398 = vmatprep.subr.mxu0 0.0
    %399 = vmatpush2.msra.mxu0 0.0
    %400 = vmatprep.subr.mxu0 0.0
    %401 = vmatpush2.msra.mxu0 0.0
    %402 = vmatprep.subr.mxu0 0.0
    %403 = vmatpush2.msra.mxu0 0.0
    %404 = vmatprep.subr.mxu0 0.0
    %405 = vmatpush2.msra.mxu0 0.0
    %406 = vmatprep.subr.mxu0 0.0
    %407 = vmatpush2.msra.mxu0 0.0
    %408 = vmatprep.subr.mxu0 0.0
    %409 = vmatpush2.msra.mxu0 0.0
    %410 = vmatprep.subr.mxu0 0.0
    %411 = vmatpush2.msra.mxu0 0.0
    %412 = vmatprep.subr.mxu0 0.0
    %413 = vmatpush2.msra.mxu0 0.0
    %414 = vmatprep.subr.mxu0 0.0
    %415 = vmatpush2.msra.mxu0 0.0
    %416 = vmatprep.subr.mxu0 0.0
    %417 = vmatpush2.msra.mxu0 0.0
    %418 = vmatprep.mubr.f32.mxu0 0.0
    %419 = vmatmul.mubr.f32.gmra.mxu0 %v349
    %v420 = vpop.f32.mrf.mxu0
    %v421 = vadd.f32 %v346, %v420
    %v422 = vpop.f32.mrf.mxu0
    %423 = vmatprep.mubr.f32.mxu0 0.0
    %424 = vmatmul.mubr.f32.gmra.mxu0 %v352
    %v425 = vpop.f32.mrf.mxu0
    %v426 = vadd.f32 %v346, %v425
    %v427 = vpop.f32.mrf.mxu0
    %428 = vdwg.mxu0
    %vm429 = vcmask 64512
    %v431 = vsel %vm429, %v225, 0
    %v434 = vsel %vm429, %v323, 0
    %436 = vmatprep.subr.mxu0 0.0
    %437 = vmatpush1.xpose.msra.mxu0 0.0
    %438 = vmatprep.subr.mxu0 0.0
    %439 = vmatpush1.xpose.msra.mxu0 0.0
    %440 = vmatprep.subr.mxu0 0.0
    %441 = vmatpush1.xpose.msra.mxu0 0.0
    %442 = vmatprep.subr.mxu0 0.0
    %443 = vmatpush1.xpose.msra.mxu0 0.0
    %444 = vmatprep.subr.mxu0 0.0
    %445 = vmatpush1.xpose.msra.mxu0 0.0
    %446 = vmatprep.subr.mxu0 0.0
    %447 = vmatpush1.xpose.msra.mxu0 0.0
    %448 = vmatprep.subr.mxu0 0.0
    %449 = vmatpush1.xpose.msra.mxu0 0.0
    %450 = vmatprep.subr.mxu0 0.0
    %451 = vmatpush1.xpose.msra.mxu0 0.0
    %452 = vmatprep.subr.mxu0 0.0
    %453 = vmatpush1.xpose.msra.mxu0 0.0
    %454 = vmatprep.subr.mxu0 0.0
    %455 = vmatpush1.xpose.msra.mxu0 0.0
    %456 = vmatprep.subr.mxu0 0.0
    %457 = vmatpush1.xpose.msra.mxu0 0.0
    %458 = vmatprep.subr.mxu0 0.0
    %459 = vmatpush1.xpose.msra.mxu0 0.0
    %460 = vmatprep.subr.mxu0 0.0
    %461 = vmatpush1.xpose.msra.mxu0 0.0
    %462 = vmatprep.subr.mxu0 0.0
    %463 = vmatpush1.xpose.msra.mxu0 0.0
    %464 = vmatprep.subr.mxu0 0.0
    %465 = vmatpush1.xpose.msra.mxu0 0.0
    %466 = vmatprep.subr.mxu0 0.0
    %467 = vmatpush1.xpose.msra.mxu0 %v434
    %468 = vmatprep.subr.mxu0 0.0
    %469 = vmatpush2.xpose.msra.mxu0 0.0
    %470 = vmatprep.subr.mxu0 0.0
    %471 = vmatpush2.xpose.msra.mxu0 0.0
    %472 = vmatprep.subr.mxu0 0.0
    %473 = vmatpush2.xpose.msra.mxu0 0.0
    %474 = vmatprep.subr.mxu0 0.0
    %475 = vmatpush2.xpose.msra.mxu0 0.0
    %476 = vmatprep.subr.mxu0 0.0
    %477 = vmatpush2.xpose.msra.mxu0 0.0
    %478 = vmatprep.subr.mxu0 0.0
    %479 = vmatpush2.xpose.msra.mxu0 0.0
    %480 = vmatprep.subr.mxu0 0.0
    %481 = vmatpush2.xpose.msra.mxu0 0.0
    %482 = vmatprep.subr.mxu0 0.0
    %483 = vmatpush2.xpose.msra.mxu0 0.0
    %484 = vmatprep.subr.mxu0 0.0
    %485 = vmatpush2.xpose.msra.mxu0 0.0
    %486 = vmatprep.subr.mxu0 0.0
    %487 = vmatpush2.xpose.msra.mxu0 0.0
    %488 = vmatprep.subr.mxu0 0.0
    %489 = vmatpush2.xpose.msra.mxu0 0.0
    %490 = vmatprep.subr.mxu0 0.0
    %491 = vmatpush2.xpose.msra.mxu0 0.0
    %492 = vmatprep.subr.mxu0 0.0
    %493 = vmatpush2.xpose.msra.mxu0 0.0
    %494 = vmatprep.subr.mxu0 0.0
    %495 = vmatpush2.xpose.msra.mxu0 0.0
    %496 = vmatprep.subr.mxu0 0.0
    %497 = vmatpush2.xpose.msra.mxu0 0.0
    %498 = vmatprep.subr.mxu0 0.0
    %499 = vmatpush2.xpose.msra.mxu0 0.0
    %500 = vmatprep.mubr.f32.mxu0 0.0
    %501 = vmatmul.mubr.f32.gmra.mxu0 %v431
    %v502 = vpop.f32.mrf.mxu0
    %v503 = vadd.f32 0.0, %v502
    %v504 = vpop.f32.mrf.mxu0
    %505 = vdwg.mxu0
    %v506 = vsel %vm429, %v503, -inf
    %507 = vmax.xlane.f32.xlu0 %v506
    %v508 = vpop.xlane.xlu0 %507
    %v509 = vsub.f32 %v503, %v508
    %v510 = vmul.f32 %v509, 1.442695
    %v511 = vpow.pop %v510
    %v512 = vsel %vm429, %v511, 0.0
    %513 = vadd.xlane.f32.xlu0 %v512
    %v514 = vpop.xlane.xlu0 %513
    %v515 = vrcp.pop %v514
    %v516 = vmul.f32 1.0, %v515
    %v518 = vsel %vm429, %v511, 0
    %520 = vmatprep.subr.mxu0 0.0
    %521 = vmatpush1.msra.mxu0 0.0
    %522 = vmatprep.subr.mxu0 0.0
    %523 = vmatpush1.msra.mxu0 0.0
    %524 = vmatprep.subr.mxu0 0.0
    %525 = vmatpush1.msra.mxu0 0.0
    %526 = vmatprep.subr.mxu0 0.0
    %527 = vmatpush1.msra.mxu0 0.0
    %528 = vmatprep.subr.mxu0 0.0
    %529 = vmatpush1.msra.mxu0 0.0
    %530 = vmatprep.subr.mxu0 0.0
    %531 = vmatpush1.msra.mxu0 0.0
    %532 = vmatprep.subr.mxu0 0.0
    %533 = vmatpush1.msra.mxu0 0.0
    %534 = vmatprep.subr.mxu0 0.0
    %535 = vmatpush1.msra.mxu0 0.0
    %536 = vmatprep.subr.mxu0 0.0
    %537 = vmatpush1.msra.mxu0 0.0
    %538 = vmatprep.subr.mxu0 0.0
    %539 = vmatpush1.msra.mxu0 0.0
    %540 = vmatprep.subr.mxu0 0.0
    %541 = vmatpush1.msra.mxu0 0.0
    %542 = vmatprep.subr.mxu0 0.0
    %543 = vmatpush1.msra.mxu0 0.0
    %544 = vmatprep.subr.mxu0 0.0
    %545 = vmatpush1.msra.mxu0 0.0
    %546 = vmatprep.subr.mxu0 0.0
    %547 = vmatpush1.msra.mxu0 0.0
    %548 = vmatprep.subr.mxu0 0.0
    %549 = vmatpush1.msra.mxu0 0.0
    %550 = vmatprep.subr.mxu0 0.0
    %551 = vmatpush1.msra.mxu0 %v421
    %552 = vmatprep.subr.mxu0 0.0
    %553 = vmatpush2.msra.mxu0 0.0
    %554 = vmatprep.subr.mxu0 0.0
    %555 = vmatpush2.msra.mxu0 0.0
    %556 = vmatprep.subr.mxu0 0.0
    %557 = vmatpush2.msra.mxu0 0.0
    %558 = vmatprep.subr.mxu0 0.0
    %559 = vmatpush2.msra.mxu0 0.0
    %560 = vmatprep.subr.mxu0 0.0
    %561 = vmatpush2.msra.mxu0 0.0
    %562 = vmatprep.subr.mxu0 0.0
    %563 = vmatpush2.msra.mxu0 0.0
    %564 = vmatprep.subr.mxu0 0.0
    %565 = vmatpush2.msra.mxu0 0.0
    %566 = vmatprep.subr.mxu0 0.0
    %567 = vmatpush2.msra.mxu0 0.0
    %568 = vmatprep.subr.mxu0 0.0
    %569 = vmatpush2.msra.mxu0 0.0
    %570 = vmatprep.subr.mxu0 0.0
    %571 = vmatpush2.msra.mxu0 0.0
    %572 = vmatprep.subr.mxu0 0.0
    %573 = vmatpush2.msra.mxu0 0.0
    %574 = vmatprep.subr.mxu0 0.0
    %575 = vmatpush2.msra.mxu0 0.0
    %576 = vmatprep.subr.mxu0 0.0
    %577 = vmatpush2.msra.mxu0 0.0
    %578 = vmatprep.subr.mxu0 0.0
    %579 = vmatpush2.msra.mxu0 0.0
    %580 = vmatprep.subr.mxu0 0.0
    %581 = vmatpush2.msra.mxu0 0.0
    %582 = vmatprep.subr.mxu0 0.0
    %583 = vmatpush2.msra.mxu0 0.0
    %584 = vmatprep.mubr.f32.mxu0 0.0
    %585 = vmatmul.mubr.f32.gmra.mxu0 %v518
    %v586 = vpop.f32.mrf.mxu0
    %v587 = vadd.f32 0.0, %v586
    %v588 = vpop.f32.mrf.mxu0
    %589 = vdwg.mxu0
    %v590 = vmul.f32 %v587, %v516
    %591 = vrot.lane.b32.xlu0 %v225, 120
    %v592 = vpop.permute.xlu0 %591
    %593 = vrot.lane.b32.xlu0 %v323, 120
    %v594 = vpop.permute.xlu0 %593
    %v595 = vsel %vm429, %v592, 0
    %v597 = vsel %vm429, %v594, 0
    %599 = vmatprep.subr.mxu0 0.0
    %600 = vmatpush1.xpose.msra.mxu0 0.0
    %601 = vmatprep.subr.mxu0 0.0
    %602 = vmatpush1.xpose.msra.mxu0 0.0
    %603 = vmatprep.subr.mxu0 0.0
    %604 = vmatpush1.xpose.msra.mxu0 0.0
    %605 = vmatprep.subr.mxu0 0.0
    %606 = vmatpush1.xpose.msra.mxu0 0.0
    %607 = vmatprep.subr.mxu0 0.0
    %608 = vmatpush1.xpose.msra.mxu0 0.0
    %609 = vmatprep.subr.mxu0 0.0
    %610 = vmatpush1.xpose.msra.mxu0 0.0
    %611 = vmatprep.subr.mxu0 0.0
    %612 = vmatpush1.xpose.msra.mxu0 0.0
    %613 = vmatprep.subr.mxu0 0.0
    %614 = vmatpush1.xpose.msra.mxu0 0.0
    %615 = vmatprep.subr.mxu0 0.0
    %616 = vmatpush1.xpose.msra.mxu0 0.0
    %617 = vmatprep.subr.mxu0 0.0
    %618 = vmatpush1.xpose.msra.mxu0 0.0
    %619 = vmatprep.subr.mxu0 0.0
    %620 = vmatpush1.xpose.msra.mxu0 0.0
    %621 = vmatprep.subr.mxu0 0.0
    %622 = vmatpush1.xpose.msra.mxu0 0.0
    %623 = vmatprep.subr.mxu0 0.0
    %624 = vmatpush1.xpose.msra.mxu0 0.0
    %625 = vmatprep.subr.mxu0 0.0
    %626 = vmatpush1.xpose.msra.mxu0 0.0
    %627 = vmatprep.subr.mxu0 0.0
    %628 = vmatpush1.xpose.msra.mxu0 0.0
    %629 = vmatprep.subr.mxu0 0.0
    %630 = vmatpush1.xpose.msra.mxu0 %v597
    %631 = vmatprep.subr.mxu0 0.0
    %632 = vmatpush2.xpose.msra.mxu0 0.0
    %633 = vmatprep.subr.mxu0 0.0
    %634 = vmatpush2.xpose.msra.mxu0 0.0
    %635 = vmatprep.subr.mxu0 0.0
    %636 = vmatpush2.xpose.msra.mxu0 0.0
    %637 = vmatprep.subr.mxu0 0.0
    %638 = vmatpush2.xpose.msra.mxu0 0.0
    %639 = vmatprep.subr.mxu0 0.0
    %640 = vmatpush2.xpose.msra.mxu0 0.0
    %641 = vmatprep.subr.mxu0 0.0
    %642 = vmatpush2.xpose.msra.mxu0 0.0
    %643 = vmatprep.subr.mxu0 0.0
    %644 = vmatpush2.xpose.msra.mxu0 0.0
    %645 = vmatprep.subr.mxu0 0.0
    %646 = vmatpush2.xpose.msra.mxu0 0.0
    %647 = vmatprep.subr.mxu0 0.0
    %648 = vmatpush2.xpose.msra.mxu0 0.0
    %649 = vmatprep.subr.mxu0 0.0
    %650 = vmatpush2.xpose.msra.mxu0 0.0
    %651 = vmatprep.subr.mxu0 0.0
    %652 = vmatpush2.xpose.msra.mxu0 0.0
    %653 = vmatprep.subr.mxu0 0.0
    %654 = vmatpush2.xpose.msra.mxu0 0.0
    %655 = vmatprep.subr.mxu0 0.0
    %656 = vmatpush2.xpose.msra.mxu0 0.0
    %657 = vmatprep.subr.mxu0 0.0
    %658 = vmatpush2.xpose.msra.mxu0 0.0
    %659 = vmatprep.subr.mxu0 0.0
    %660 = vmatpush2.xpose.msra.mxu0 0.0
    %661 = vmatprep.subr.mxu0 0.0
    %662 = vmatpush2.xpose.msra.mxu0 0.0
    %663 = vmatprep.mubr.f32.mxu0 0.0
    %664 = vmatmul.mubr.f32.gmra.mxu0 %v595
    %v665 = vpop.f32.mrf.mxu0
    %v666 = vadd.f32 0.0, %v665
    %v667 = vpop.f32.mrf.mxu0
    %668 = vdwg.mxu0
    %v669 = vsel %vm429, %v666, -inf
    %670 = vmax.xlane.f32.xlu0 %v669
    %v671 = vpop.xlane.xlu0 %670
    %v672 = vsub.f32 %v666, %v671
    %v673 = vmul.f32 %v672, 1.442695
    %v674 = vpow.pop %v673
    %v675 = vsel %vm429, %v674, 0.0
    %676 = vadd.xlane.f32.xlu0 %v675
    %v677 = vpop.xlane.xlu0 %676
    %v678 = vrcp.pop %v677
    %v679 = vmul.f32 1.0, %v678
    %681 = vrot.lane.b32.xlu0 %v421, 120
    %v682 = vpop.permute.xlu0 %681
    %v685 = vsel %vm429, %v674, 0
    %687 = vmatprep.subr.mxu0 0.0
    %688 = vmatpush1.msra.mxu0 0.0
    %689 = vmatprep.subr.mxu0 0.0
    %690 = vmatpush1.msra.mxu0 0.0
    %691 = vmatprep.subr.mxu0 0.0
    %692 = vmatpush1.msra.mxu0 0.0
    %693 = vmatprep.subr.mxu0 0.0
    %694 = vmatpush1.msra.mxu0 0.0
    %695 = vmatprep.subr.mxu0 0.0
    %696 = vmatpush1.msra.mxu0 0.0
    %697 = vmatprep.subr.mxu0 0.0
    %698 = vmatpush1.msra.mxu0 0.0
    %699 = vmatprep.subr.mxu0 0.0
    %700 = vmatpush1.msra.mxu0 0.0
    %701 = vmatprep.subr.mxu0 0.0
    %702 = vmatpush1.msra.mxu0 0.0
    %703 = vmatprep.subr.mxu0 0.0
    %704 = vmatpush1.msra.mxu0 0.0
    %705 = vmatprep.subr.mxu0 0.0
    %706 = vmatpush1.msra.mxu0 0.0
    %707 = vmatprep.subr.mxu0 0.0
    %708 = vmatpush1.msra.mxu0 0.0
    %709 = vmatprep.subr.mxu0 0.0
    %710 = vmatpush1.msra.mxu0 0.0
    %711 = vmatprep.subr.mxu0 0.0
    %712 = vmatpush1.msra.mxu0 0.0
    %713 = vmatprep.subr.mxu0 0.0
    %714 = vmatpush1.msra.mxu0 0.0
    %715 = vmatprep.subr.mxu0 0.0
    %716 = vmatpush1.msra.mxu0 0.0
    %717 = vmatprep.subr.mxu0 0.0
    %718 = vmatpush1.msra.mxu0 %v682
    %719 = vmatprep.subr.mxu0 0.0
    %720 = vmatpush2.msra.mxu0 0.0
    %721 = vmatprep.subr.mxu0 0.0
    %722 = vmatpush2.msra.mxu0 0.0
    %723 = vmatprep.subr.mxu0 0.0
    %724 = vmatpush2.msra.mxu0 0.0
    %725 = vmatprep.subr.mxu0 0.0
    %726 = vmatpush2.msra.mxu0 0.0
    %727 = vmatprep.subr.mxu0 0.0
    %728 = vmatpush2.msra.mxu0 0.0
    %729 = vmatprep.subr.mxu0 0.0
    %730 = vmatpush2.msra.mxu0 0.0
    %731 = vmatprep.subr.mxu0 0.0
    %732 = vmatpush2.msra.mxu0 0.0
    %733 = vmatprep.subr.mxu0 0.0
    %734 = vmatpush2.msra.mxu0 0.0
    %735 = vmatprep.subr.mxu0 0.0
    %736 = vmatpush2.msra.mxu0 0.0
    %737 = vmatprep.subr.mxu0 0.0
    %738 = vmatpush2.msra.mxu0 0.0
    %739 = vmatprep.subr.mxu0 0.0
    %740 = vmatpush2.msra.mxu0 0.0
    %741 = vmatprep.subr.mxu0 0.0
    %742 = vmatpush2.msra.mxu0 0.0
    %743 = vmatprep.subr.mxu0 0.0
    %744 = vmatpush2.msra.mxu0 0.0
    %745 = vmatprep.subr.mxu0 0.0
    %746 = vmatpush2.msra.mxu0 0.0
    %747 = vmatprep.subr.mxu0 0.0
    %748 = vmatpush2.msra.mxu0 0.0
    %749 = vmatprep.subr.mxu0 0.0
    %750 = vmatpush2.msra.mxu0 0.0
    %751 = vmatprep.mubr.f32.mxu0 0.0
    %752 = vmatmul.mubr.f32.gmra.mxu0 %v685
    %v753 = vpop.f32.mrf.mxu0
    %v754 = vadd.f32 0.0, %v753
    %v755 = vpop.f32.mrf.mxu0
    %756 = vdwg.mxu0
    %v757 = vmul.f32 %v754, %v679
    %758 = vrot.lane.b32.xlu0 %v225, 112
    %v759 = vpop.permute.xlu0 %758
    %760 = vrot.lane.b32.xlu0 %v323, 112
    %v761 = vpop.permute.xlu0 %760
    %v762 = vsel %vm429, %v759, 0
    %v764 = vsel %vm429, %v761, 0
    %766 = vmatprep.subr.mxu0 0.0
    %767 = vmatpush1.xpose.msra.mxu0 0.0
    %768 = vmatprep.subr.mxu0 0.0
    %769 = vmatpush1.xpose.msra.mxu0 0.0
    %770 = vmatprep.subr.mxu0 0.0
    %771 = vmatpush1.xpose.msra.mxu0 0.0
    %772 = vmatprep.subr.mxu0 0.0
    %773 = vmatpush1.xpose.msra.mxu0 0.0
    %774 = vmatprep.subr.mxu0 0.0
    %775 = vmatpush1.xpose.msra.mxu0 0.0
    %776 = vmatprep.subr.mxu0 0.0
    %777 = vmatpush1.xpose.msra.mxu0 0.0
    %778 = vmatprep.subr.mxu0 0.0
    %779 = vmatpush1.xpose.msra.mxu0 0.0
    %780 = vmatprep.subr.mxu0 0.0
    %781 = vmatpush1.xpose.msra.mxu0 0.0
    %782 = vmatprep.subr.mxu0 0.0
    %783 = vmatpush1.xpose.msra.mxu0 0.0
    %784 = vmatprep.subr.mxu0 0.0
    %785 = vmatpush1.xpose.msra.mxu0 0.0
    %786 = vmatprep.subr.mxu0 0.0
    %787 = vmatpush1.xpose.msra.mxu0 0.0
    %788 = vmatprep.subr.mxu0 0.0
    %789 = vmatpush1.xpose.msra.mxu0 0.0
    %790 = vmatprep.subr.mxu0 0.0
    %791 = vmatpush1.xpose.msra.mxu0 0.0
    %792 = vmatprep.subr.mxu0 0.0
    %793 = vmatpush1.xpose.msra.mxu0 0.0
    %794 = vmatprep.subr.mxu0 0.0
    %795 = vmatpush1.xpose.msra.mxu0 0.0
    %796 = vmatprep.subr.mxu0 0.0
    %797 = vmatpush1.xpose.msra.mxu0 %v764
    %798 = vmatprep.subr.mxu0 0.0
    %799 = vmatpush2.xpose.msra.mxu0 0.0
    %800 = vmatprep.subr.mxu0 0.0
    %801 = vmatpush2.xpose.msra.mxu0 0.0
    %802 = vmatprep.subr.mxu0 0.0
    %803 = vmatpush2.xpose.msra.mxu0 0.0
    %804 = vmatprep.subr.mxu0 0.0
    %805 = vmatpush2.xpose.msra.mxu0 0.0
    %806 = vmatprep.subr.mxu0 0.0
    %807 = vmatpush2.xpose.msra.mxu0 0.0
    %808 = vmatprep.subr.mxu0 0.0
    %809 = vmatpush2.xpose.msra.mxu0 0.0
    %810 = vmatprep.subr.mxu0 0.0
    %811 = vmatpush2.xpose.msra.mxu0 0.0
    %812 = vmatprep.subr.mxu0 0.0
    %813 = vmatpush2.xpose.msra.mxu0 0.0
    %814 = vmatprep.subr.mxu0 0.0
    %815 = vmatpush2.xpose.msra.mxu0 0.0
    %816 = vmatprep.subr.mxu0 0.0
    %817 = vmatpush2.xpose.msra.mxu0 0.0
    %818 = vmatprep.subr.mxu0 0.0
    %819 = vmatpush2.xpose.msra.mxu0 0.0
    %820 = vmatprep.subr.mxu0 0.0
    %821 = vmatpush2.xpose.msra.mxu0 0.0
    %822 = vmatprep.subr.mxu0 0.0
    %823 = vmatpush2.xpose.msra.mxu0 0.0
    %824 = vmatprep.subr.mxu0 0.0
    %825 = vmatpush2.xpose.msra.mxu0 0.0
    %826 = vmatprep.subr.mxu0 0.0
    %827 = vmatpush2.xpose.msra.mxu0 0.0
    %828 = vmatprep.subr.mxu0 0.0
    %829 = vmatpush2.xpose.msra.mxu0 0.0
    %830 = vmatprep.mubr.f32.mxu0 0.0
    %831 = vmatmul.mubr.f32.gmra.mxu0 %v762
    %v832 = vpop.f32.mrf.mxu0
    %v833 = vadd.f32 0.0, %v832
    %v834 = vpop.f32.mrf.mxu0
    %835 = vdwg.mxu0
    %v836 = vsel %vm429, %v833, -inf
    %837 = vmax.xlane.f32.xlu0 %v836
    %v838 = vpop.xlane.xlu0 %837
    %v839 = vsub.f32 %v833, %v838
    %v840 = vmul.f32 %v839, 1.442695
    %v841 = vpow.pop %v840
    %v842 = vsel %vm429, %v841, 0.0
    %843 = vadd.xlane.f32.xlu0 %v842
    %v844 = vpop.xlane.xlu0 %843
    %v845 = vrcp.pop %v844
    %v846 = vmul.f32 1.0, %v845
    %847 = vrot.lane.b32.xlu0 %v421, 112
    %v848 = vpop.permute.xlu0 %847
    %v851 = vsel %vm429, %v841, 0
    %853 = vmatprep.subr.mxu0 0.0
    %854 = vmatpush1.msra.mxu0 0.0
    %855 = vmatprep.subr.mxu0 0.0
    %856 = vmatpush1.msra.mxu0 0.0
    %857 = vmatprep.subr.mxu0 0.0
    %858 = vmatpush1.msra.mxu0 0.0
    %859 = vmatprep.subr.mxu0 0.0
    %860 = vmatpush1.msra.mxu0 0.0
    %861 = vmatprep.subr.mxu0 0.0
    %862 = vmatpush1.msra.mxu0 0.0
    %863 = vmatprep.subr.mxu0 0.0
    %864 = vmatpush1.msra.mxu0 0.0
    %865 = vmatprep.subr.mxu0 0.0
    %866 = vmatpush1.msra.mxu0 0.0
    %867 = vmatprep.subr.mxu0 0.0
    %868 = vmatpush1.msra.mxu0 0.0
    %869 = vmatprep.subr.mxu0 0.0
    %870 = vmatpush1.msra.mxu0 0.0
    %871 = vmatprep.subr.mxu0 0.0
    %872 = vmatpush1.msra.mxu0 0.0
    %873 = vmatprep.subr.mxu0 0.0
    %874 = vmatpush1.msra.mxu0 0.0
    %875 = vmatprep.subr.mxu0 0.0
    %876 = vmatpush1.msra.mxu0 0.0
    %877 = vmatprep.subr.mxu0 0.0
    %878 = vmatpush1.msra.mxu0 0.0
    %879 = vmatprep.subr.mxu0 0.0
    %880 = vmatpush1.msra.mxu0 0.0
    %881 = vmatprep.subr.mxu0 0.0
    %882 = vmatpush1.msra.mxu0 0.0
    %883 = vmatprep.subr.mxu0 0.0
    %884 = vmatpush1.msra.mxu0 %v848
    %885 = vmatprep.subr.mxu0 0.0
    %886 = vmatpush2.msra.mxu0 0.0
    %887 = vmatprep.subr.mxu0 0.0
    %888 = vmatpush2.msra.mxu0 0.0
    %889 = vmatprep.subr.mxu0 0.0
    %890 = vmatpush2.msra.mxu0 0.0
    %891 = vmatprep.subr.mxu0 0.0
    %892 = vmatpush2.msra.mxu0 0.0
    %893 = vmatprep.subr.mxu0 0.0
    %894 = vmatpush2.msra.mxu0 0.0
    %895 = vmatprep.subr.mxu0 0.0
    %896 = vmatpush2.msra.mxu0 0.0
    %897 = vmatprep.subr.mxu0 0.0
    %898 = vmatpush2.msra.mxu0 0.0
    %899 = vmatprep.subr.mxu0 0.0
    %900 = vmatpush2.msra.mxu0 0.0
    %901 = vmatprep.subr.mxu0 0.0
    %902 = vmatpush2.msra.mxu0 0.0
    %903 = vmatprep.subr.mxu0 0.0
    %904 = vmatpush2.msra.mxu0 0.0
    %905 = vmatprep.subr.mxu0 0.0
    %906 = vmatpush2.msra.mxu0 0.0
    %907 = vmatprep.subr.mxu0 0.0
    %908 = vmatpush2.msra.mxu0 0.0
    %909 = vmatprep.subr.mxu0 0.0
    %910 = vmatpush2.msra.mxu0 0.0
    %911 = vmatprep.subr.mxu0 0.0
    %912 = vmatpush2.msra.mxu0 0.0
    %913 = vmatprep.subr.mxu0 0.0
    %914 = vmatpush2.msra.mxu0 0.0
    %915 = vmatprep.subr.mxu0 0.0
    %916 = vmatpush2.msra.mxu0 0.0
    %917 = vmatprep.mubr.f32.mxu0 0.0
    %918 = vmatmul.mubr.f32.gmra.mxu0 %v851
    %v919 = vpop.f32.mrf.mxu0
    %v920 = vadd.f32 0.0, %v919
    %v921 = vpop.f32.mrf.mxu0
    %922 = vdwg.mxu0
    %v923 = vmul.f32 %v920, %v846
    %924 = vrot.lane.b32.xlu0 %v225, 104
    %v925 = vpop.permute.xlu0 %924
    %926 = vrot.lane.b32.xlu0 %v323, 104
    %v927 = vpop.permute.xlu0 %926
    %v928 = vsel %vm429, %v925, 0
    %v930 = vsel %vm429, %v927, 0
    %932 = vmatprep.subr.mxu0 0.0
    %933 = vmatpush1.xpose.msra.mxu0 0.0
    %934 = vmatprep.subr.mxu0 0.0
    %935 = vmatpush1.xpose.msra.mxu0 0.0
    %936 = vmatprep.subr.mxu0 0.0
    %937 = vmatpush1.xpose.msra.mxu0 0.0
    %938 = vmatprep.subr.mxu0 0.0
    %939 = vmatpush1.xpose.msra.mxu0 0.0
    %940 = vmatprep.subr.mxu0 0.0
    %941 = vmatpush1.xpose.msra.mxu0 0.0
    %942 = vmatprep.subr.mxu0 0.0
    %943 = vmatpush1.xpose.msra.mxu0 0.0
    %944 = vmatprep.subr.mxu0 0.0
    %945 = vmatpush1.xpose.msra.mxu0 0.0
    %946 = vmatprep.subr.mxu0 0.0
    %947 = vmatpush1.xpose.msra.mxu0 0.0
    %948 = vmatprep.subr.mxu0 0.0
    %949 = vmatpush1.xpose.msra.mxu0 0.0
    %950 = vmatprep.subr.mxu0 0.0
    %951 = vmatpush1.xpose.msra.mxu0 0.0
    %952 = vmatprep.subr.mxu0 0.0
    %953 = vmatpush1.xpose.msra.mxu0 0.0
    %954 = vmatprep.subr.mxu0 0.0
    %955 = vmatpush1.xpose.msra.mxu0 0.0
    %956 = vmatprep.subr.mxu0 0.0
    %957 = vmatpush1.xpose.msra.mxu0 0.0
    %958 = vmatprep.subr.mxu0 0.0
    %959 = vmatpush1.xpose.msra.mxu0 0.0
    %960 = vmatprep.subr.mxu0 0.0
    %961 = vmatpush1.xpose.msra.mxu0 0.0
    %962 = vmatprep.subr.mxu0 0.0
    %963 = vmatpush1.xpose.msra.mxu0 %v930
    %964 = vmatprep.subr.mxu0 0.0
    %965 = vmatpush2.xpose.msra.mxu0 0.0
    %966 = vmatprep.subr.mxu0 0.0
    %967 = vmatpush2.xpose.msra.mxu0 0.0
    %968 = vmatprep.subr.mxu0 0.0
    %969 = vmatpush2.xpose.msra.mxu0 0.0
    %970 = vmatprep.subr.mxu0 0.0
    %971 = vmatpush2.xpose.msra.mxu0 0.0
    %972 = vmatprep.subr.mxu0 0.0
    %973 = vmatpush2.xpose.msra.mxu0 0.0
    %974 = vmatprep.subr.mxu0 0.0
    %975 = vmatpush2.xpose.msra.mxu0 0.0
    %976 = vmatprep.subr.mxu0 0.0
    %977 = vmatpush2.xpose.msra.mxu0 0.0
    %978 = vmatprep.subr.mxu0 0.0
    %979 = vmatpush2.xpose.msra.mxu0 0.0
    %980 = vmatprep.subr.mxu0 0.0
    %981 = vmatpush2.xpose.msra.mxu0 0.0
    %982 = vmatprep.subr.mxu0 0.0
    %983 = vmatpush2.xpose.msra.mxu0 0.0
    %984 = vmatprep.subr.mxu0 0.0
    %985 = vmatpush2.xpose.msra.mxu0 0.0
    %986 = vmatprep.subr.mxu0 0.0
    %987 = vmatpush2.xpose.msra.mxu0 0.0
    %988 = vmatprep.subr.mxu0 0.0
    %989 = vmatpush2.xpose.msra.mxu0 0.0
    %990 = vmatprep.subr.mxu0 0.0
    %991 = vmatpush2.xpose.msra.mxu0 0.0
    %992 = vmatprep.subr.mxu0 0.0
    %993 = vmatpush2.xpose.msra.mxu0 0.0
    %994 = vmatprep.subr.mxu0 0.0
    %995 = vmatpush2.xpose.msra.mxu0 0.0
    %996 = vmatprep.mubr.f32.mxu0 0.0
    %997 = vmatmul.mubr.f32.gmra.mxu0 %v928
    %v998 = vpop.f32.mrf.mxu0
    %v999 = vadd.f32 0.0, %v998
    %v1000 = vpop.f32.mrf.mxu0
    %1001 = vdwg.mxu0
    %v1002 = vsel %vm429, %v999, -inf
    %1003 = vmax.xlane.f32.xlu0 %v1002
    %v1004 = vpop.xlane.xlu0 %1003
    %v1005 = vsub.f32 %v999, %v1004
    %v1006 = vmul.f32 %v1005, 1.442695
    %v1007 = vpow.pop %v1006
    %v1008 = vsel %vm429, %v1007, 0.0
    %1009 = vadd.xlane.f32.xlu0 %v1008
    %v1010 = vpop.xlane.xlu0 %1009
    %v1011 = vrcp.pop %v1010
    %v1012 = vmul.f32 1.0, %v1011
    %1013 = vrot.lane.b32.xlu0 %v421, 104
    %v1014 = vpop.permute.xlu0 %1013
    %v1017 = vsel %vm429, %v1007, 0
    %1019 = vmatprep.subr.mxu0 0.0
    %1020 = vmatpush1.msra.mxu0 0.0
    %1021 = vmatprep.subr.mxu0 0.0
    %1022 = vmatpush1.msra.mxu0 0.0
    %1023 = vmatprep.subr.mxu0 0.0
    %1024 = vmatpush1.msra.mxu0 0.0
    %1025 = vmatprep.subr.mxu0 0.0
    %1026 = vmatpush1.msra.mxu0 0.0
    %1027 = vmatprep.subr.mxu0 0.0
    %1028 = vmatpush1.msra.mxu0 0.0
    %1029 = vmatprep.subr.mxu0 0.0
    %1030 = vmatpush1.msra.mxu0 0.0
    %1031 = vmatprep.subr.mxu0 0.0
    %1032 = vmatpush1.msra.mxu0 0.0
    %1033 = vmatprep.subr.mxu0 0.0
    %1034 = vmatpush1.msra.mxu0 0.0
    %1035 = vmatprep.subr.mxu0 0.0
    %1036 = vmatpush1.msra.mxu0 0.0
    %1037 = vmatprep.subr.mxu0 0.0
    %1038 = vmatpush1.msra.mxu0 0.0
    %1039 = vmatprep.subr.mxu0 0.0
    %1040 = vmatpush1.msra.mxu0 0.0
    %1041 = vmatprep.subr.mxu0 0.0
    %1042 = vmatpush1.msra.mxu0 0.0
    %1043 = vmatprep.subr.mxu0 0.0
    %1044 = vmatpush1.msra.mxu0 0.0
    %1045 = vmatprep.subr.mxu0 0.0
    %1046 = vmatpush1.msra.mxu0 0.0
    %1047 = vmatprep.subr.mxu0 0.0
    %1048 = vmatpush1.msra.mxu0 0.0
    %1049 = vmatprep.subr.mxu0 0.0
    %1050 = vmatpush1.msra.mxu0 %v1014
    %1051 = vmatprep.subr.mxu0 0.0
    %1052 = vmatpush2.msra.mxu0 0.0
    %1053 = vmatprep.subr.mxu0 0.0
    %1054 = vmatpush2.msra.mxu0 0.0
    %1055 = vmatprep.subr.mxu0 0.0
    %1056 = vmatpush2.msra.mxu0 0.0
    %1057 = vmatprep.subr.mxu0 0.0
    %1058 = vmatpush2.msra.mxu0 0.0
    %1059 = vmatprep.subr.mxu0 0.0
    %1060 = vmatpush2.msra.mxu0 0.0
    %1061 = vmatprep.subr.mxu0 0.0
    %1062 = vmatpush2.msra.mxu0 0.0
    %1063 = vmatprep.subr.mxu0 0.0
    %1064 = vmatpush2.msra.mxu0 0.0
    %1065 = vmatprep.subr.mxu0 0.0
    %1066 = vmatpush2.msra.mxu0 0.0
    %1067 = vmatprep.subr.mxu0 0.0
    %1068 = vmatpush2.msra.mxu0 0.0
    %1069 = vmatprep.subr.mxu0 0.0
    %1070 = vmatpush2.msra.mxu0 0.0
    %1071 = vmatprep.subr.mxu0 0.0
    %1072 = vmatpush2.msra.mxu0 0.0
    %1073 = vmatprep.subr.mxu0 0.0
    %1074 = vmatpush2.msra.mxu0 0.0
    %1075 = vmatprep.subr.mxu0 0.0
    %1076 = vmatpush2.msra.mxu0 0.0
    %1077 = vmatprep.subr.mxu0 0.0
    %1078 = vmatpush2.msra.mxu0 0.0
    %1079 = vmatprep.subr.mxu0 0.0
    %1080 = vmatpush2.msra.mxu0 0.0
    %1081 = vmatprep.subr.mxu0 0.0
    %1082 = vmatpush2.msra.mxu0 0.0
    %1083 = vmatprep.mubr.f32.mxu0 0.0
    %1084 = vmatmul.mubr.f32.gmra.mxu0 %v1017
    %v1085 = vpop.f32.mrf.mxu0
    %v1086 = vadd.f32 0.0, %v1085
    %v1087 = vpop.f32.mrf.mxu0
    %1088 = vdwg.mxu0
    %v1089 = vmul.f32 %v1086, %v1012
    %1090 = vrot.lane.b32.xlu0 %v225, 96
    %v1091 = vpop.permute.xlu0 %1090
    %1092 = vrot.lane.b32.xlu0 %v323, 96
    %v1093 = vpop.permute.xlu0 %1092
    %v1094 = vsel %vm429, %v1091, 0
    %v1096 = vsel %vm429, %v1093, 0
    %1098 = vmatprep.subr.mxu0 0.0
    %1099 = vmatpush1.xpose.msra.mxu0 0.0
    %1100 = vmatprep.subr.mxu0 0.0
    %1101 = vmatpush1.xpose.msra.mxu0 0.0
    %1102 = vmatprep.subr.mxu0 0.0
    %1103 = vmatpush1.xpose.msra.mxu0 0.0
    %1104 = vmatprep.subr.mxu0 0.0
    %1105 = vmatpush1.xpose.msra.mxu0 0.0
    %1106 = vmatprep.subr.mxu0 0.0
    %1107 = vmatpush1.xpose.msra.mxu0 0.0
    %1108 = vmatprep.subr.mxu0 0.0
    %1109 = vmatpush1.xpose.msra.mxu0 0.0
    %1110 = vmatprep.subr.mxu0 0.0
    %1111 = vmatpush1.xpose.msra.mxu0 0.0
    %1112 = vmatprep.subr.mxu0 0.0
    %1113 = vmatpush1.xpose.msra.mxu0 0.0
    %1114 = vmatprep.subr.mxu0 0.0
    %1115 = vmatpush1.xpose.msra.mxu0 0.0
    %1116 = vmatprep.subr.mxu0 0.0
    %1117 = vmatpush1.xpose.msra.mxu0 0.0
    %1118 = vmatprep.subr.mxu0 0.0
    %1119 = vmatpush1.xpose.msra.mxu0 0.0
    %1120 = vmatprep.subr.mxu0 0.0
    %1121 = vmatpush1.xpose.msra.mxu0 0.0
    %1122 = vmatprep.subr.mxu0 0.0
    %1123 = vmatpush1.xpose.msra.mxu0 0.0
    %1124 = vmatprep.subr.mxu0 0.0
    %1125 = vmatpush1.xpose.msra.mxu0 0.0
    %1126 = vmatprep.subr.mxu0 0.0
    %1127 = vmatpush1.xpose.msra.mxu0 0.0
    %1128 = vmatprep.subr.mxu0 0.0
    %1129 = vmatpush1.xpose.msra.mxu0 %v1096
    %1130 = vmatprep.subr.mxu0 0.0
    %1131 = vmatpush2.xpose.msra.mxu0 0.0
    %1132 = vmatprep.subr.mxu0 0.0
    %1133 = vmatpush2.xpose.msra.mxu0 0.0
    %1134 = vmatprep.subr.mxu0 0.0
    %1135 = vmatpush2.xpose.msra.mxu0 0.0
    %1136 = vmatprep.subr.mxu0 0.0
    %1137 = vmatpush2.xpose.msra.mxu0 0.0
    %1138 = vmatprep.subr.mxu0 0.0
    %1139 = vmatpush2.xpose.msra.mxu0 0.0
    %1140 = vmatprep.subr.mxu0 0.0
    %1141 = vmatpush2.xpose.msra.mxu0 0.0
    %1142 = vmatprep.subr.mxu0 0.0
    %1143 = vmatpush2.xpose.msra.mxu0 0.0
    %1144 = vmatprep.subr.mxu0 0.0
    %1145 = vmatpush2.xpose.msra.mxu0 0.0
    %1146 = vmatprep.subr.mxu0 0.0
    %1147 = vmatpush2.xpose.msra.mxu0 0.0
    %1148 = vmatprep.subr.mxu0 0.0
    %1149 = vmatpush2.xpose.msra.mxu0 0.0
    %1150 = vmatprep.subr.mxu0 0.0
    %1151 = vmatpush2.xpose.msra.mxu0 0.0
    %1152 = vmatprep.subr.mxu0 0.0
    %1153 = vmatpush2.xpose.msra.mxu0 0.0
    %1154 = vmatprep.subr.mxu0 0.0
    %1155 = vmatpush2.xpose.msra.mxu0 0.0
    %1156 = vmatprep.subr.mxu0 0.0
    %1157 = vmatpush2.xpose.msra.mxu0 0.0
    %1158 = vmatprep.subr.mxu0 0.0
    %1159 = vmatpush2.xpose.msra.mxu0 0.0
    %1160 = vmatprep.subr.mxu0 0.0
    %1161 = vmatpush2.xpose.msra.mxu0 0.0
    %1162 = vmatprep.mubr.f32.mxu0 0.0
    %1163 = vmatmul.mubr.f32.gmra.mxu0 %v1094
    %v1164 = vpop.f32.mrf.mxu0
    %v1165 = vadd.f32 0.0, %v1164
    %v1166 = vpop.f32.mrf.mxu0
    %1167 = vdwg.mxu0
    %v1168 = vsel %vm429, %v1165, -inf
    %1169 = vmax.xlane.f32.xlu0 %v1168
    %v1170 = vpop.xlane.xlu0 %1169
    %v1171 = vsub.f32 %v1165, %v1170
    %v1172 = vmul.f32 %v1171, 1.442695
    %v1173 = vpow.pop %v1172
    %v1174 = vsel %vm429, %v1173, 0.0
    %1175 = vadd.xlane.f32.xlu0 %v1174
    %v1176 = vpop.xlane.xlu0 %1175
    %v1177 = vrcp.pop %v1176
    %v1178 = vmul.f32 1.0, %v1177
    %1179 = vrot.lane.b32.xlu0 %v421, 96
    %v1180 = vpop.permute.xlu0 %1179
    %v1183 = vsel %vm429, %v1173, 0
    %1185 = vmatprep.subr.mxu0 0.0
    %1186 = vmatpush1.msra.mxu0 0.0
    %1187 = vmatprep.subr.mxu0 0.0
    %1188 = vmatpush1.msra.mxu0 0.0
    %1189 = vmatprep.subr.mxu0 0.0
    %1190 = vmatpush1.msra.mxu0 0.0
    %1191 = vmatprep.subr.mxu0 0.0
    %1192 = vmatpush1.msra.mxu0 0.0
    %1193 = vmatprep.subr.mxu0 0.0
    %1194 = vmatpush1.msra.mxu0 0.0
    %1195 = vmatprep.subr.mxu0 0.0
    %1196 = vmatpush1.msra.mxu0 0.0
    %1197 = vmatprep.subr.mxu0 0.0
    %1198 = vmatpush1.msra.mxu0 0.0
    %1199 = vmatprep.subr.mxu0 0.0
    %1200 = vmatpush1.msra.mxu0 0.0
    %1201 = vmatprep.subr.mxu0 0.0
    %1202 = vmatpush1.msra.mxu0 0.0
    %1203 = vmatprep.subr.mxu0 0.0
    %1204 = vmatpush1.msra.mxu0 0.0
    %1205 = vmatprep.subr.mxu0 0.0
    %1206 = vmatpush1.msra.mxu0 0.0
    %1207 = vmatprep.subr.mxu0 0.0
    %1208 = vmatpush1.msra.mxu0 0.0
    %1209 = vmatprep.subr.mxu0 0.0
    %1210 = vmatpush1.msra.mxu0 0.0
    %1211 = vmatprep.subr.mxu0 0.0
    %1212 = vmatpush1.msra.mxu0 0.0
    %1213 = vmatprep.subr.mxu0 0.0
    %1214 = vmatpush1.msra.mxu0 0.0
    %1215 = vmatprep.subr.mxu0 0.0
    %1216 = vmatpush1.msra.mxu0 %v1180
    %1217 = vmatprep.subr.mxu0 0.0
    %1218 = vmatpush2.msra.mxu0 0.0
    %1219 = vmatprep.subr.mxu0 0.0
    %1220 = vmatpush2.msra.mxu0 0.0
    %1221 = vmatprep.subr.mxu0 0.0
    %1222 = vmatpush2.msra.mxu0 0.0
    %1223 = vmatprep.subr.mxu0 0.0
    %1224 = vmatpush2.msra.mxu0 0.0
    %1225 = vmatprep.subr.mxu0 0.0
    %1226 = vmatpush2.msra.mxu0 0.0
    %1227 = vmatprep.subr.mxu0 0.0
    %1228 = vmatpush2.msra.mxu0 0.0
    %1229 = vmatprep.subr.mxu0 0.0
    %1230 = vmatpush2.msra.mxu0 0.0
    %1231 = vmatprep.subr.mxu0 0.0
    %1232 = vmatpush2.msra.mxu0 0.0
    %1233 = vmatprep.subr.mxu0 0.0
    %1234 = vmatpush2.msra.mxu0 0.0
    %1235 = vmatprep.subr.mxu0 0.0
    %1236 = vmatpush2.msra.mxu0 0.0
    %1237 = vmatprep.subr.mxu0 0.0
    %1238 = vmatpush2.msra.mxu0 0.0
    %1239 = vmatprep.subr.mxu0 0.0
    %1240 = vmatpush2.msra.mxu0 0.0
    %1241 = vmatprep.subr.mxu0 0.0
    %1242 = vmatpush2.msra.mxu0 0.0
    %1243 = vmatprep.subr.mxu0 0.0
    %1244 = vmatpush2.msra.mxu0 0.0
    %1245 = vmatprep.subr.mxu0 0.0
    %1246 = vmatpush2.msra.mxu0 0.0
    %1247 = vmatprep.subr.mxu0 0.0
    %1248 = vmatpush2.msra.mxu0 0.0
    %1249 = vmatprep.mubr.f32.mxu0 0.0
    %1250 = vmatmul.mubr.f32.gmra.mxu0 %v1183
    %v1251 = vpop.f32.mrf.mxu0
    %v1252 = vadd.f32 0.0, %v1251
    %v1253 = vpop.f32.mrf.mxu0
    %1254 = vdwg.mxu0
    %v1255 = vmul.f32 %v1252, %v1178
    %1256 = vrot.lane.b32.xlu0 %v225, 88
    %v1257 = vpop.permute.xlu0 %1256
    %1258 = vrot.lane.b32.xlu0 %v323, 88
    %v1259 = vpop.permute.xlu0 %1258
    %v1260 = vsel %vm429, %v1257, 0
    %v1262 = vsel %vm429, %v1259, 0
    %1264 = vmatprep.subr.mxu0 0.0
    %1265 = vmatpush1.xpose.msra.mxu0 0.0
    %1266 = vmatprep.subr.mxu0 0.0
    %1267 = vmatpush1.xpose.msra.mxu0 0.0
    %1268 = vmatprep.subr.mxu0 0.0
    %1269 = vmatpush1.xpose.msra.mxu0 0.0
    %1270 = vmatprep.subr.mxu0 0.0
    %1271 = vmatpush1.xpose.msra.mxu0 0.0
    %1272 = vmatprep.subr.mxu0 0.0
    %1273 = vmatpush1.xpose.msra.mxu0 0.0
    %1274 = vmatprep.subr.mxu0 0.0
    %1275 = vmatpush1.xpose.msra.mxu0 0.0
    %1276 = vmatprep.subr.mxu0 0.0
    %1277 = vmatpush1.xpose.msra.mxu0 0.0
    %1278 = vmatprep.subr.mxu0 0.0
    %1279 = vmatpush1.xpose.msra.mxu0 0.0
    %1280 = vmatprep.subr.mxu0 0.0
    %1281 = vmatpush1.xpose.msra.mxu0 0.0
    %1282 = vmatprep.subr.mxu0 0.0
    %1283 = vmatpush1.xpose.msra.mxu0 0.0
    %1284 = vmatprep.subr.mxu0 0.0
    %1285 = vmatpush1.xpose.msra.mxu0 0.0
    %1286 = vmatprep.subr.mxu0 0.0
    %1287 = vmatpush1.xpose.msra.mxu0 0.0
    %1288 = vmatprep.subr.mxu0 0.0
    %1289 = vmatpush1.xpose.msra.mxu0 0.0
    %1290 = vmatprep.subr.mxu0 0.0
    %1291 = vmatpush1.xpose.msra.mxu0 0.0
    %1292 = vmatprep.subr.mxu0 0.0
    %1293 = vmatpush1.xpose.msra.mxu0 0.0
    %1294 = vmatprep.subr.mxu0 0.0
    %1295 = vmatpush1.xpose.msra.mxu0 %v1262
    %1296 = vmatprep.subr.mxu0 0.0
    %1297 = vmatpush2.xpose.msra.mxu0 0.0
    %1298 = vmatprep.subr.mxu0 0.0
    %1299 = vmatpush2.xpose.msra.mxu0 0.0
    %1300 = vmatprep.subr.mxu0 0.0
    %1301 = vmatpush2.xpose.msra.mxu0 0.0
    %1302 = vmatprep.subr.mxu0 0.0
    %1303 = vmatpush2.xpose.msra.mxu0 0.0
    %1304 = vmatprep.subr.mxu0 0.0
    %1305 = vmatpush2.xpose.msra.mxu0 0.0
    %1306 = vmatprep.subr.mxu0 0.0
    %1307 = vmatpush2.xpose.msra.mxu0 0.0
    %1308 = vmatprep.subr.mxu0 0.0
    %1309 = vmatpush2.xpose.msra.mxu0 0.0
    %1310 = vmatprep.subr.mxu0 0.0
    %1311 = vmatpush2.xpose.msra.mxu0 0.0
    %1312 = vmatprep.subr.mxu0 0.0
    %1313 = vmatpush2.xpose.msra.mxu0 0.0
    %1314 = vmatprep.subr.mxu0 0.0
    %1315 = vmatpush2.xpose.msra.mxu0 0.0
    %1316 = vmatprep.subr.mxu0 0.0
    %1317 = vmatpush2.xpose.msra.mxu0 0.0
    %1318 = vmatprep.subr.mxu0 0.0
    %1319 = vmatpush2.xpose.msra.mxu0 0.0
    %1320 = vmatprep.subr.mxu0 0.0
    %1321 = vmatpush2.xpose.msra.mxu0 0.0
    %1322 = vmatprep.subr.mxu0 0.0
    %1323 = vmatpush2.xpose.msra.mxu0 0.0
    %1324 = vmatprep.subr.mxu0 0.0
    %1325 = vmatpush2.xpose.msra.mxu0 0.0
    %1326 = vmatprep.subr.mxu0 0.0
    %1327 = vmatpush2.xpose.msra.mxu0 0.0
    %1328 = vmatprep.mubr.f32.mxu0 0.0
    %1329 = vmatmul.mubr.f32.gmra.mxu0 %v1260
    %v1330 = vpop.f32.mrf.mxu0
    %v1331 = vadd.f32 0.0, %v1330
    %v1332 = vpop.f32.mrf.mxu0
    %1333 = vdwg.mxu0
    %v1334 = vsel %vm429, %v1331, -inf
    %1335 = vmax.xlane.f32.xlu0 %v1334
    %v1336 = vpop.xlane.xlu0 %1335
    %v1337 = vsub.f32 %v1331, %v1336
    %v1338 = vmul.f32 %v1337, 1.442695
    %v1339 = vpow.pop %v1338
    %v1340 = vsel %vm429, %v1339, 0.0
    %1341 = vadd.xlane.f32.xlu0 %v1340
    %v1342 = vpop.xlane.xlu0 %1341
    %v1343 = vrcp.pop %v1342
    %v1344 = vmul.f32 1.0, %v1343
    %1345 = vrot.lane.b32.xlu0 %v421, 88
    %v1346 = vpop.permute.xlu0 %1345
    %v1349 = vsel %vm429, %v1339, 0
    %1351 = vmatprep.subr.mxu0 0.0
    %1352 = vmatpush1.msra.mxu0 0.0
    %1353 = vmatprep.subr.mxu0 0.0
    %1354 = vmatpush1.msra.mxu0 0.0
    %1355 = vmatprep.subr.mxu0 0.0
    %1356 = vmatpush1.msra.mxu0 0.0
    %1357 = vmatprep.subr.mxu0 0.0
    %1358 = vmatpush1.msra.mxu0 0.0
    %1359 = vmatprep.subr.mxu0 0.0
    %1360 = vmatpush1.msra.mxu0 0.0
    %1361 = vmatprep.subr.mxu0 0.0
    %1362 = vmatpush1.msra.mxu0 0.0
    %1363 = vmatprep.subr.mxu0 0.0
    %1364 = vmatpush1.msra.mxu0 0.0
    %1365 = vmatprep.subr.mxu0 0.0
    %1366 = vmatpush1.msra.mxu0 0.0
    %1367 = vmatprep.subr.mxu0 0.0
    %1368 = vmatpush1.msra.mxu0 0.0
    %1369 = vmatprep.subr.mxu0 0.0
    %1370 = vmatpush1.msra.mxu0 0.0
    %1371 = vmatprep.subr.mxu0 0.0
    %1372 = vmatpush1.msra.mxu0 0.0
    %1373 = vmatprep.subr.mxu0 0.0
    %1374 = vmatpush1.msra.mxu0 0.0
    %1375 = vmatprep.subr.mxu0 0.0
    %1376 = vmatpush1.msra.mxu0 0.0
    %1377 = vmatprep.subr.mxu0 0.0
    %1378 = vmatpush1.msra.mxu0 0.0
    %1379 = vmatprep.subr.mxu0 0.0
    %1380 = vmatpush1.msra.mxu0 0.0
    %1381 = vmatprep.subr.mxu0 0.0
    %1382 = vmatpush1.msra.mxu0 %v1346
    %1383 = vmatprep.subr.mxu0 0.0
    %1384 = vmatpush2.msra.mxu0 0.0
    %1385 = vmatprep.subr.mxu0 0.0
    %1386 = vmatpush2.msra.mxu0 0.0
    %1387 = vmatprep.subr.mxu0 0.0
    %1388 = vmatpush2.msra.mxu0 0.0
    %1389 = vmatprep.subr.mxu0 0.0
    %1390 = vmatpush2.msra.mxu0 0.0
    %1391 = vmatprep.subr.mxu0 0.0
    %1392 = vmatpush2.msra.mxu0 0.0
    %1393 = vmatprep.subr.mxu0 0.0
    %1394 = vmatpush2.msra.mxu0 0.0
    %1395 = vmatprep.subr.mxu0 0.0
    %1396 = vmatpush2.msra.mxu0 0.0
    %1397 = vmatprep.subr.mxu0 0.0
    %1398 = vmatpush2.msra.mxu0 0.0
    %1399 = vmatprep.subr.mxu0 0.0
    %1400 = vmatpush2.msra.mxu0 0.0
    %1401 = vmatprep.subr.mxu0 0.0
    %1402 = vmatpush2.msra.mxu0 0.0
    %1403 = vmatprep.subr.mxu0 0.0
    %1404 = vmatpush2.msra.mxu0 0.0
    %1405 = vmatprep.subr.mxu0 0.0
    %1406 = vmatpush2.msra.mxu0 0.0
    %1407 = vmatprep.subr.mxu0 0.0
    %1408 = vmatpush2.msra.mxu0 0.0
    %1409 = vmatprep.subr.mxu0 0.0
    %1410 = vmatpush2.msra.mxu0 0.0
    %1411 = vmatprep.subr.mxu0 0.0
    %1412 = vmatpush2.msra.mxu0 0.0
    %1413 = vmatprep.subr.mxu0 0.0
    %1414 = vmatpush2.msra.mxu0 0.0
    %1415 = vmatprep.mubr.f32.mxu0 0.0
    %1416 = vmatmul.mubr.f32.gmra.mxu0 %v1349
    %v1417 = vpop.f32.mrf.mxu0
    %v1418 = vadd.f32 0.0, %v1417
    %v1419 = vpop.f32.mrf.mxu0
    %1420 = vdwg.mxu0
    %v1421 = vmul.f32 %v1418, %v1344
    %1422 = vrot.lane.b32.xlu0 %v225, 80
    %v1423 = vpop.permute.xlu0 %1422
    %1424 = vrot.lane.b32.xlu0 %v323, 80
    %v1425 = vpop.permute.xlu0 %1424
    %v1426 = vsel %vm429, %v1423, 0
    %v1428 = vsel %vm429, %v1425, 0
    %1430 = vmatprep.subr.mxu0 0.0
    %1431 = vmatpush1.xpose.msra.mxu0 0.0
    %1432 = vmatprep.subr.mxu0 0.0
    %1433 = vmatpush1.xpose.msra.mxu0 0.0
    %1434 = vmatprep.subr.mxu0 0.0
    %1435 = vmatpush1.xpose.msra.mxu0 0.0
    %1436 = vmatprep.subr.mxu0 0.0
    %1437 = vmatpush1.xpose.msra.mxu0 0.0
    %1438 = vmatprep.subr.mxu0 0.0
    %1439 = vmatpush1.xpose.msra.mxu0 0.0
    %1440 = vmatprep.subr.mxu0 0.0
    %1441 = vmatpush1.xpose.msra.mxu0 0.0
    %1442 = vmatprep.subr.mxu0 0.0
    %1443 = vmatpush1.xpose.msra.mxu0 0.0
    %1444 = vmatprep.subr.mxu0 0.0
    %1445 = vmatpush1.xpose.msra.mxu0 0.0
    %1446 = vmatprep.subr.mxu0 0.0
    %1447 = vmatpush1.xpose.msra.mxu0 0.0
    %1448 = vmatprep.subr.mxu0 0.0
    %1449 = vmatpush1.xpose.msra.mxu0 0.0
    %1450 = vmatprep.subr.mxu0 0.0
    %1451 = vmatpush1.xpose.msra.mxu0 0.0
    %1452 = vmatprep.subr.mxu0 0.0
    %1453 = vmatpush1.xpose.msra.mxu0 0.0
    %1454 = vmatprep.subr.mxu0 0.0
    %1455 = vmatpush1.xpose.msra.mxu0 0.0
    %1456 = vmatprep.subr.mxu0 0.0
    %1457 = vmatpush1.xpose.msra.mxu0 0.0
    %1458 = vmatprep.subr.mxu0 0.0
    %1459 = vmatpush1.xpose.msra.mxu0 0.0
    %1460 = vmatprep.subr.mxu0 0.0
    %1461 = vmatpush1.xpose.msra.mxu0 %v1428
    %1462 = vmatprep.subr.mxu0 0.0
    %1463 = vmatpush2.xpose.msra.mxu0 0.0
    %1464 = vmatprep.subr.mxu0 0.0
    %1465 = vmatpush2.xpose.msra.mxu0 0.0
    %1466 = vmatprep.subr.mxu0 0.0
    %1467 = vmatpush2.xpose.msra.mxu0 0.0
    %1468 = vmatprep.subr.mxu0 0.0
    %1469 = vmatpush2.xpose.msra.mxu0 0.0
    %1470 = vmatprep.subr.mxu0 0.0
    %1471 = vmatpush2.xpose.msra.mxu0 0.0
    %1472 = vmatprep.subr.mxu0 0.0
    %1473 = vmatpush2.xpose.msra.mxu0 0.0
    %1474 = vmatprep.subr.mxu0 0.0
    %1475 = vmatpush2.xpose.msra.mxu0 0.0
    %1476 = vmatprep.subr.mxu0 0.0
    %1477 = vmatpush2.xpose.msra.mxu0 0.0
    %1478 = vmatprep.subr.mxu0 0.0
    %1479 = vmatpush2.xpose.msra.mxu0 0.0
    %1480 = vmatprep.subr.mxu0 0.0
    %1481 = vmatpush2.xpose.msra.mxu0 0.0
    %1482 = vmatprep.subr.mxu0 0.0
    %1483 = vmatpush2.xpose.msra.mxu0 0.0
    %1484 = vmatprep.subr.mxu0 0.0
    %1485 = vmatpush2.xpose.msra.mxu0 0.0
    %1486 = vmatprep.subr.mxu0 0.0
    %1487 = vmatpush2.xpose.msra.mxu0 0.0
    %1488 = vmatprep.subr.mxu0 0.0
    %1489 = vmatpush2.xpose.msra.mxu0 0.0
    %1490 = vmatprep.subr.mxu0 0.0
    %1491 = vmatpush2.xpose.msra.mxu0 0.0
    %1492 = vmatprep.subr.mxu0 0.0
    %1493 = vmatpush2.xpose.msra.mxu0 0.0
    %1494 = vmatprep.mubr.f32.mxu0 0.0
    %1495 = vmatmul.mubr.f32.gmra.mxu0 %v1426
    %v1496 = vpop.f32.mrf.mxu0
    %v1497 = vadd.f32 0.0, %v1496
    %v1498 = vpop.f32.mrf.mxu0
    %1499 = vdwg.mxu0
    %v1500 = vsel %vm429, %v1497, -inf
    %1501 = vmax.xlane.f32.xlu0 %v1500
    %v1502 = vpop.xlane.xlu0 %1501
    %v1503 = vsub.f32 %v1497, %v1502
    %v1504 = vmul.f32 %v1503, 1.442695
    %v1505 = vpow.pop %v1504
    %v1506 = vsel %vm429, %v1505, 0.0
    %1507 = vadd.xlane.f32.xlu0 %v1506
    %v1508 = vpop.xlane.xlu0 %1507
    %v1509 = vrcp.pop %v1508
    %v1510 = vmul.f32 1.0, %v1509
    %1511 = vrot.lane.b32.xlu0 %v421, 80
    %v1512 = vpop.permute.xlu0 %1511
    %v1515 = vsel %vm429, %v1505, 0
    %1517 = vmatprep.subr.mxu0 0.0
    %1518 = vmatpush1.msra.mxu0 0.0
    %1519 = vmatprep.subr.mxu0 0.0
    %1520 = vmatpush1.msra.mxu0 0.0
    %1521 = vmatprep.subr.mxu0 0.0
    %1522 = vmatpush1.msra.mxu0 0.0
    %1523 = vmatprep.subr.mxu0 0.0
    %1524 = vmatpush1.msra.mxu0 0.0
    %1525 = vmatprep.subr.mxu0 0.0
    %1526 = vmatpush1.msra.mxu0 0.0
    %1527 = vmatprep.subr.mxu0 0.0
    %1528 = vmatpush1.msra.mxu0 0.0
    %1529 = vmatprep.subr.mxu0 0.0
    %1530 = vmatpush1.msra.mxu0 0.0
    %1531 = vmatprep.subr.mxu0 0.0
    %1532 = vmatpush1.msra.mxu0 0.0
    %1533 = vmatprep.subr.mxu0 0.0
    %1534 = vmatpush1.msra.mxu0 0.0
    %1535 = vmatprep.subr.mxu0 0.0
    %1536 = vmatpush1.msra.mxu0 0.0
    %1537 = vmatprep.subr.mxu0 0.0
    %1538 = vmatpush1.msra.mxu0 0.0
    %1539 = vmatprep.subr.mxu0 0.0
    %1540 = vmatpush1.msra.mxu0 0.0
    %1541 = vmatprep.subr.mxu0 0.0
    %1542 = vmatpush1.msra.mxu0 0.0
    %1543 = vmatprep.subr.mxu0 0.0
    %1544 = vmatpush1.msra.mxu0 0.0
    %1545 = vmatprep.subr.mxu0 0.0
    %1546 = vmatpush1.msra.mxu0 0.0
    %1547 = vmatprep.subr.mxu0 0.0
    %1548 = vmatpush1.msra.mxu0 %v1512
    %1549 = vmatprep.subr.mxu0 0.0
    %1550 = vmatpush2.msra.mxu0 0.0
    %1551 = vmatprep.subr.mxu0 0.0
    %1552 = vmatpush2.msra.mxu0 0.0
    %1553 = vmatprep.subr.mxu0 0.0
    %1554 = vmatpush2.msra.mxu0 0.0
    %1555 = vmatprep.subr.mxu0 0.0
    %1556 = vmatpush2.msra.mxu0 0.0
    %1557 = vmatprep.subr.mxu0 0.0
    %1558 = vmatpush2.msra.mxu0 0.0
    %1559 = vmatprep.subr.mxu0 0.0
    %1560 = vmatpush2.msra.mxu0 0.0
    %1561 = vmatprep.subr.mxu0 0.0
    %1562 = vmatpush2.msra.mxu0 0.0
    %1563 = vmatprep.subr.mxu0 0.0
    %1564 = vmatpush2.msra.mxu0 0.0
    %1565 = vmatprep.subr.mxu0 0.0
    %1566 = vmatpush2.msra.mxu0 0.0
    %1567 = vmatprep.subr.mxu0 0.0
    %1568 = vmatpush2.msra.mxu0 0.0
    %1569 = vmatprep.subr.mxu0 0.0
    %1570 = vmatpush2.msra.mxu0 0.0
    %1571 = vmatprep.subr.mxu0 0.0
    %1572 = vmatpush2.msra.mxu0 0.0
    %1573 = vmatprep.subr.mxu0 0.0
    %1574 = vmatpush2.msra.mxu0 0.0
    %1575 = vmatprep.subr.mxu0 0.0
    %1576 = vmatpush2.msra.mxu0 0.0
    %1577 = vmatprep.subr.mxu0 0.0
    %1578 = vmatpush2.msra.mxu0 0.0
    %1579 = vmatprep.subr.mxu0 0.0
    %1580 = vmatpush2.msra.mxu0 0.0
    %1581 = vmatprep.mubr.f32.mxu0 0.0
    %1582 = vmatmul.mubr.f32.gmra.mxu0 %v1515
    %v1583 = vpop.f32.mrf.mxu0
    %v1584 = vadd.f32 0.0, %v1583
    %v1585 = vpop.f32.mrf.mxu0
    %1586 = vdwg.mxu0
    %v1587 = vmul.f32 %v1584, %v1510
    %1588 = vrot.lane.b32.xlu0 %v225, 72
    %v1589 = vpop.permute.xlu0 %1588
    %1590 = vrot.lane.b32.xlu0 %v323, 72
    %v1591 = vpop.permute.xlu0 %1590
    %v1592 = vsel %vm429, %v1589, 0
    %v1594 = vsel %vm429, %v1591, 0
    %1596 = vmatprep.subr.mxu0 0.0
    %1597 = vmatpush1.xpose.msra.mxu0 0.0
    %1598 = vmatprep.subr.mxu0 0.0
    %1599 = vmatpush1.xpose.msra.mxu0 0.0
    %1600 = vmatprep.subr.mxu0 0.0
    %1601 = vmatpush1.xpose.msra.mxu0 0.0
    %1602 = vmatprep.subr.mxu0 0.0
    %1603 = vmatpush1.xpose.msra.mxu0 0.0
    %1604 = vmatprep.subr.mxu0 0.0
    %1605 = vmatpush1.xpose.msra.mxu0 0.0
    %1606 = vmatprep.subr.mxu0 0.0
    %1607 = vmatpush1.xpose.msra.mxu0 0.0
    %1608 = vmatprep.subr.mxu0 0.0
    %1609 = vmatpush1.xpose.msra.mxu0 0.0
    %1610 = vmatprep.subr.mxu0 0.0
    %1611 = vmatpush1.xpose.msra.mxu0 0.0
    %1612 = vmatprep.subr.mxu0 0.0
    %1613 = vmatpush1.xpose.msra.mxu0 0.0
    %1614 = vmatprep.subr.mxu0 0.0
    %1615 = vmatpush1.xpose.msra.mxu0 0.0
    %1616 = vmatprep.subr.mxu0 0.0
    %1617 = vmatpush1.xpose.msra.mxu0 0.0
    %1618 = vmatprep.subr.mxu0 0.0
    %1619 = vmatpush1.xpose.msra.mxu0 0.0
    %1620 = vmatprep.subr.mxu0 0.0
    %1621 = vmatpush1.xpose.msra.mxu0 0.0
    %1622 = vmatprep.subr.mxu0 0.0
    %1623 = vmatpush1.xpose.msra.mxu0 0.0
    %1624 = vmatprep.subr.mxu0 0.0
    %1625 = vmatpush1.xpose.msra.mxu0 0.0
    %1626 = vmatprep.subr.mxu0 0.0
    %1627 = vmatpush1.xpose.msra.mxu0 %v1594
    %1628 = vmatprep.subr.mxu0 0.0
    %1629 = vmatpush2.xpose.msra.mxu0 0.0
    %1630 = vmatprep.subr.mxu0 0.0
    %1631 = vmatpush2.xpose.msra.mxu0 0.0
    %1632 = vmatprep.subr.mxu0 0.0
    %1633 = vmatpush2.xpose.msra.mxu0 0.0
    %1634 = vmatprep.subr.mxu0 0.0
    %1635 = vmatpush2.xpose.msra.mxu0 0.0
    %1636 = vmatprep.subr.mxu0 0.0
    %1637 = vmatpush2.xpose.msra.mxu0 0.0
    %1638 = vmatprep.subr.mxu0 0.0
    %1639 = vmatpush2.xpose.msra.mxu0 0.0
    %1640 = vmatprep.subr.mxu0 0.0
    %1641 = vmatpush2.xpose.msra.mxu0 0.0
    %1642 = vmatprep.subr.mxu0 0.0
    %1643 = vmatpush2.xpose.msra.mxu0 0.0
    %1644 = vmatprep.subr.mxu0 0.0
    %1645 = vmatpush2.xpose.msra.mxu0 0.0
    %1646 = vmatprep.subr.mxu0 0.0
    %1647 = vmatpush2.xpose.msra.mxu0 0.0
    %1648 = vmatprep.subr.mxu0 0.0
    %1649 = vmatpush2.xpose.msra.mxu0 0.0
    %1650 = vmatprep.subr.mxu0 0.0
    %1651 = vmatpush2.xpose.msra.mxu0 0.0
    %1652 = vmatprep.subr.mxu0 0.0
    %1653 = vmatpush2.xpose.msra.mxu0 0.0
    %1654 = vmatprep.subr.mxu0 0.0
    %1655 = vmatpush2.xpose.msra.mxu0 0.0
    %1656 = vmatprep.subr.mxu0 0.0
    %1657 = vmatpush2.xpose.msra.mxu0 0.0
    %1658 = vmatprep.subr.mxu0 0.0
    %1659 = vmatpush2.xpose.msra.mxu0 0.0
    %1660 = vmatprep.mubr.f32.mxu0 0.0
    %1661 = vmatmul.mubr.f32.gmra.mxu0 %v1592
    %v1662 = vpop.f32.mrf.mxu0
    %v1663 = vadd.f32 0.0, %v1662
    %v1664 = vpop.f32.mrf.mxu0
    %1665 = vdwg.mxu0
    %v1666 = vsel %vm429, %v1663, -inf
    %1667 = vmax.xlane.f32.xlu0 %v1666
    %v1668 = vpop.xlane.xlu0 %1667
    %v1669 = vsub.f32 %v1663, %v1668
    %v1670 = vmul.f32 %v1669, 1.442695
    %v1671 = vpow.pop %v1670
    %v1672 = vsel %vm429, %v1671, 0.0
    %1673 = vadd.xlane.f32.xlu0 %v1672
    %v1674 = vpop.xlane.xlu0 %1673
    %v1675 = vrcp.pop %v1674
    %v1676 = vmul.f32 1.0, %v1675
    %1677 = vrot.lane.b32.xlu0 %v421, 72
    %v1678 = vpop.permute.xlu0 %1677
    %v1681 = vsel %vm429, %v1671, 0
    %1683 = vmatprep.subr.mxu0 0.0
    %1684 = vmatpush1.msra.mxu0 0.0
    %1685 = vmatprep.subr.mxu0 0.0
    %1686 = vmatpush1.msra.mxu0 0.0
    %1687 = vmatprep.subr.mxu0 0.0
    %1688 = vmatpush1.msra.mxu0 0.0
    %1689 = vmatprep.subr.mxu0 0.0
    %1690 = vmatpush1.msra.mxu0 0.0
    %1691 = vmatprep.subr.mxu0 0.0
    %1692 = vmatpush1.msra.mxu0 0.0
    %1693 = vmatprep.subr.mxu0 0.0
    %1694 = vmatpush1.msra.mxu0 0.0
    %1695 = vmatprep.subr.mxu0 0.0
    %1696 = vmatpush1.msra.mxu0 0.0
    %1697 = vmatprep.subr.mxu0 0.0
    %1698 = vmatpush1.msra.mxu0 0.0
    %1699 = vmatprep.subr.mxu0 0.0
    %1700 = vmatpush1.msra.mxu0 0.0
    %1701 = vmatprep.subr.mxu0 0.0
    %1702 = vmatpush1.msra.mxu0 0.0
    %1703 = vmatprep.subr.mxu0 0.0
    %1704 = vmatpush1.msra.mxu0 0.0
    %1705 = vmatprep.subr.mxu0 0.0
    %1706 = vmatpush1.msra.mxu0 0.0
    %1707 = vmatprep.subr.mxu0 0.0
    %1708 = vmatpush1.msra.mxu0 0.0
    %1709 = vmatprep.subr.mxu0 0.0
    %1710 = vmatpush1.msra.mxu0 0.0
    %1711 = vmatprep.subr.mxu0 0.0
    %1712 = vmatpush1.msra.mxu0 0.0
    %1713 = vmatprep.subr.mxu0 0.0
    %1714 = vmatpush1.msra.mxu0 %v1678
    %1715 = vmatprep.subr.mxu0 0.0
    %1716 = vmatpush2.msra.mxu0 0.0
    %1717 = vmatprep.subr.mxu0 0.0
    %1718 = vmatpush2.msra.mxu0 0.0
    %1719 = vmatprep.subr.mxu0 0.0
    %1720 = vmatpush2.msra.mxu0 0.0
    %1721 = vmatprep.subr.mxu0 0.0
    %1722 = vmatpush2.msra.mxu0 0.0
    %1723 = vmatprep.subr.mxu0 0.0
    %1724 = vmatpush2.msra.mxu0 0.0
    %1725 = vmatprep.subr.mxu0 0.0
    %1726 = vmatpush2.msra.mxu0 0.0
    %1727 = vmatprep.subr.mxu0 0.0
    %1728 = vmatpush2.msra.mxu0 0.0
    %1729 = vmatprep.subr.mxu0 0.0
    %1730 = vmatpush2.msra.mxu0 0.0
    %1731 = vmatprep.subr.mxu0 0.0
    %1732 = vmatpush2.msra.mxu0 0.0
    %1733 = vmatprep.subr.mxu0 0.0
    %1734 = vmatpush2.msra.mxu0 0.0
    %1735 = vmatprep.subr.mxu0 0.0
    %1736 = vmatpush2.msra.mxu0 0.0
    %1737 = vmatprep.subr.mxu0 0.0
    %1738 = vmatpush2.msra.mxu0 0.0
    %1739 = vmatprep.subr.mxu0 0.0
    %1740 = vmatpush2.msra.mxu0 0.0
    %1741 = vmatprep.subr.mxu0 0.0
    %1742 = vmatpush2.msra.mxu0 0.0
    %1743 = vmatprep.subr.mxu0 0.0
    %1744 = vmatpush2.msra.mxu0 0.0
    %1745 = vmatprep.subr.mxu0 0.0
    %1746 = vmatpush2.msra.mxu0 0.0
    %1747 = vmatprep.mubr.f32.mxu0 0.0
    %1748 = vmatmul.mubr.f32.gmra.mxu0 %v1681
    %v1749 = vpop.f32.mrf.mxu0
    %v1750 = vadd.f32 0.0, %v1749
    %v1751 = vpop.f32.mrf.mxu0
    %1752 = vdwg.mxu0
    %v1753 = vmul.f32 %v1750, %v1676
    %1755 = vrot.lane.b32.xlu0 %v757, 8
    %v1756 = vpop.permute.xlu0 %1755
    %1759 = vrot.lane.b32.xlu0 %v923, 16
    %v1760 = vpop.permute.xlu0 %1759
    %1763 = vrot.lane.b32.xlu0 %v1089, 24
    %v1764 = vpop.permute.xlu0 %1763
    %1767 = vrot.lane.b32.xlu0 %v1255, 32
    %v1768 = vpop.permute.xlu0 %1767
    %1771 = vrot.lane.b32.xlu0 %v1421, 40
    %v1772 = vpop.permute.xlu0 %1771
    %1775 = vrot.lane.b32.xlu0 %v1587, 48
    %v1776 = vpop.permute.xlu0 %1775
    %1779 = vrot.lane.b32.xlu0 %v1753, 56
    %v1780 = vpop.permute.xlu0 %1779
    %v1782 = vsel %vm429, %v590, %v1756
    %vm1783 = vcmask 130048
    %v1784 = vsel %vm1783, %v1782, %v1760
    %vm1785 = vcmask 195584
    %v1786 = vsel %vm1785, %v1784, %v1764
    %vm1787 = vcmask 261120
    %v1788 = vsel %vm1787, %v1786, %v1768
    %vm1789 = vcmask 326656
    %v1790 = vsel %vm1789, %v1788, %v1772
    %vm1791 = vcmask 392192
    %v1792 = vsel %vm1791, %v1790, %v1776
    %vm1793 = vcmask 457728
    %v1794 = vsel %vm1793, %v1792, %v1780
    %v1796 = vsel %vm429, %v230, 0
    %v1799 = vsel %vm429, %v328, 0
    %1801 = vmatprep.subr.mxu0 0.0
    %1802 = vmatpush1.xpose.msra.mxu0 0.0
    %1803 = vmatprep.subr.mxu0 0.0
    %1804 = vmatpush1.xpose.msra.mxu0 0.0
    %1805 = vmatprep.subr.mxu0 0.0
    %1806 = vmatpush1.xpose.msra.mxu0 0.0
    %1807 = vmatprep.subr.mxu0 0.0
    %1808 = vmatpush1.xpose.msra.mxu0 0.0
    %1809 = vmatprep.subr.mxu0 0.0
    %1810 = vmatpush1.xpose.msra.mxu0 0.0
    %1811 = vmatprep.subr.mxu0 0.0
    %1812 = vmatpush1.xpose.msra.mxu0 0.0
    %1813 = vmatprep.subr.mxu0 0.0
    %1814 = vmatpush1.xpose.msra.mxu0 0.0
    %1815 = vmatprep.subr.mxu0 0.0
    %1816 = vmatpush1.xpose.msra.mxu0 0.0
    %1817 = vmatprep.subr.mxu0 0.0
    %1818 = vmatpush1.xpose.msra.mxu0 0.0
    %1819 = vmatprep.subr.mxu0 0.0
    %1820 = vmatpush1.xpose.msra.mxu0 0.0
    %1821 = vmatprep.subr.mxu0 0.0
    %1822 = vmatpush1.xpose.msra.mxu0 0.0
    %1823 = vmatprep.subr.mxu0 0.0
    %1824 = vmatpush1.xpose.msra.mxu0 0.0
    %1825 = vmatprep.subr.mxu0 0.0
    %1826 = vmatpush1.xpose.msra.mxu0 0.0
    %1827 = vmatprep.subr.mxu0 0.0
    %1828 = vmatpush1.xpose.msra.mxu0 0.0
    %1829 = vmatprep.subr.mxu0 0.0
    %1830 = vmatpush1.xpose.msra.mxu0 0.0
    %1831 = vmatprep.subr.mxu0 0.0
    %1832 = vmatpush1.xpose.msra.mxu0 %v1799
    %1833 = vmatprep.subr.mxu0 0.0
    %1834 = vmatpush2.xpose.msra.mxu0 0.0
    %1835 = vmatprep.subr.mxu0 0.0
    %1836 = vmatpush2.xpose.msra.mxu0 0.0
    %1837 = vmatprep.subr.mxu0 0.0
    %1838 = vmatpush2.xpose.msra.mxu0 0.0
    %1839 = vmatprep.subr.mxu0 0.0
    %1840 = vmatpush2.xpose.msra.mxu0 0.0
    %1841 = vmatprep.subr.mxu0 0.0
    %1842 = vmatpush2.xpose.msra.mxu0 0.0
    %1843 = vmatprep.subr.mxu0 0.0
    %1844 = vmatpush2.xpose.msra.mxu0 0.0
    %1845 = vmatprep.subr.mxu0 0.0
    %1846 = vmatpush2.xpose.msra.mxu0 0.0
    %1847 = vmatprep.subr.mxu0 0.0
    %1848 = vmatpush2.xpose.msra.mxu0 0.0
    %1849 = vmatprep.subr.mxu0 0.0
    %1850 = vmatpush2.xpose.msra.mxu0 0.0
    %1851 = vmatprep.subr.mxu0 0.0
    %1852 = vmatpush2.xpose.msra.mxu0 0.0
    %1853 = vmatprep.subr.mxu0 0.0
    %1854 = vmatpush2.xpose.msra.mxu0 0.0
    %1855 = vmatprep.subr.mxu0 0.0
    %1856 = vmatpush2.xpose.msra.mxu0 0.0
    %1857 = vmatprep.subr.mxu0 0.0
    %1858 = vmatpush2.xpose.msra.mxu0 0.0
    %1859 = vmatprep.subr.mxu0 0.0
    %1860 = vmatpush2.xpose.msra.mxu0 0.0
    %1861 = vmatprep.subr.mxu0 0.0
    %1862 = vmatpush2.xpose.msra.mxu0 0.0
    %1863 = vmatprep.subr.mxu0 0.0
    %1864 = vmatpush2.xpose.msra.mxu0 0.0
    %1865 = vmatprep.mubr.f32.mxu0 0.0
    %1866 = vmatmul.mubr.f32.gmra.mxu0 %v1796
    %v1867 = vpop.f32.mrf.mxu0
    %v1868 = vadd.f32 0.0, %v1867
    %v1869 = vpop.f32.mrf.mxu0
    %1870 = vdwg.mxu0
    %v1871 = vsel %vm429, %v1868, -inf
    %1872 = vmax.xlane.f32.xlu0 %v1871
    %v1873 = vpop.xlane.xlu0 %1872
    %v1874 = vsub.f32 %v1868, %v1873
    %v1875 = vmul.f32 %v1874, 1.442695
    %v1876 = vpow.pop %v1875
    %v1877 = vsel %vm429, %v1876, 0.0
    %1878 = vadd.xlane.f32.xlu0 %v1877
    %v1879 = vpop.xlane.xlu0 %1878
    %v1880 = vrcp.pop %v1879
    %v1881 = vmul.f32 1.0, %v1880
    %v1883 = vsel %vm429, %v1876, 0
    %1885 = vmatprep.subr.mxu0 0.0
    %1886 = vmatpush1.msra.mxu0 0.0
    %1887 = vmatprep.subr.mxu0 0.0
    %1888 = vmatpush1.msra.mxu0 0.0
    %1889 = vmatprep.subr.mxu0 0.0
    %1890 = vmatpush1.msra.mxu0 0.0
    %1891 = vmatprep.subr.mxu0 0.0
    %1892 = vmatpush1.msra.mxu0 0.0
    %1893 = vmatprep.subr.mxu0 0.0
    %1894 = vmatpush1.msra.mxu0 0.0
    %1895 = vmatprep.subr.mxu0 0.0
    %1896 = vmatpush1.msra.mxu0 0.0
    %1897 = vmatprep.subr.mxu0 0.0
    %1898 = vmatpush1.msra.mxu0 0.0
    %1899 = vmatprep.subr.mxu0 0.0
    %1900 = vmatpush1.msra.mxu0 0.0
    %1901 = vmatprep.subr.mxu0 0.0
    %1902 = vmatpush1.msra.mxu0 0.0
    %1903 = vmatprep.subr.mxu0 0.0
    %1904 = vmatpush1.msra.mxu0 0.0
    %1905 = vmatprep.subr.mxu0 0.0
    %1906 = vmatpush1.msra.mxu0 0.0
    %1907 = vmatprep.subr.mxu0 0.0
    %1908 = vmatpush1.msra.mxu0 0.0
    %1909 = vmatprep.subr.mxu0 0.0
    %1910 = vmatpush1.msra.mxu0 0.0
    %1911 = vmatprep.subr.mxu0 0.0
    %1912 = vmatpush1.msra.mxu0 0.0
    %1913 = vmatprep.subr.mxu0 0.0
    %1914 = vmatpush1.msra.mxu0 0.0
    %1915 = vmatprep.subr.mxu0 0.0
    %1916 = vmatpush1.msra.mxu0 %v426
    %1917 = vmatprep.subr.mxu0 0.0
    %1918 = vmatpush2.msra.mxu0 0.0
    %1919 = vmatprep.subr.mxu0 0.0
    %1920 = vmatpush2.msra.mxu0 0.0
    %1921 = vmatprep.subr.mxu0 0.0
    %1922 = vmatpush2.msra.mxu0 0.0
    %1923 = vmatprep.subr.mxu0 0.0
    %1924 = vmatpush2.msra.mxu0 0.0
    %1925 = vmatprep.subr.mxu0 0.0
    %1926 = vmatpush2.msra.mxu0 0.0
    %1927 = vmatprep.subr.mxu0 0.0
    %1928 = vmatpush2.msra.mxu0 0.0
    %1929 = vmatprep.subr.mxu0 0.0
    %1930 = vmatpush2.msra.mxu0 0.0
    %1931 = vmatprep.subr.mxu0 0.0
    %1932 = vmatpush2.msra.mxu0 0.0
    %1933 = vmatprep.subr.mxu0 0.0
    %1934 = vmatpush2.msra.mxu0 0.0
    %1935 = vmatprep.subr.mxu0 0.0
    %1936 = vmatpush2.msra.mxu0 0.0
    %1937 = vmatprep.subr.mxu0 0.0
    %1938 = vmatpush2.msra.mxu0 0.0
    %1939 = vmatprep.subr.mxu0 0.0
    %1940 = vmatpush2.msra.mxu0 0.0
    %1941 = vmatprep.subr.mxu0 0.0
    %1942 = vmatpush2.msra.mxu0 0.0
    %1943 = vmatprep.subr.mxu0 0.0
    %1944 = vmatpush2.msra.mxu0 0.0
    %1945 = vmatprep.subr.mxu0 0.0
    %1946 = vmatpush2.msra.mxu0 0.0
    %1947 = vmatprep.subr.mxu0 0.0
    %1948 = vmatpush2.msra.mxu0 0.0
    %1949 = vmatprep.mubr.f32.mxu0 0.0
    %1950 = vmatmul.mubr.f32.gmra.mxu0 %v1883
    %v1951 = vpop.f32.mrf.mxu0
    %v1952 = vadd.f32 0.0, %v1951
    %v1953 = vpop.f32.mrf.mxu0
    %1954 = vdwg.mxu0
    %v1955 = vmul.f32 %v1952, %v1881
    %1956 = vrot.lane.b32.xlu0 %v230, 120
    %v1957 = vpop.permute.xlu0 %1956
    %1958 = vrot.lane.b32.xlu0 %v328, 120
    %v1959 = vpop.permute.xlu0 %1958
    %v1960 = vsel %vm429, %v1957, 0
    %v1962 = vsel %vm429, %v1959, 0
    %1964 = vmatprep.subr.mxu0 0.0
    %1965 = vmatpush1.xpose.msra.mxu0 0.0
    %1966 = vmatprep.subr.mxu0 0.0
    %1967 = vmatpush1.xpose.msra.mxu0 0.0
    %1968 = vmatprep.subr.mxu0 0.0
    %1969 = vmatpush1.xpose.msra.mxu0 0.0
    %1970 = vmatprep.subr.mxu0 0.0
    %1971 = vmatpush1.xpose.msra.mxu0 0.0
    %1972 = vmatprep.subr.mxu0 0.0
    %1973 = vmatpush1.xpose.msra.mxu0 0.0
    %1974 = vmatprep.subr.mxu0 0.0
    %1975 = vmatpush1.xpose.msra.mxu0 0.0
    %1976 = vmatprep.subr.mxu0 0.0
    %1977 = vmatpush1.xpose.msra.mxu0 0.0
    %1978 = vmatprep.subr.mxu0 0.0
    %1979 = vmatpush1.xpose.msra.mxu0 0.0
    %1980 = vmatprep.subr.mxu0 0.0
    %1981 = vmatpush1.xpose.msra.mxu0 0.0
    %1982 = vmatprep.subr.mxu0 0.0
    %1983 = vmatpush1.xpose.msra.mxu0 0.0
    %1984 = vmatprep.subr.mxu0 0.0
    %1985 = vmatpush1.xpose.msra.mxu0 0.0
    %1986 = vmatprep.subr.mxu0 0.0
    %1987 = vmatpush1.xpose.msra.mxu0 0.0
    %1988 = vmatprep.subr.mxu0 0.0
    %1989 = vmatpush1.xpose.msra.mxu0 0.0
    %1990 = vmatprep.subr.mxu0 0.0
    %1991 = vmatpush1.xpose.msra.mxu0 0.0
    %1992 = vmatprep.subr.mxu0 0.0
    %1993 = vmatpush1.xpose.msra.mxu0 0.0
    %1994 = vmatprep.subr.mxu0 0.0
    %1995 = vmatpush1.xpose.msra.mxu0 %v1962
    %1996 = vmatprep.subr.mxu0 0.0
    %1997 = vmatpush2.xpose.msra.mxu0 0.0
    %1998 = vmatprep.subr.mxu0 0.0
    %1999 = vmatpush2.xpose.msra.mxu0 0.0
    %2000 = vmatprep.subr.mxu0 0.0
    %2001 = vmatpush2.xpose.msra.mxu0 0.0
    %2002 = vmatprep.subr.mxu0 0.0
    %2003 = vmatpush2.xpose.msra.mxu0 0.0
    %2004 = vmatprep.subr.mxu0 0.0
    %2005 = vmatpush2.xpose.msra.mxu0 0.0
    %2006 = vmatprep.subr.mxu0 0.0
    %2007 = vmatpush2.xpose.msra.mxu0 0.0
    %2008 = vmatprep.subr.mxu0 0.0
    %2009 = vmatpush2.xpose.msra.mxu0 0.0
    %2010 = vmatprep.subr.mxu0 0.0
    %2011 = vmatpush2.xpose.msra.mxu0 0.0
    %2012 = vmatprep.subr.mxu0 0.0
    %2013 = vmatpush2.xpose.msra.mxu0 0.0
    %2014 = vmatprep.subr.mxu0 0.0
    %2015 = vmatpush2.xpose.msra.mxu0 0.0
    %2016 = vmatprep.subr.mxu0 0.0
    %2017 = vmatpush2.xpose.msra.mxu0 0.0
    %2018 = vmatprep.subr.mxu0 0.0
    %2019 = vmatpush2.xpose.msra.mxu0 0.0
    %2020 = vmatprep.subr.mxu0 0.0
    %2021 = vmatpush2.xpose.msra.mxu0 0.0
    %2022 = vmatprep.subr.mxu0 0.0
    %2023 = vmatpush2.xpose.msra.mxu0 0.0
    %2024 = vmatprep.subr.mxu0 0.0
    %2025 = vmatpush2.xpose.msra.mxu0 0.0
    %2026 = vmatprep.subr.mxu0 0.0
    %2027 = vmatpush2.xpose.msra.mxu0 0.0
    %2028 = vmatprep.mubr.f32.mxu0 0.0
    %2029 = vmatmul.mubr.f32.gmra.mxu0 %v1960
    %v2030 = vpop.f32.mrf.mxu0
    %v2031 = vadd.f32 0.0, %v2030
    %v2032 = vpop.f32.mrf.mxu0
    %2033 = vdwg.mxu0
    %v2034 = vsel %vm429, %v2031, -inf
    %2035 = vmax.xlane.f32.xlu0 %v2034
    %v2036 = vpop.xlane.xlu0 %2035
    %v2037 = vsub.f32 %v2031, %v2036
    %v2038 = vmul.f32 %v2037, 1.442695
    %v2039 = vpow.pop %v2038
    %v2040 = vsel %vm429, %v2039, 0.0
    %2041 = vadd.xlane.f32.xlu0 %v2040
    %v2042 = vpop.xlane.xlu0 %2041
    %v2043 = vrcp.pop %v2042
    %v2044 = vmul.f32 1.0, %v2043
    %2046 = vrot.lane.b32.xlu0 %v426, 120
    %v2047 = vpop.permute.xlu0 %2046
    %v2050 = vsel %vm429, %v2039, 0
    %2052 = vmatprep.subr.mxu0 0.0
    %2053 = vmatpush1.msra.mxu0 0.0
    %2054 = vmatprep.subr.mxu0 0.0
    %2055 = vmatpush1.msra.mxu0 0.0
    %2056 = vmatprep.subr.mxu0 0.0
    %2057 = vmatpush1.msra.mxu0 0.0
    %2058 = vmatprep.subr.mxu0 0.0
    %2059 = vmatpush1.msra.mxu0 0.0
    %2060 = vmatprep.subr.mxu0 0.0
    %2061 = vmatpush1.msra.mxu0 0.0
    %2062 = vmatprep.subr.mxu0 0.0
    %2063 = vmatpush1.msra.mxu0 0.0
    %2064 = vmatprep.subr.mxu0 0.0
    %2065 = vmatpush1.msra.mxu0 0.0
    %2066 = vmatprep.subr.mxu0 0.0
    %2067 = vmatpush1.msra.mxu0 0.0
    %2068 = vmatprep.subr.mxu0 0.0
    %2069 = vmatpush1.msra.mxu0 0.0
    %2070 = vmatprep.subr.mxu0 0.0
    %2071 = vmatpush1.msra.mxu0 0.0
    %2072 = vmatprep.subr.mxu0 0.0
    %2073 = vmatpush1.msra.mxu0 0.0
    %2074 = vmatprep.subr.mxu0 0.0
    %2075 = vmatpush1.msra.mxu0 0.0
    %2076 = vmatprep.subr.mxu0 0.0
    %2077 = vmatpush1.msra.mxu0 0.0
    %2078 = vmatprep.subr.mxu0 0.0
    %2079 = vmatpush1.msra.mxu0 0.0
    %2080 = vmatprep.subr.mxu0 0.0
    %2081 = vmatpush1.msra.mxu0 0.0
    %2082 = vmatprep.subr.mxu0 0.0
    %2083 = vmatpush1.msra.mxu0 %v2047
    %2084 = vmatprep.subr.mxu0 0.0
    %2085 = vmatpush2.msra.mxu0 0.0
    %2086 = vmatprep.subr.mxu0 0.0
    %2087 = vmatpush2.msra.mxu0 0.0
    %2088 = vmatprep.subr.mxu0 0.0
    %2089 = vmatpush2.msra.mxu0 0.0
    %2090 = vmatprep.subr.mxu0 0.0
    %2091 = vmatpush2.msra.mxu0 0.0
    %2092 = vmatprep.subr.mxu0 0.0
    %2093 = vmatpush2.msra.mxu0 0.0
    %2094 = vmatprep.subr.mxu0 0.0
    %2095 = vmatpush2.msra.mxu0 0.0
    %2096 = vmatprep.subr.mxu0 0.0
    %2097 = vmatpush2.msra.mxu0 0.0
    %2098 = vmatprep.subr.mxu0 0.0
    %2099 = vmatpush2.msra.mxu0 0.0
    %2100 = vmatprep.subr.mxu0 0.0
    %2101 = vmatpush2.msra.mxu0 0.0
    %2102 = vmatprep.subr.mxu0 0.0
    %2103 = vmatpush2.msra.mxu0 0.0
    %2104 = vmatprep.subr.mxu0 0.0
    %2105 = vmatpush2.msra.mxu0 0.0
    %2106 = vmatprep.subr.mxu0 0.0
    %2107 = vmatpush2.msra.mxu0 0.0
    %2108 = vmatprep.subr.mxu0 0.0
    %2109 = vmatpush2.msra.mxu0 0.0
    %2110 = vmatprep.subr.mxu0 0.0
    %2111 = vmatpush2.msra.mxu0 0.0
    %2112 = vmatprep.subr.mxu0 0.0
    %2113 = vmatpush2.msra.mxu0 0.0
    %2114 = vmatprep.subr.mxu0 0.0
    %2115 = vmatpush2.msra.mxu0 0.0
    %2116 = vmatprep.mubr.f32.mxu0 0.0
    %2117 = vmatmul.mubr.f32.gmra.mxu0 %v2050
    %v2118 = vpop.f32.mrf.mxu0
    %v2119 = vadd.f32 0.0, %v2118
    %v2120 = vpop.f32.mrf.mxu0
    %2121 = vdwg.mxu0
    %v2122 = vmul.f32 %v2119, %v2044
    %2123 = vrot.lane.b32.xlu0 %v230, 112
    %v2124 = vpop.permute.xlu0 %2123
    %2125 = vrot.lane.b32.xlu0 %v328, 112
    %v2126 = vpop.permute.xlu0 %2125
    %v2127 = vsel %vm429, %v2124, 0
    %v2129 = vsel %vm429, %v2126, 0
    %2131 = vmatprep.subr.mxu0 0.0
    %2132 = vmatpush1.xpose.msra.mxu0 0.0
    %2133 = vmatprep.subr.mxu0 0.0
    %2134 = vmatpush1.xpose.msra.mxu0 0.0
    %2135 = vmatprep.subr.mxu0 0.0
    %2136 = vmatpush1.xpose.msra.mxu0 0.0
    %2137 = vmatprep.subr.mxu0 0.0
    %2138 = vmatpush1.xpose.msra.mxu0 0.0
    %2139 = vmatprep.subr.mxu0 0.0
    %2140 = vmatpush1.xpose.msra.mxu0 0.0
    %2141 = vmatprep.subr.mxu0 0.0
    %2142 = vmatpush1.xpose.msra.mxu0 0.0
    %2143 = vmatprep.subr.mxu0 0.0
    %2144 = vmatpush1.xpose.msra.mxu0 0.0
    %2145 = vmatprep.subr.mxu0 0.0
    %2146 = vmatpush1.xpose.msra.mxu0 0.0
    %2147 = vmatprep.subr.mxu0 0.0
    %2148 = vmatpush1.xpose.msra.mxu0 0.0
    %2149 = vmatprep.subr.mxu0 0.0
    %2150 = vmatpush1.xpose.msra.mxu0 0.0
    %2151 = vmatprep.subr.mxu0 0.0
    %2152 = vmatpush1.xpose.msra.mxu0 0.0
    %2153 = vmatprep.subr.mxu0 0.0
    %2154 = vmatpush1.xpose.msra.mxu0 0.0
    %2155 = vmatprep.subr.mxu0 0.0
    %2156 = vmatpush1.xpose.msra.mxu0 0.0
    %2157 = vmatprep.subr.mxu0 0.0
    %2158 = vmatpush1.xpose.msra.mxu0 0.0
    %2159 = vmatprep.subr.mxu0 0.0
    %2160 = vmatpush1.xpose.msra.mxu0 0.0
    %2161 = vmatprep.subr.mxu0 0.0
    %2162 = vmatpush1.xpose.msra.mxu0 %v2129
    %2163 = vmatprep.subr.mxu0 0.0
    %2164 = vmatpush2.xpose.msra.mxu0 0.0
    %2165 = vmatprep.subr.mxu0 0.0
    %2166 = vmatpush2.xpose.msra.mxu0 0.0
    %2167 = vmatprep.subr.mxu0 0.0
    %2168 = vmatpush2.xpose.msra.mxu0 0.0
    %2169 = vmatprep.subr.mxu0 0.0
    %2170 = vmatpush2.xpose.msra.mxu0 0.0
    %2171 = vmatprep.subr.mxu0 0.0
    %2172 = vmatpush2.xpose.msra.mxu0 0.0
    %2173 = vmatprep.subr.mxu0 0.0
    %2174 = vmatpush2.xpose.msra.mxu0 0.0
    %2175 = vmatprep.subr.mxu0 0.0
    %2176 = vmatpush2.xpose.msra.mxu0 0.0
    %2177 = vmatprep.subr.mxu0 0.0
    %2178 = vmatpush2.xpose.msra.mxu0 0.0
    %2179 = vmatprep.subr.mxu0 0.0
    %2180 = vmatpush2.xpose.msra.mxu0 0.0
    %2181 = vmatprep.subr.mxu0 0.0
    %2182 = vmatpush2.xpose.msra.mxu0 0.0
    %2183 = vmatprep.subr.mxu0 0.0
    %2184 = vmatpush2.xpose.msra.mxu0 0.0
    %2185 = vmatprep.subr.mxu0 0.0
    %2186 = vmatpush2.xpose.msra.mxu0 0.0
    %2187 = vmatprep.subr.mxu0 0.0
    %2188 = vmatpush2.xpose.msra.mxu0 0.0
    %2189 = vmatprep.subr.mxu0 0.0
    %2190 = vmatpush2.xpose.msra.mxu0 0.0
    %2191 = vmatprep.subr.mxu0 0.0
    %2192 = vmatpush2.xpose.msra.mxu0 0.0
    %2193 = vmatprep.subr.mxu0 0.0
    %2194 = vmatpush2.xpose.msra.mxu0 0.0
    %2195 = vmatprep.mubr.f32.mxu0 0.0
    %2196 = vmatmul.mubr.f32.gmra.mxu0 %v2127
    %v2197 = vpop.f32.mrf.mxu0
    %v2198 = vadd.f32 0.0, %v2197
    %v2199 = vpop.f32.mrf.mxu0
    %2200 = vdwg.mxu0
    %v2201 = vsel %vm429, %v2198, -inf
    %2202 = vmax.xlane.f32.xlu0 %v2201
    %v2203 = vpop.xlane.xlu0 %2202
    %v2204 = vsub.f32 %v2198, %v2203
    %v2205 = vmul.f32 %v2204, 1.442695
    %v2206 = vpow.pop %v2205
    %v2207 = vsel %vm429, %v2206, 0.0
    %2208 = vadd.xlane.f32.xlu0 %v2207
    %v2209 = vpop.xlane.xlu0 %2208
    %v2210 = vrcp.pop %v2209
    %v2211 = vmul.f32 1.0, %v2210
    %2212 = vrot.lane.b32.xlu0 %v426, 112
    %v2213 = vpop.permute.xlu0 %2212
    %v2216 = vsel %vm429, %v2206, 0
    %2218 = vmatprep.subr.mxu0 0.0
    %2219 = vmatpush1.msra.mxu0 0.0
    %2220 = vmatprep.subr.mxu0 0.0
    %2221 = vmatpush1.msra.mxu0 0.0
    %2222 = vmatprep.subr.mxu0 0.0
    %2223 = vmatpush1.msra.mxu0 0.0
    %2224 = vmatprep.subr.mxu0 0.0
    %2225 = vmatpush1.msra.mxu0 0.0
    %2226 = vmatprep.subr.mxu0 0.0
    %2227 = vmatpush1.msra.mxu0 0.0
    %2228 = vmatprep.subr.mxu0 0.0
    %2229 = vmatpush1.msra.mxu0 0.0
    %2230 = vmatprep.subr.mxu0 0.0
    %2231 = vmatpush1.msra.mxu0 0.0
    %2232 = vmatprep.subr.mxu0 0.0
    %2233 = vmatpush1.msra.mxu0 0.0
    %2234 = vmatprep.subr.mxu0 0.0
    %2235 = vmatpush1.msra.mxu0 0.0
    %2236 = vmatprep.subr.mxu0 0.0
    %2237 = vmatpush1.msra.mxu0 0.0
    %2238 = vmatprep.subr.mxu0 0.0
    %2239 = vmatpush1.msra.mxu0 0.0
    %2240 = vmatprep.subr.mxu0 0.0
    %2241 = vmatpush1.msra.mxu0 0.0
    %2242 = vmatprep.subr.mxu0 0.0
    %2243 = vmatpush1.msra.mxu0 0.0
    %2244 = vmatprep.subr.mxu0 0.0
    %2245 = vmatpush1.msra.mxu0 0.0
    %2246 = vmatprep.subr.mxu0 0.0
    %2247 = vmatpush1.msra.mxu0 0.0
    %2248 = vmatprep.subr.mxu0 0.0
    %2249 = vmatpush1.msra.mxu0 %v2213
    %2250 = vmatprep.subr.mxu0 0.0
    %2251 = vmatpush2.msra.mxu0 0.0
    %2252 = vmatprep.subr.mxu0 0.0
    %2253 = vmatpush2.msra.mxu0 0.0
    %2254 = vmatprep.subr.mxu0 0.0
    %2255 = vmatpush2.msra.mxu0 0.0
    %2256 = vmatprep.subr.mxu0 0.0
    %2257 = vmatpush2.msra.mxu0 0.0
    %2258 = vmatprep.subr.mxu0 0.0
    %2259 = vmatpush2.msra.mxu0 0.0
    %2260 = vmatprep.subr.mxu0 0.0
    %2261 = vmatpush2.msra.mxu0 0.0
    %2262 = vmatprep.subr.mxu0 0.0
    %2263 = vmatpush2.msra.mxu0 0.0
    %2264 = vmatprep.subr.mxu0 0.0
    %2265 = vmatpush2.msra.mxu0 0.0
    %2266 = vmatprep.subr.mxu0 0.0
    %2267 = vmatpush2.msra.mxu0 0.0
    %2268 = vmatprep.subr.mxu0 0.0
    %2269 = vmatpush2.msra.mxu0 0.0
    %2270 = vmatprep.subr.mxu0 0.0
    %2271 = vmatpush2.msra.mxu0 0.0
    %2272 = vmatprep.subr.mxu0 0.0
    %2273 = vmatpush2.msra.mxu0 0.0
    %2274 = vmatprep.subr.mxu0 0.0
    %2275 = vmatpush2.msra.mxu0 0.0
    %2276 = vmatprep.subr.mxu0 0.0
    %2277 = vmatpush2.msra.mxu0 0.0
    %2278 = vmatprep.subr.mxu0 0.0
    %2279 = vmatpush2.msra.mxu0 0.0
    %2280 = vmatprep.subr.mxu0 0.0
    %2281 = vmatpush2.msra.mxu0 0.0
    %2282 = vmatprep.mubr.f32.mxu0 0.0
    %2283 = vmatmul.mubr.f32.gmra.mxu0 %v2216
    %v2284 = vpop.f32.mrf.mxu0
    %v2285 = vadd.f32 0.0, %v2284
    %v2286 = vpop.f32.mrf.mxu0
    %2287 = vdwg.mxu0
    %v2288 = vmul.f32 %v2285, %v2211
    %2289 = vrot.lane.b32.xlu0 %v230, 104
    %v2290 = vpop.permute.xlu0 %2289
    %2291 = vrot.lane.b32.xlu0 %v328, 104
    %v2292 = vpop.permute.xlu0 %2291
    %v2293 = vsel %vm429, %v2290, 0
    %v2295 = vsel %vm429, %v2292, 0
    %2297 = vmatprep.subr.mxu0 0.0
    %2298 = vmatpush1.xpose.msra.mxu0 0.0
    %2299 = vmatprep.subr.mxu0 0.0
    %2300 = vmatpush1.xpose.msra.mxu0 0.0
    %2301 = vmatprep.subr.mxu0 0.0
    %2302 = vmatpush1.xpose.msra.mxu0 0.0
    %2303 = vmatprep.subr.mxu0 0.0
    %2304 = vmatpush1.xpose.msra.mxu0 0.0
    %2305 = vmatprep.subr.mxu0 0.0
    %2306 = vmatpush1.xpose.msra.mxu0 0.0
    %2307 = vmatprep.subr.mxu0 0.0
    %2308 = vmatpush1.xpose.msra.mxu0 0.0
    %2309 = vmatprep.subr.mxu0 0.0
    %2310 = vmatpush1.xpose.msra.mxu0 0.0
    %2311 = vmatprep.subr.mxu0 0.0
    %2312 = vmatpush1.xpose.msra.mxu0 0.0
    %2313 = vmatprep.subr.mxu0 0.0
    %2314 = vmatpush1.xpose.msra.mxu0 0.0
    %2315 = vmatprep.subr.mxu0 0.0
    %2316 = vmatpush1.xpose.msra.mxu0 0.0
    %2317 = vmatprep.subr.mxu0 0.0
    %2318 = vmatpush1.xpose.msra.mxu0 0.0
    %2319 = vmatprep.subr.mxu0 0.0
    %2320 = vmatpush1.xpose.msra.mxu0 0.0
    %2321 = vmatprep.subr.mxu0 0.0
    %2322 = vmatpush1.xpose.msra.mxu0 0.0
    %2323 = vmatprep.subr.mxu0 0.0
    %2324 = vmatpush1.xpose.msra.mxu0 0.0
    %2325 = vmatprep.subr.mxu0 0.0
    %2326 = vmatpush1.xpose.msra.mxu0 0.0
    %2327 = vmatprep.subr.mxu0 0.0
    %2328 = vmatpush1.xpose.msra.mxu0 %v2295
    %2329 = vmatprep.subr.mxu0 0.0
    %2330 = vmatpush2.xpose.msra.mxu0 0.0
    %2331 = vmatprep.subr.mxu0 0.0
    %2332 = vmatpush2.xpose.msra.mxu0 0.0
    %2333 = vmatprep.subr.mxu0 0.0
    %2334 = vmatpush2.xpose.msra.mxu0 0.0
    %2335 = vmatprep.subr.mxu0 0.0
    %2336 = vmatpush2.xpose.msra.mxu0 0.0
    %2337 = vmatprep.subr.mxu0 0.0
    %2338 = vmatpush2.xpose.msra.mxu0 0.0
    %2339 = vmatprep.subr.mxu0 0.0
    %2340 = vmatpush2.xpose.msra.mxu0 0.0
    %2341 = vmatprep.subr.mxu0 0.0
    %2342 = vmatpush2.xpose.msra.mxu0 0.0
    %2343 = vmatprep.subr.mxu0 0.0
    %2344 = vmatpush2.xpose.msra.mxu0 0.0
    %2345 = vmatprep.subr.mxu0 0.0
    %2346 = vmatpush2.xpose.msra.mxu0 0.0
    %2347 = vmatprep.subr.mxu0 0.0
    %2348 = vmatpush2.xpose.msra.mxu0 0.0
    %2349 = vmatprep.subr.mxu0 0.0
    %2350 = vmatpush2.xpose.msra.mxu0 0.0
    %2351 = vmatprep.subr.mxu0 0.0
    %2352 = vmatpush2.xpose.msra.mxu0 0.0
    %2353 = vmatprep.subr.mxu0 0.0
    %2354 = vmatpush2.xpose.msra.mxu0 0.0
    %2355 = vmatprep.subr.mxu0 0.0
    %2356 = vmatpush2.xpose.msra.mxu0 0.0
    %2357 = vmatprep.subr.mxu0 0.0
    %2358 = vmatpush2.xpose.msra.mxu0 0.0
    %2359 = vmatprep.subr.mxu0 0.0
    %2360 = vmatpush2.xpose.msra.mxu0 0.0
    %2361 = vmatprep.mubr.f32.mxu0 0.0
    %2362 = vmatmul.mubr.f32.gmra.mxu0 %v2293
    %v2363 = vpop.f32.mrf.mxu0
    %v2364 = vadd.f32 0.0, %v2363
    %v2365 = vpop.f32.mrf.mxu0
    %2366 = vdwg.mxu0
    %v2367 = vsel %vm429, %v2364, -inf
    %2368 = vmax.xlane.f32.xlu0 %v2367
    %v2369 = vpop.xlane.xlu0 %2368
    %v2370 = vsub.f32 %v2364, %v2369
    %v2371 = vmul.f32 %v2370, 1.442695
    %v2372 = vpow.pop %v2371
    %v2373 = vsel %vm429, %v2372, 0.0
    %2374 = vadd.xlane.f32.xlu0 %v2373
    %v2375 = vpop.xlane.xlu0 %2374
    %v2376 = vrcp.pop %v2375
    %v2377 = vmul.f32 1.0, %v2376
    %2378 = vrot.lane.b32.xlu0 %v426, 104
    %v2379 = vpop.permute.xlu0 %2378
    %v2382 = vsel %vm429, %v2372, 0
    %2384 = vmatprep.subr.mxu0 0.0
    %2385 = vmatpush1.msra.mxu0 0.0
    %2386 = vmatprep.subr.mxu0 0.0
    %2387 = vmatpush1.msra.mxu0 0.0
    %2388 = vmatprep.subr.mxu0 0.0
    %2389 = vmatpush1.msra.mxu0 0.0
    %2390 = vmatprep.subr.mxu0 0.0
    %2391 = vmatpush1.msra.mxu0 0.0
    %2392 = vmatprep.subr.mxu0 0.0
    %2393 = vmatpush1.msra.mxu0 0.0
    %2394 = vmatprep.subr.mxu0 0.0
    %2395 = vmatpush1.msra.mxu0 0.0
    %2396 = vmatprep.subr.mxu0 0.0
    %2397 = vmatpush1.msra.mxu0 0.0
    %2398 = vmatprep.subr.mxu0 0.0
    %2399 = vmatpush1.msra.mxu0 0.0
    %2400 = vmatprep.subr.mxu0 0.0
    %2401 = vmatpush1.msra.mxu0 0.0
    %2402 = vmatprep.subr.mxu0 0.0
    %2403 = vmatpush1.msra.mxu0 0.0
    %2404 = vmatprep.subr.mxu0 0.0
    %2405 = vmatpush1.msra.mxu0 0.0
    %2406 = vmatprep.subr.mxu0 0.0
    %2407 = vmatpush1.msra.mxu0 0.0
    %2408 = vmatprep.subr.mxu0 0.0
    %2409 = vmatpush1.msra.mxu0 0.0
    %2410 = vmatprep.subr.mxu0 0.0
    %2411 = vmatpush1.msra.mxu0 0.0
    %2412 = vmatprep.subr.mxu0 0.0
    %2413 = vmatpush1.msra.mxu0 0.0
    %2414 = vmatprep.subr.mxu0 0.0
    %2415 = vmatpush1.msra.mxu0 %v2379
    %2416 = vmatprep.subr.mxu0 0.0
    %2417 = vmatpush2.msra.mxu0 0.0
    %2418 = vmatprep.subr.mxu0 0.0
    %2419 = vmatpush2.msra.mxu0 0.0
    %2420 = vmatprep.subr.mxu0 0.0
    %2421 = vmatpush2.msra.mxu0 0.0
    %2422 = vmatprep.subr.mxu0 0.0
    %2423 = vmatpush2.msra.mxu0 0.0
    %2424 = vmatprep.subr.mxu0 0.0
    %2425 = vmatpush2.msra.mxu0 0.0
    %2426 = vmatprep.subr.mxu0 0.0
    %2427 = vmatpush2.msra.mxu0 0.0
    %2428 = vmatprep.subr.mxu0 0.0
    %2429 = vmatpush2.msra.mxu0 0.0
    %2430 = vmatprep.subr.mxu0 0.0
    %2431 = vmatpush2.msra.mxu0 0.0
    %2432 = vmatprep.subr.mxu0 0.0
    %2433 = vmatpush2.msra.mxu0 0.0
    %2434 = vmatprep.subr.mxu0 0.0
    %2435 = vmatpush2.msra.mxu0 0.0
    %2436 = vmatprep.subr.mxu0 0.0
    %2437 = vmatpush2.msra.mxu0 0.0
    %2438 = vmatprep.subr.mxu0 0.0
    %2439 = vmatpush2.msra.mxu0 0.0
    %2440 = vmatprep.subr.mxu0 0.0
    %2441 = vmatpush2.msra.mxu0 0.0
    %2442 = vmatprep.subr.mxu0 0.0
    %2443 = vmatpush2.msra.mxu0 0.0
    %2444 = vmatprep.subr.mxu0 0.0
    %2445 = vmatpush2.msra.mxu0 0.0
    %2446 = vmatprep.subr.mxu0 0.0
    %2447 = vmatpush2.msra.mxu0 0.0
    %2448 = vmatprep.mubr.f32.mxu0 0.0
    %2449 = vmatmul.mubr.f32.gmra.mxu0 %v2382
    %v2450 = vpop.f32.mrf.mxu0
    %v2451 = vadd.f32 0.0, %v2450
    %v2452 = vpop.f32.mrf.mxu0
    %2453 = vdwg.mxu0
    %v2454 = vmul.f32 %v2451, %v2377
    %2455 = vrot.lane.b32.xlu0 %v230, 96
    %v2456 = vpop.permute.xlu0 %2455
    %2457 = vrot.lane.b32.xlu0 %v328, 96
    %v2458 = vpop.permute.xlu0 %2457
    %v2459 = vsel %vm429, %v2456, 0
    %v2461 = vsel %vm429, %v2458, 0
    %2463 = vmatprep.subr.mxu0 0.0
    %2464 = vmatpush1.xpose.msra.mxu0 0.0
    %2465 = vmatprep.subr.mxu0 0.0
    %2466 = vmatpush1.xpose.msra.mxu0 0.0
    %2467 = vmatprep.subr.mxu0 0.0
    %2468 = vmatpush1.xpose.msra.mxu0 0.0
    %2469 = vmatprep.subr.mxu0 0.0
    %2470 = vmatpush1.xpose.msra.mxu0 0.0
    %2471 = vmatprep.subr.mxu0 0.0
    %2472 = vmatpush1.xpose.msra.mxu0 0.0
    %2473 = vmatprep.subr.mxu0 0.0
    %2474 = vmatpush1.xpose.msra.mxu0 0.0
    %2475 = vmatprep.subr.mxu0 0.0
    %2476 = vmatpush1.xpose.msra.mxu0 0.0
    %2477 = vmatprep.subr.mxu0 0.0
    %2478 = vmatpush1.xpose.msra.mxu0 0.0
    %2479 = vmatprep.subr.mxu0 0.0
    %2480 = vmatpush1.xpose.msra.mxu0 0.0
    %2481 = vmatprep.subr.mxu0 0.0
    %2482 = vmatpush1.xpose.msra.mxu0 0.0
    %2483 = vmatprep.subr.mxu0 0.0
    %2484 = vmatpush1.xpose.msra.mxu0 0.0
    %2485 = vmatprep.subr.mxu0 0.0
    %2486 = vmatpush1.xpose.msra.mxu0 0.0
    %2487 = vmatprep.subr.mxu0 0.0
    %2488 = vmatpush1.xpose.msra.mxu0 0.0
    %2489 = vmatprep.subr.mxu0 0.0
    %2490 = vmatpush1.xpose.msra.mxu0 0.0
    %2491 = vmatprep.subr.mxu0 0.0
    %2492 = vmatpush1.xpose.msra.mxu0 0.0
    %2493 = vmatprep.subr.mxu0 0.0
    %2494 = vmatpush1.xpose.msra.mxu0 %v2461
    %2495 = vmatprep.subr.mxu0 0.0
    %2496 = vmatpush2.xpose.msra.mxu0 0.0
    %2497 = vmatprep.subr.mxu0 0.0
    %2498 = vmatpush2.xpose.msra.mxu0 0.0
    %2499 = vmatprep.subr.mxu0 0.0
    %2500 = vmatpush2.xpose.msra.mxu0 0.0
    %2501 = vmatprep.subr.mxu0 0.0
    %2502 = vmatpush2.xpose.msra.mxu0 0.0
    %2503 = vmatprep.subr.mxu0 0.0
    %2504 = vmatpush2.xpose.msra.mxu0 0.0
    %2505 = vmatprep.subr.mxu0 0.0
    %2506 = vmatpush2.xpose.msra.mxu0 0.0
    %2507 = vmatprep.subr.mxu0 0.0
    %2508 = vmatpush2.xpose.msra.mxu0 0.0
    %2509 = vmatprep.subr.mxu0 0.0
    %2510 = vmatpush2.xpose.msra.mxu0 0.0
    %2511 = vmatprep.subr.mxu0 0.0
    %2512 = vmatpush2.xpose.msra.mxu0 0.0
    %2513 = vmatprep.subr.mxu0 0.0
    %2514 = vmatpush2.xpose.msra.mxu0 0.0
    %2515 = vmatprep.subr.mxu0 0.0
    %2516 = vmatpush2.xpose.msra.mxu0 0.0
    %2517 = vmatprep.subr.mxu0 0.0
    %2518 = vmatpush2.xpose.msra.mxu0 0.0
    %2519 = vmatprep.subr.mxu0 0.0
    %2520 = vmatpush2.xpose.msra.mxu0 0.0
    %2521 = vmatprep.subr.mxu0 0.0
    %2522 = vmatpush2.xpose.msra.mxu0 0.0
    %2523 = vmatprep.subr.mxu0 0.0
    %2524 = vmatpush2.xpose.msra.mxu0 0.0
    %2525 = vmatprep.subr.mxu0 0.0
    %2526 = vmatpush2.xpose.msra.mxu0 0.0
    %2527 = vmatprep.mubr.f32.mxu0 0.0
    %2528 = vmatmul.mubr.f32.gmra.mxu0 %v2459
    %v2529 = vpop.f32.mrf.mxu0
    %v2530 = vadd.f32 0.0, %v2529
    %v2531 = vpop.f32.mrf.mxu0
    %2532 = vdwg.mxu0
    %v2533 = vsel %vm429, %v2530, -inf
    %2534 = vmax.xlane.f32.xlu0 %v2533
    %v2535 = vpop.xlane.xlu0 %2534
    %v2536 = vsub.f32 %v2530, %v2535
    %v2537 = vmul.f32 %v2536, 1.442695
    %v2538 = vpow.pop %v2537
    %v2539 = vsel %vm429, %v2538, 0.0
    %2540 = vadd.xlane.f32.xlu0 %v2539
    %v2541 = vpop.xlane.xlu0 %2540
    %v2542 = vrcp.pop %v2541
    %v2543 = vmul.f32 1.0, %v2542
    %2544 = vrot.lane.b32.xlu0 %v426, 96
    %v2545 = vpop.permute.xlu0 %2544
    %v2548 = vsel %vm429, %v2538, 0
    %2550 = vmatprep.subr.mxu0 0.0
    %2551 = vmatpush1.msra.mxu0 0.0
    %2552 = vmatprep.subr.mxu0 0.0
    %2553 = vmatpush1.msra.mxu0 0.0
    %2554 = vmatprep.subr.mxu0 0.0
    %2555 = vmatpush1.msra.mxu0 0.0
    %2556 = vmatprep.subr.mxu0 0.0
    %2557 = vmatpush1.msra.mxu0 0.0
    %2558 = vmatprep.subr.mxu0 0.0
    %2559 = vmatpush1.msra.mxu0 0.0
    %2560 = vmatprep.subr.mxu0 0.0
    %2561 = vmatpush1.msra.mxu0 0.0
    %2562 = vmatprep.subr.mxu0 0.0
    %2563 = vmatpush1.msra.mxu0 0.0
    %2564 = vmatprep.subr.mxu0 0.0
    %2565 = vmatpush1.msra.mxu0 0.0
    %2566 = vmatprep.subr.mxu0 0.0
    %2567 = vmatpush1.msra.mxu0 0.0
    %2568 = vmatprep.subr.mxu0 0.0
    %2569 = vmatpush1.msra.mxu0 0.0
    %2570 = vmatprep.subr.mxu0 0.0
    %2571 = vmatpush1.msra.mxu0 0.0
    %2572 = vmatprep.subr.mxu0 0.0
    %2573 = vmatpush1.msra.mxu0 0.0
    %2574 = vmatprep.subr.mxu0 0.0
    %2575 = vmatpush1.msra.mxu0 0.0
    %2576 = vmatprep.subr.mxu0 0.0
    %2577 = vmatpush1.msra.mxu0 0.0
    %2578 = vmatprep.subr.mxu0 0.0
    %2579 = vmatpush1.msra.mxu0 0.0
    %2580 = vmatprep.subr.mxu0 0.0
    %2581 = vmatpush1.msra.mxu0 %v2545
    %2582 = vmatprep.subr.mxu0 0.0
    %2583 = vmatpush2.msra.mxu0 0.0
    %2584 = vmatprep.subr.mxu0 0.0
    %2585 = vmatpush2.msra.mxu0 0.0
    %2586 = vmatprep.subr.mxu0 0.0
    %2587 = vmatpush2.msra.mxu0 0.0
    %2588 = vmatprep.subr.mxu0 0.0
    %2589 = vmatpush2.msra.mxu0 0.0
    %2590 = vmatprep.subr.mxu0 0.0
    %2591 = vmatpush2.msra.mxu0 0.0
    %2592 = vmatprep.subr.mxu0 0.0
    %2593 = vmatpush2.msra.mxu0 0.0
    %2594 = vmatprep.subr.mxu0 0.0
    %2595 = vmatpush2.msra.mxu0 0.0
    %2596 = vmatprep.subr.mxu0 0.0
    %2597 = vmatpush2.msra.mxu0 0.0
    %2598 = vmatprep.subr.mxu0 0.0
    %2599 = vmatpush2.msra.mxu0 0.0
    %2600 = vmatprep.subr.mxu0 0.0
    %2601 = vmatpush2.msra.mxu0 0.0
    %2602 = vmatprep.subr.mxu0 0.0
    %2603 = vmatpush2.msra.mxu0 0.0
    %2604 = vmatprep.subr.mxu0 0.0
    %2605 = vmatpush2.msra.mxu0 0.0
    %2606 = vmatprep.subr.mxu0 0.0
    %2607 = vmatpush2.msra.mxu0 0.0
    %2608 = vmatprep.subr.mxu0 0.0
    %2609 = vmatpush2.msra.mxu0 0.0
    %2610 = vmatprep.subr.mxu0 0.0
    %2611 = vmatpush2.msra.mxu0 0.0
    %2612 = vmatprep.subr.mxu0 0.0
    %2613 = vmatpush2.msra.mxu0 0.0
    %2614 = vmatprep.mubr.f32.mxu0 0.0
    %2615 = vmatmul.mubr.f32.gmra.mxu0 %v2548
    %v2616 = vpop.f32.mrf.mxu0
    %v2617 = vadd.f32 0.0, %v2616
    %v2618 = vpop.f32.mrf.mxu0
    %2619 = vdwg.mxu0
    %v2620 = vmul.f32 %v2617, %v2543
    %2621 = vrot.lane.b32.xlu0 %v230, 88
    %v2622 = vpop.permute.xlu0 %2621
    %2623 = vrot.lane.b32.xlu0 %v328, 88
    %v2624 = vpop.permute.xlu0 %2623
    %v2625 = vsel %vm429, %v2622, 0
    %v2627 = vsel %vm429, %v2624, 0
    %2629 = vmatprep.subr.mxu0 0.0
    %2630 = vmatpush1.xpose.msra.mxu0 0.0
    %2631 = vmatprep.subr.mxu0 0.0
    %2632 = vmatpush1.xpose.msra.mxu0 0.0
    %2633 = vmatprep.subr.mxu0 0.0
    %2634 = vmatpush1.xpose.msra.mxu0 0.0
    %2635 = vmatprep.subr.mxu0 0.0
    %2636 = vmatpush1.xpose.msra.mxu0 0.0
    %2637 = vmatprep.subr.mxu0 0.0
    %2638 = vmatpush1.xpose.msra.mxu0 0.0
    %2639 = vmatprep.subr.mxu0 0.0
    %2640 = vmatpush1.xpose.msra.mxu0 0.0
    %2641 = vmatprep.subr.mxu0 0.0
    %2642 = vmatpush1.xpose.msra.mxu0 0.0
    %2643 = vmatprep.subr.mxu0 0.0
    %2644 = vmatpush1.xpose.msra.mxu0 0.0
    %2645 = vmatprep.subr.mxu0 0.0
    %2646 = vmatpush1.xpose.msra.mxu0 0.0
    %2647 = vmatprep.subr.mxu0 0.0
    %2648 = vmatpush1.xpose.msra.mxu0 0.0
    %2649 = vmatprep.subr.mxu0 0.0
    %2650 = vmatpush1.xpose.msra.mxu0 0.0
    %2651 = vmatprep.subr.mxu0 0.0
    %2652 = vmatpush1.xpose.msra.mxu0 0.0
    %2653 = vmatprep.subr.mxu0 0.0
    %2654 = vmatpush1.xpose.msra.mxu0 0.0
    %2655 = vmatprep.subr.mxu0 0.0
    %2656 = vmatpush1.xpose.msra.mxu0 0.0
    %2657 = vmatprep.subr.mxu0 0.0
    %2658 = vmatpush1.xpose.msra.mxu0 0.0
    %2659 = vmatprep.subr.mxu0 0.0
    %2660 = vmatpush1.xpose.msra.mxu0 %v2627
    %2661 = vmatprep.subr.mxu0 0.0
    %2662 = vmatpush2.xpose.msra.mxu0 0.0
    %2663 = vmatprep.subr.mxu0 0.0
    %2664 = vmatpush2.xpose.msra.mxu0 0.0
    %2665 = vmatprep.subr.mxu0 0.0
    %2666 = vmatpush2.xpose.msra.mxu0 0.0
    %2667 = vmatprep.subr.mxu0 0.0
    %2668 = vmatpush2.xpose.msra.mxu0 0.0
    %2669 = vmatprep.subr.mxu0 0.0
    %2670 = vmatpush2.xpose.msra.mxu0 0.0
    %2671 = vmatprep.subr.mxu0 0.0
    %2672 = vmatpush2.xpose.msra.mxu0 0.0
    %2673 = vmatprep.subr.mxu0 0.0
    %2674 = vmatpush2.xpose.msra.mxu0 0.0
    %2675 = vmatprep.subr.mxu0 0.0
    %2676 = vmatpush2.xpose.msra.mxu0 0.0
    %2677 = vmatprep.subr.mxu0 0.0
    %2678 = vmatpush2.xpose.msra.mxu0 0.0
    %2679 = vmatprep.subr.mxu0 0.0
    %2680 = vmatpush2.xpose.msra.mxu0 0.0
    %2681 = vmatprep.subr.mxu0 0.0
    %2682 = vmatpush2.xpose.msra.mxu0 0.0
    %2683 = vmatprep.subr.mxu0 0.0
    %2684 = vmatpush2.xpose.msra.mxu0 0.0
    %2685 = vmatprep.subr.mxu0 0.0
    %2686 = vmatpush2.xpose.msra.mxu0 0.0
    %2687 = vmatprep.subr.mxu0 0.0
    %2688 = vmatpush2.xpose.msra.mxu0 0.0
    %2689 = vmatprep.subr.mxu0 0.0
    %2690 = vmatpush2.xpose.msra.mxu0 0.0
    %2691 = vmatprep.subr.mxu0 0.0
    %2692 = vmatpush2.xpose.msra.mxu0 0.0
    %2693 = vmatprep.mubr.f32.mxu0 0.0
    %2694 = vmatmul.mubr.f32.gmra.mxu0 %v2625
    %v2695 = vpop.f32.mrf.mxu0
    %v2696 = vadd.f32 0.0, %v2695
    %v2697 = vpop.f32.mrf.mxu0
    %2698 = vdwg.mxu0
    %v2699 = vsel %vm429, %v2696, -inf
    %2700 = vmax.xlane.f32.xlu0 %v2699
    %v2701 = vpop.xlane.xlu0 %2700
    %v2702 = vsub.f32 %v2696, %v2701
    %v2703 = vmul.f32 %v2702, 1.442695
    %v2704 = vpow.pop %v2703
    %v2705 = vsel %vm429, %v2704, 0.0
    %2706 = vadd.xlane.f32.xlu0 %v2705
    %v2707 = vpop.xlane.xlu0 %2706
    %v2708 = vrcp.pop %v2707
    %v2709 = vmul.f32 1.0, %v2708
    %2710 = vrot.lane.b32.xlu0 %v426, 88
    %v2711 = vpop.permute.xlu0 %2710
    %v2714 = vsel %vm429, %v2704, 0
    %2716 = vmatprep.subr.mxu0 0.0
    %2717 = vmatpush1.msra.mxu0 0.0
    %2718 = vmatprep.subr.mxu0 0.0
    %2719 = vmatpush1.msra.mxu0 0.0
    %2720 = vmatprep.subr.mxu0 0.0
    %2721 = vmatpush1.msra.mxu0 0.0
    %2722 = vmatprep.subr.mxu0 0.0
    %2723 = vmatpush1.msra.mxu0 0.0
    %2724 = vmatprep.subr.mxu0 0.0
    %2725 = vmatpush1.msra.mxu0 0.0
    %2726 = vmatprep.subr.mxu0 0.0
    %2727 = vmatpush1.msra.mxu0 0.0
    %2728 = vmatprep.subr.mxu0 0.0
    %2729 = vmatpush1.msra.mxu0 0.0
    %2730 = vmatprep.subr.mxu0 0.0
    %2731 = vmatpush1.msra.mxu0 0.0
    %2732 = vmatprep.subr.mxu0 0.0
    %2733 = vmatpush1.msra.mxu0 0.0
    %2734 = vmatprep.subr.mxu0 0.0
    %2735 = vmatpush1.msra.mxu0 0.0
    %2736 = vmatprep.subr.mxu0 0.0
    %2737 = vmatpush1.msra.mxu0 0.0
    %2738 = vmatprep.subr.mxu0 0.0
    %2739 = vmatpush1.msra.mxu0 0.0
    %2740 = vmatprep.subr.mxu0 0.0
    %2741 = vmatpush1.msra.mxu0 0.0
    %2742 = vmatprep.subr.mxu0 0.0
    %2743 = vmatpush1.msra.mxu0 0.0
    %2744 = vmatprep.subr.mxu0 0.0
    %2745 = vmatpush1.msra.mxu0 0.0
    %2746 = vmatprep.subr.mxu0 0.0
    %2747 = vmatpush1.msra.mxu0 %v2711
    %2748 = vmatprep.subr.mxu0 0.0
    %2749 = vmatpush2.msra.mxu0 0.0
    %2750 = vmatprep.subr.mxu0 0.0
    %2751 = vmatpush2.msra.mxu0 0.0
    %2752 = vmatprep.subr.mxu0 0.0
    %2753 = vmatpush2.msra.mxu0 0.0
    %2754 = vmatprep.subr.mxu0 0.0
    %2755 = vmatpush2.msra.mxu0 0.0
    %2756 = vmatprep.subr.mxu0 0.0
    %2757 = vmatpush2.msra.mxu0 0.0
    %2758 = vmatprep.subr.mxu0 0.0
    %2759 = vmatpush2.msra.mxu0 0.0
    %2760 = vmatprep.subr.mxu0 0.0
    %2761 = vmatpush2.msra.mxu0 0.0
    %2762 = vmatprep.subr.mxu0 0.0
    %2763 = vmatpush2.msra.mxu0 0.0
    %2764 = vmatprep.subr.mxu0 0.0
    %2765 = vmatpush2.msra.mxu0 0.0
    %2766 = vmatprep.subr.mxu0 0.0
    %2767 = vmatpush2.msra.mxu0 0.0
    %2768 = vmatprep.subr.mxu0 0.0
    %2769 = vmatpush2.msra.mxu0 0.0
    %2770 = vmatprep.subr.mxu0 0.0
    %2771 = vmatpush2.msra.mxu0 0.0
    %2772 = vmatprep.subr.mxu0 0.0
    %2773 = vmatpush2.msra.mxu0 0.0
    %2774 = vmatprep.subr.mxu0 0.0
    %2775 = vmatpush2.msra.mxu0 0.0
    %2776 = vmatprep.subr.mxu0 0.0
    %2777 = vmatpush2.msra.mxu0 0.0
    %2778 = vmatprep.subr.mxu0 0.0
    %2779 = vmatpush2.msra.mxu0 0.0
    %2780 = vmatprep.mubr.f32.mxu0 0.0
    %2781 = vmatmul.mubr.f32.gmra.mxu0 %v2714
    %v2782 = vpop.f32.mrf.mxu0
    %v2783 = vadd.f32 0.0, %v2782
    %v2784 = vpop.f32.mrf.mxu0
    %2785 = vdwg.mxu0
    %v2786 = vmul.f32 %v2783, %v2709
    %2787 = vrot.lane.b32.xlu0 %v230, 80
    %v2788 = vpop.permute.xlu0 %2787
    %2789 = vrot.lane.b32.xlu0 %v328, 80
    %v2790 = vpop.permute.xlu0 %2789
    %v2791 = vsel %vm429, %v2788, 0
    %v2793 = vsel %vm429, %v2790, 0
    %2795 = vmatprep.subr.mxu0 0.0
    %2796 = vmatpush1.xpose.msra.mxu0 0.0
    %2797 = vmatprep.subr.mxu0 0.0
    %2798 = vmatpush1.xpose.msra.mxu0 0.0
    %2799 = vmatprep.subr.mxu0 0.0
    %2800 = vmatpush1.xpose.msra.mxu0 0.0
    %2801 = vmatprep.subr.mxu0 0.0
    %2802 = vmatpush1.xpose.msra.mxu0 0.0
    %2803 = vmatprep.subr.mxu0 0.0
    %2804 = vmatpush1.xpose.msra.mxu0 0.0
    %2805 = vmatprep.subr.mxu0 0.0
    %2806 = vmatpush1.xpose.msra.mxu0 0.0
    %2807 = vmatprep.subr.mxu0 0.0
    %2808 = vmatpush1.xpose.msra.mxu0 0.0
    %2809 = vmatprep.subr.mxu0 0.0
    %2810 = vmatpush1.xpose.msra.mxu0 0.0
    %2811 = vmatprep.subr.mxu0 0.0
    %2812 = vmatpush1.xpose.msra.mxu0 0.0
    %2813 = vmatprep.subr.mxu0 0.0
    %2814 = vmatpush1.xpose.msra.mxu0 0.0
    %2815 = vmatprep.subr.mxu0 0.0
    %2816 = vmatpush1.xpose.msra.mxu0 0.0
    %2817 = vmatprep.subr.mxu0 0.0
    %2818 = vmatpush1.xpose.msra.mxu0 0.0
    %2819 = vmatprep.subr.mxu0 0.0
    %2820 = vmatpush1.xpose.msra.mxu0 0.0
    %2821 = vmatprep.subr.mxu0 0.0
    %2822 = vmatpush1.xpose.msra.mxu0 0.0
    %2823 = vmatprep.subr.mxu0 0.0
    %2824 = vmatpush1.xpose.msra.mxu0 0.0
    %2825 = vmatprep.subr.mxu0 0.0
    %2826 = vmatpush1.xpose.msra.mxu0 %v2793
    %2827 = vmatprep.subr.mxu0 0.0
    %2828 = vmatpush2.xpose.msra.mxu0 0.0
    %2829 = vmatprep.subr.mxu0 0.0
    %2830 = vmatpush2.xpose.msra.mxu0 0.0
    %2831 = vmatprep.subr.mxu0 0.0
    %2832 = vmatpush2.xpose.msra.mxu0 0.0
    %2833 = vmatprep.subr.mxu0 0.0
    %2834 = vmatpush2.xpose.msra.mxu0 0.0
    %2835 = vmatprep.subr.mxu0 0.0
    %2836 = vmatpush2.xpose.msra.mxu0 0.0
    %2837 = vmatprep.subr.mxu0 0.0
    %2838 = vmatpush2.xpose.msra.mxu0 0.0
    %2839 = vmatprep.subr.mxu0 0.0
    %2840 = vmatpush2.xpose.msra.mxu0 0.0
    %2841 = vmatprep.subr.mxu0 0.0
    %2842 = vmatpush2.xpose.msra.mxu0 0.0
    %2843 = vmatprep.subr.mxu0 0.0
    %2844 = vmatpush2.xpose.msra.mxu0 0.0
    %2845 = vmatprep.subr.mxu0 0.0
    %2846 = vmatpush2.xpose.msra.mxu0 0.0
    %2847 = vmatprep.subr.mxu0 0.0
    %2848 = vmatpush2.xpose.msra.mxu0 0.0
    %2849 = vmatprep.subr.mxu0 0.0
    %2850 = vmatpush2.xpose.msra.mxu0 0.0
    %2851 = vmatprep.subr.mxu0 0.0
    %2852 = vmatpush2.xpose.msra.mxu0 0.0
    %2853 = vmatprep.subr.mxu0 0.0
    %2854 = vmatpush2.xpose.msra.mxu0 0.0
    %2855 = vmatprep.subr.mxu0 0.0
    %2856 = vmatpush2.xpose.msra.mxu0 0.0
    %2857 = vmatprep.subr.mxu0 0.0
    %2858 = vmatpush2.xpose.msra.mxu0 0.0
    %2859 = vmatprep.mubr.f32.mxu0 0.0
    %2860 = vmatmul.mubr.f32.gmra.mxu0 %v2791
    %v2861 = vpop.f32.mrf.mxu0
    %v2862 = vadd.f32 0.0, %v2861
    %v2863 = vpop.f32.mrf.mxu0
    %2864 = vdwg.mxu0
    %v2865 = vsel %vm429, %v2862, -inf
    %2866 = vmax.xlane.f32.xlu0 %v2865
    %v2867 = vpop.xlane.xlu0 %2866
    %v2868 = vsub.f32 %v2862, %v2867
    %v2869 = vmul.f32 %v2868, 1.442695
    %v2870 = vpow.pop %v2869
    %v2871 = vsel %vm429, %v2870, 0.0
    %2872 = vadd.xlane.f32.xlu0 %v2871
    %v2873 = vpop.xlane.xlu0 %2872
    %v2874 = vrcp.pop %v2873
    %v2875 = vmul.f32 1.0, %v2874
    %2876 = vrot.lane.b32.xlu0 %v426, 80
    %v2877 = vpop.permute.xlu0 %2876
    %v2880 = vsel %vm429, %v2870, 0
    %2882 = vmatprep.subr.mxu0 0.0
    %2883 = vmatpush1.msra.mxu0 0.0
    %2884 = vmatprep.subr.mxu0 0.0
    %2885 = vmatpush1.msra.mxu0 0.0
    %2886 = vmatprep.subr.mxu0 0.0
    %2887 = vmatpush1.msra.mxu0 0.0
    %2888 = vmatprep.subr.mxu0 0.0
    %2889 = vmatpush1.msra.mxu0 0.0
    %2890 = vmatprep.subr.mxu0 0.0
    %2891 = vmatpush1.msra.mxu0 0.0
    %2892 = vmatprep.subr.mxu0 0.0
    %2893 = vmatpush1.msra.mxu0 0.0
    %2894 = vmatprep.subr.mxu0 0.0
    %2895 = vmatpush1.msra.mxu0 0.0
    %2896 = vmatprep.subr.mxu0 0.0
    %2897 = vmatpush1.msra.mxu0 0.0
    %2898 = vmatprep.subr.mxu0 0.0
    %2899 = vmatpush1.msra.mxu0 0.0
    %2900 = vmatprep.subr.mxu0 0.0
    %2901 = vmatpush1.msra.mxu0 0.0
    %2902 = vmatprep.subr.mxu0 0.0
    %2903 = vmatpush1.msra.mxu0 0.0
    %2904 = vmatprep.subr.mxu0 0.0
    %2905 = vmatpush1.msra.mxu0 0.0
    %2906 = vmatprep.subr.mxu0 0.0
    %2907 = vmatpush1.msra.mxu0 0.0
    %2908 = vmatprep.subr.mxu0 0.0
    %2909 = vmatpush1.msra.mxu0 0.0
    %2910 = vmatprep.subr.mxu0 0.0
    %2911 = vmatpush1.msra.mxu0 0.0
    %2912 = vmatprep.subr.mxu0 0.0
    %2913 = vmatpush1.msra.mxu0 %v2877
    %2914 = vmatprep.subr.mxu0 0.0
    %2915 = vmatpush2.msra.mxu0 0.0
    %2916 = vmatprep.subr.mxu0 0.0
    %2917 = vmatpush2.msra.mxu0 0.0
    %2918 = vmatprep.subr.mxu0 0.0
    %2919 = vmatpush2.msra.mxu0 0.0
    %2920 = vmatprep.subr.mxu0 0.0
    %2921 = vmatpush2.msra.mxu0 0.0
    %2922 = vmatprep.subr.mxu0 0.0
    %2923 = vmatpush2.msra.mxu0 0.0
    %2924 = vmatprep.subr.mxu0 0.0
    %2925 = vmatpush2.msra.mxu0 0.0
    %2926 = vmatprep.subr.mxu0 0.0
    %2927 = vmatpush2.msra.mxu0 0.0
    %2928 = vmatprep.subr.mxu0 0.0
    %2929 = vmatpush2.msra.mxu0 0.0
    %2930 = vmatprep.subr.mxu0 0.0
    %2931 = vmatpush2.msra.mxu0 0.0
    %2932 = vmatprep.subr.mxu0 0.0
    %2933 = vmatpush2.msra.mxu0 0.0
    %2934 = vmatprep.subr.mxu0 0.0
    %2935 = vmatpush2.msra.mxu0 0.0
    %2936 = vmatprep.subr.mxu0 0.0
    %2937 = vmatpush2.msra.mxu0 0.0
    %2938 = vmatprep.subr.mxu0 0.0
    %2939 = vmatpush2.msra.mxu0 0.0
    %2940 = vmatprep.subr.mxu0 0.0
    %2941 = vmatpush2.msra.mxu0 0.0
    %2942 = vmatprep.subr.mxu0 0.0
    %2943 = vmatpush2.msra.mxu0 0.0
    %2944 = vmatprep.subr.mxu0 0.0
    %2945 = vmatpush2.msra.mxu0 0.0
    %2946 = vmatprep.mubr.f32.mxu0 0.0
    %2947 = vmatmul.mubr.f32.gmra.mxu0 %v2880
    %v2948 = vpop.f32.mrf.mxu0
    %v2949 = vadd.f32 0.0, %v2948
    %v2950 = vpop.f32.mrf.mxu0
    %2951 = vdwg.mxu0
    %v2952 = vmul.f32 %v2949, %v2875
    %2953 = vrot.lane.b32.xlu0 %v230, 72
    %v2954 = vpop.permute.xlu0 %2953
    %2955 = vrot.lane.b32.xlu0 %v328, 72
    %v2956 = vpop.permute.xlu0 %2955
    %v2957 = vsel %vm429, %v2954, 0
    %v2959 = vsel %vm429, %v2956, 0
    %2961 = vmatprep.subr.mxu0 0.0
    %2962 = vmatpush1.xpose.msra.mxu0 0.0
    %2963 = vmatprep.subr.mxu0 0.0
    %2964 = vmatpush1.xpose.msra.mxu0 0.0
    %2965 = vmatprep.subr.mxu0 0.0
    %2966 = vmatpush1.xpose.msra.mxu0 0.0
    %2967 = vmatprep.subr.mxu0 0.0
    %2968 = vmatpush1.xpose.msra.mxu0 0.0
    %2969 = vmatprep.subr.mxu0 0.0
    %2970 = vmatpush1.xpose.msra.mxu0 0.0
    %2971 = vmatprep.subr.mxu0 0.0
    %2972 = vmatpush1.xpose.msra.mxu0 0.0
    %2973 = vmatprep.subr.mxu0 0.0
    %2974 = vmatpush1.xpose.msra.mxu0 0.0
    %2975 = vmatprep.subr.mxu0 0.0
    %2976 = vmatpush1.xpose.msra.mxu0 0.0
    %2977 = vmatprep.subr.mxu0 0.0
    %2978 = vmatpush1.xpose.msra.mxu0 0.0
    %2979 = vmatprep.subr.mxu0 0.0
    %2980 = vmatpush1.xpose.msra.mxu0 0.0
    %2981 = vmatprep.subr.mxu0 0.0
    %2982 = vmatpush1.xpose.msra.mxu0 0.0
    %2983 = vmatprep.subr.mxu0 0.0
    %2984 = vmatpush1.xpose.msra.mxu0 0.0
    %2985 = vmatprep.subr.mxu0 0.0
    %2986 = vmatpush1.xpose.msra.mxu0 0.0
    %2987 = vmatprep.subr.mxu0 0.0
    %2988 = vmatpush1.xpose.msra.mxu0 0.0
    %2989 = vmatprep.subr.mxu0 0.0
    %2990 = vmatpush1.xpose.msra.mxu0 0.0
    %2991 = vmatprep.subr.mxu0 0.0
    %2992 = vmatpush1.xpose.msra.mxu0 %v2959
    %2993 = vmatprep.subr.mxu0 0.0
    %2994 = vmatpush2.xpose.msra.mxu0 0.0
    %2995 = vmatprep.subr.mxu0 0.0
    %2996 = vmatpush2.xpose.msra.mxu0 0.0
    %2997 = vmatprep.subr.mxu0 0.0
    %2998 = vmatpush2.xpose.msra.mxu0 0.0
    %2999 = vmatprep.subr.mxu0 0.0
    %3000 = vmatpush2.xpose.msra.mxu0 0.0
    %3001 = vmatprep.subr.mxu0 0.0
    %3002 = vmatpush2.xpose.msra.mxu0 0.0
    %3003 = vmatprep.subr.mxu0 0.0
    %3004 = vmatpush2.xpose.msra.mxu0 0.0
    %3005 = vmatprep.subr.mxu0 0.0
    %3006 = vmatpush2.xpose.msra.mxu0 0.0
    %3007 = vmatprep.subr.mxu0 0.0
    %3008 = vmatpush2.xpose.msra.mxu0 0.0
    %3009 = vmatprep.subr.mxu0 0.0
    %3010 = vmatpush2.xpose.msra.mxu0 0.0
    %3011 = vmatprep.subr.mxu0 0.0
    %3012 = vmatpush2.xpose.msra.mxu0 0.0
    %3013 = vmatprep.subr.mxu0 0.0
    %3014 = vmatpush2.xpose.msra.mxu0 0.0
    %3015 = vmatprep.subr.mxu0 0.0
    %3016 = vmatpush2.xpose.msra.mxu0 0.0
    %3017 = vmatprep.subr.mxu0 0.0
    %3018 = vmatpush2.xpose.msra.mxu0 0.0
    %3019 = vmatprep.subr.mxu0 0.0
    %3020 = vmatpush2.xpose.msra.mxu0 0.0
    %3021 = vmatprep.subr.mxu0 0.0
    %3022 = vmatpush2.xpose.msra.mxu0 0.0
    %3023 = vmatprep.subr.mxu0 0.0
    %3024 = vmatpush2.xpose.msra.mxu0 0.0
    %3025 = vmatprep.mubr.f32.mxu0 0.0
    %3026 = vmatmul.mubr.f32.gmra.mxu0 %v2957
    %v3027 = vpop.f32.mrf.mxu0
    %v3028 = vadd.f32 0.0, %v3027
    %v3029 = vpop.f32.mrf.mxu0
    %3030 = vdwg.mxu0
    %v3031 = vsel %vm429, %v3028, -inf
    %3032 = vmax.xlane.f32.xlu0 %v3031
    %v3033 = vpop.xlane.xlu0 %3032
    %v3034 = vsub.f32 %v3028, %v3033
    %v3035 = vmul.f32 %v3034, 1.442695
    %v3036 = vpow.pop %v3035
    %v3037 = vsel %vm429, %v3036, 0.0
    %3038 = vadd.xlane.f32.xlu0 %v3037
    %v3039 = vpop.xlane.xlu0 %3038
    %v3040 = vrcp.pop %v3039
    %v3041 = vmul.f32 1.0, %v3040
    %3042 = vrot.lane.b32.xlu0 %v426, 72
    %v3043 = vpop.permute.xlu0 %3042
    %v3046 = vsel %vm429, %v3036, 0
    %3048 = vmatprep.subr.mxu0 0.0
    %3049 = vmatpush1.msra.mxu0 0.0
    %3050 = vmatprep.subr.mxu0 0.0
    %3051 = vmatpush1.msra.mxu0 0.0
    %3052 = vmatprep.subr.mxu0 0.0
    %3053 = vmatpush1.msra.mxu0 0.0
    %3054 = vmatprep.subr.mxu0 0.0
    %3055 = vmatpush1.msra.mxu0 0.0
    %3056 = vmatprep.subr.mxu0 0.0
    %3057 = vmatpush1.msra.mxu0 0.0
    %3058 = vmatprep.subr.mxu0 0.0
    %3059 = vmatpush1.msra.mxu0 0.0
    %3060 = vmatprep.subr.mxu0 0.0
    %3061 = vmatpush1.msra.mxu0 0.0
    %3062 = vmatprep.subr.mxu0 0.0
    %3063 = vmatpush1.msra.mxu0 0.0
    %3064 = vmatprep.subr.mxu0 0.0
    %3065 = vmatpush1.msra.mxu0 0.0
    %3066 = vmatprep.subr.mxu0 0.0
    %3067 = vmatpush1.msra.mxu0 0.0
    %3068 = vmatprep.subr.mxu0 0.0
    %3069 = vmatpush1.msra.mxu0 0.0
    %3070 = vmatprep.subr.mxu0 0.0
    %3071 = vmatpush1.msra.mxu0 0.0
    %3072 = vmatprep.subr.mxu0 0.0
    %3073 = vmatpush1.msra.mxu0 0.0
    %3074 = vmatprep.subr.mxu0 0.0
    %3075 = vmatpush1.msra.mxu0 0.0
    %3076 = vmatprep.subr.mxu0 0.0
    %3077 = vmatpush1.msra.mxu0 0.0
    %3078 = vmatprep.subr.mxu0 0.0
    %3079 = vmatpush1.msra.mxu0 %v3043
    %3080 = vmatprep.subr.mxu0 0.0
    %3081 = vmatpush2.msra.mxu0 0.0
    %3082 = vmatprep.subr.mxu0 0.0
    %3083 = vmatpush2.msra.mxu0 0.0
    %3084 = vmatprep.subr.mxu0 0.0
    %3085 = vmatpush2.msra.mxu0 0.0
    %3086 = vmatprep.subr.mxu0 0.0
    %3087 = vmatpush2.msra.mxu0 0.0
    %3088 = vmatprep.subr.mxu0 0.0
    %3089 = vmatpush2.msra.mxu0 0.0
    %3090 = vmatprep.subr.mxu0 0.0
    %3091 = vmatpush2.msra.mxu0 0.0
    %3092 = vmatprep.subr.mxu0 0.0
    %3093 = vmatpush2.msra.mxu0 0.0
    %3094 = vmatprep.subr.mxu0 0.0
    %3095 = vmatpush2.msra.mxu0 0.0
    %3096 = vmatprep.subr.mxu0 0.0
    %3097 = vmatpush2.msra.mxu0 0.0
    %3098 = vmatprep.subr.mxu0 0.0
    %3099 = vmatpush2.msra.mxu0 0.0
    %3100 = vmatprep.subr.mxu0 0.0
    %3101 = vmatpush2.msra.mxu0 0.0
    %3102 = vmatprep.subr.mxu0 0.0
    %3103 = vmatpush2.msra.mxu0 0.0
    %3104 = vmatprep.subr.mxu0 0.0
    %3105 = vmatpush2.msra.mxu0 0.0
    %3106 = vmatprep.subr.mxu0 0.0
    %3107 = vmatpush2.msra.mxu0 0.0
    %3108 = vmatprep.subr.mxu0 0.0
    %3109 = vmatpush2.msra.mxu0 0.0
    %3110 = vmatprep.subr.mxu0 0.0
    %3111 = vmatpush2.msra.mxu0 0.0
    %3112 = vmatprep.mubr.f32.mxu0 0.0
    %3113 = vmatmul.mubr.f32.gmra.mxu0 %v3046
    %v3114 = vpop.f32.mrf.mxu0
    %v3115 = vadd.f32 0.0, %v3114
    %v3116 = vpop.f32.mrf.mxu0
    %3117 = vdwg.mxu0
    %v3118 = vmul.f32 %v3115, %v3041
    %3120 = vrot.lane.b32.xlu0 %v2122, 8
    %v3121 = vpop.permute.xlu0 %3120
    %3124 = vrot.lane.b32.xlu0 %v2288, 16
    %v3125 = vpop.permute.xlu0 %3124
    %3128 = vrot.lane.b32.xlu0 %v2454, 24
    %v3129 = vpop.permute.xlu0 %3128
    %3132 = vrot.lane.b32.xlu0 %v2620, 32
    %v3133 = vpop.permute.xlu0 %3132
    %3136 = vrot.lane.b32.xlu0 %v2786, 40
    %v3137 = vpop.permute.xlu0 %3136
    %3140 = vrot.lane.b32.xlu0 %v2952, 48
    %v3141 = vpop.permute.xlu0 %3140
    %3144 = vrot.lane.b32.xlu0 %v3118, 56
    %v3145 = vpop.permute.xlu0 %3144
    %v3147 = vsel %vm429, %v1955, %v3121
    %v3148 = vsel %vm1783, %v3147, %v3125
    %v3149 = vsel %vm1785, %v3148, %v3129
    %v3150 = vsel %vm1787, %v3149, %v3133
    %v3151 = vsel %vm1789, %v3150, %v3137
    %v3152 = vsel %vm1791, %v3151, %v3141
    %v3153 = vsel %vm1793, %v3152, %v3145
    %v3154 = vld [vmem:[#allocation13] sm:$0xff]
    %v3155 = vld [vmem:[#allocation13 + $0x8] sm:$0xff]
    %v3156 = vld [vmem:[#allocation13 + $0x10] sm:$0xff]
    %v3157 = vld [vmem:[#allocation13 + $0x18] sm:$0xff]
    %v3158 = vld [vmem:[#allocation13 + $0x20] sm:$0xff]
    %v3159 = vld [vmem:[#allocation13 + $0x28] sm:$0xff]
    %v3160 = vld [vmem:[#allocation13 + $0x30] sm:$0xff]
    %v3161 = vld [vmem:[#allocation13 + $0x38] sm:$0xff]
    %v3162 = vld [vmem:[%s10] sm:$0x1]
    %v3164 = vlaneseq
    %v3165 = vshrl.u32 %v3164, 7
    %v3166 = vsub.s32 0, %v3165
    %v3167 = vrot.slane %v3162, %v3166
    %v3170 = vsel %vm151, %v1794, 0
    %v3173 = vsel %vm151, %v3153, 0
    %3175 = vmatprep.subr.mxu0 0.0
    %3176 = vmatpush1.msra.mxu0 0.0
    %3177 = vmatprep.subr.mxu0 0.0
    %3178 = vmatpush1.msra.mxu0 0.0
    %3179 = vmatprep.subr.mxu0 0.0
    %3180 = vmatpush1.msra.mxu0 0.0
    %3181 = vmatprep.subr.mxu0 0.0
    %3182 = vmatpush1.msra.mxu0 0.0
    %3183 = vmatprep.subr.mxu0 0.0
    %3184 = vmatpush1.msra.mxu0 0.0
    %3185 = vmatprep.subr.mxu0 0.0
    %3186 = vmatpush1.msra.mxu0 0.0
    %3187 = vmatprep.subr.mxu0 0.0
    %3188 = vmatpush1.msra.mxu0 0.0
    %3189 = vmatprep.subr.mxu0 0.0
    %3190 = vmatpush1.msra.mxu0 0.0
    %3191 = vmatprep.subr.mxu0 0.0
    %3192 = vmatpush1.msra.mxu0 %v3161
    %3193 = vmatprep.subr.mxu0 0.0
    %3194 = vmatpush1.msra.mxu0 %v3160
    %3195 = vmatprep.subr.mxu0 0.0
    %3196 = vmatpush1.msra.mxu0 %v3159
    %3197 = vmatprep.subr.mxu0 0.0
    %3198 = vmatpush1.msra.mxu0 %v3158
    %3199 = vmatprep.subr.mxu0 0.0
    %3200 = vmatpush1.msra.mxu0 %v3157
    %3201 = vmatprep.subr.mxu0 0.0
    %3202 = vmatpush1.msra.mxu0 %v3156
    %3203 = vmatprep.subr.mxu0 0.0
    %3204 = vmatpush1.msra.mxu0 %v3155
    %3205 = vmatprep.subr.mxu0 0.0
    %3206 = vmatpush1.msra.mxu0 %v3154
    %3207 = vmatprep.subr.mxu0 0.0
    %3208 = vmatpush2.msra.mxu0 0.0
    %3209 = vmatprep.subr.mxu0 0.0
    %3210 = vmatpush2.msra.mxu0 0.0
    %3211 = vmatprep.subr.mxu0 0.0
    %3212 = vmatpush2.msra.mxu0 0.0
    %3213 = vmatprep.subr.mxu0 0.0
    %3214 = vmatpush2.msra.mxu0 0.0
    %3215 = vmatprep.subr.mxu0 0.0
    %3216 = vmatpush2.msra.mxu0 0.0
    %3217 = vmatprep.subr.mxu0 0.0
    %3218 = vmatpush2.msra.mxu0 0.0
    %3219 = vmatprep.subr.mxu0 0.0
    %3220 = vmatpush2.msra.mxu0 0.0
    %3221 = vmatprep.subr.mxu0 0.0
    %3222 = vmatpush2.msra.mxu0 0.0
    %3223 = vmatprep.subr.mxu0 0.0
    %3224 = vmatpush2.msra.mxu0 0.0
    %3225 = vmatprep.subr.mxu0 0.0
    %3226 = vmatpush2.msra.mxu0 0.0
    %3227 = vmatprep.subr.mxu0 0.0
    %3228 = vmatpush2.msra.mxu0 0.0
    %3229 = vmatprep.subr.mxu0 0.0
    %3230 = vmatpush2.msra.mxu0 0.0
    %3231 = vmatprep.subr.mxu0 0.0
    %3232 = vmatpush2.msra.mxu0 0.0
    %3233 = vmatprep.subr.mxu0 0.0
    %3234 = vmatpush2.msra.mxu0 0.0
    %3235 = vmatprep.subr.mxu0 0.0
    %3236 = vmatpush2.msra.mxu0 0.0
    %3237 = vmatprep.subr.mxu0 0.0
    %3238 = vmatpush2.msra.mxu0 0.0
    %3239 = vmatprep.mubr.f32.mxu0 0.0
    %3240 = vmatmul.mubr.f32.gmra.mxu0 %v3170
    %v3241 = vpop.f32.mrf.mxu0
    %v3242 = vadd.f32 %v3167, %v3241
    %v3243 = vpop.f32.mrf.mxu0
    %3244 = vmatprep.mubr.f32.mxu0 0.0
    %3245 = vmatmul.mubr.f32.gmra.mxu0 %v3173
    %v3246 = vpop.f32.mrf.mxu0
    %v3247 = vadd.f32 %v3167, %v3246
    %v3248 = vpop.f32.mrf.mxu0
    %3249 = vdwg.mxu0
    %3250 = vst.msk [vmem:[#allocation14] sm:$0xff] %vm151, %v3242
    %3251 = vst.msk [vmem:[#allocation14 + $0x8] sm:$0xff] %vm151, %v3247
    // Predicated region
    $region74: #{tpu_custom_call.1} parent=1 // pred_check
      _
    $region75: #{tpu_custom_call.1} parent=1 // pred_check_branch
      %3253 = sbr.rel (0) target = $region77
    $region76: #{tpu_custom_call.1} parent=1 // pred_region
      %s3255 = ssub.s32 256, 256
      %3256 = vsyncadd [#allocation4], %s3255
      %s3257 = sshll.u32 [#allocation14], 4
      %s3258 = int_to_ptr.vmem [resolvable:$true] %s3257
      %3263 = dma.vmem_to_hbm [thread:$0]  %s3258, 256, %s11, [#allocation4], 128, 128, 8
    $region77: #{tpu_custom_call.1} parent=1 // pred_fallthru
      _
    // Predicated region
    $region78: #{tpu_custom_call.1} parent=1 // pred_check
      _
    $region79: #{tpu_custom_call.1} parent=1 // pred_check_branch
      %3265 = sbr.rel (0) target = $region81
    $region80: #{tpu_custom_call.1} parent=1 // pred_region
      %3266 = dma.done [#allocation4], 256
    $region81: #{tpu_custom_call.1} parent=1 // pred_fallthru
      _
    %3267 = vsyncpa [#allocation3], 1
    %3268 = vsyncpa [#allocation6], 1
    %3269 = vsyncpa [#allocation9], 1
    %3270 = vsyncpa [#allocation12], 1
    %3271 = vsyncpa [#allocation4], 1

</llo_original>
